<compile_context>
chip_gen: v5e
topology: v5e:2x2
jax: 0.10.0
libtpu: 0.0.40
codegen_flags: <defaults>
</compile_context>

<pallas_src>
import jax
import jax.numpy as jnp
from jax.experimental import pallas as pl
from jax.experimental.pallas import tpu as pltpu


# ----------------------------- padding helpers ------------------------------

def _round_up(x, m):
    return ((x + m - 1) // m) * m


def _pad_axis(x, axis, new_size):
    pad = new_size - x.shape[axis]
    if pad == 0:
        return x
    widths = [(0, 0)] * x.ndim
    widths[axis] = (0, pad)
    return jnp.pad(x, widths)


def _pad_gate_cols(w, hd, hdp):
    """Pad each of the 4 LSTM gate blocks (i,f,g,o) along the last axis Hd->Hdp."""
    lead = w.shape[:-1]
    w4 = w.reshape(lead + (4, hd))
    w4 = _pad_axis(w4, w4.ndim - 1, hdp)
    return w4.reshape(lead + (4 * hdp,))


# --------------------------------- kernel -----------------------------------

def _decoder_kernel(
    enc_ref,        # (Bt, Pp, Dep)   encoder features (zero-padded)
    encatt_ref,     # (Bt, Pp, Ap)    enc @ W_enc_att + b_enc_att + b_dec_att
    smask_ref,      # (1, Pp)         additive score mask (0 real / -1e30 pad pixels)
    h0_ref,         # (Bt, Hdp)
    c0_ref,         # (Bt, Hdp)
    wh_ref,         # (Hdp, Ap+Dep+4Hdp)  fused [W_dec_att | W_beta | W_hh]
    bh_ref,         # (1,   Ap+Dep+4Hdp)  fused bias (only beta bias nonzero)
    wia_ref,        # (Dep, 4Hdp)     LSTM W_ih, attention-weighted-encoding part
    wfull_ref,      # (1, Ap)         full_att weight (row vector)
    emb_ref,        # (Td, Bt, 4Hdp)  emb_t @ W_ih_emb + b_lstm, all steps
    h_out_ref,      # (Td, Bt, Hdp)
    alpha_out_ref,  # (Td, Bt, Pp)
    h_s, c_s,       # VMEM scratch (Bt, Hdp) recurrent state
):
    Ap = wfull_ref.shape[1]
    Dep = enc_ref.shape[2]
    Hdp = h_s.shape[1]
    Td = emb_ref.shape[0]

    # recurrent state starts from init_hidden_state(mean(enc))
    h_s[...] = h0_ref[...]
    c_s[...] = c0_ref[...]

    # Entire recurrence in ONE grid step: no per-timestep pipeline overhead.
    @pl.loop(0, Td)
    def _step(t):
        h = h_s[...]
        c = c_s[...]

        # Fused h-projection: h @ [W_dec_att | W_beta | W_hh] + fused bias.
        # Segment offsets (Ap, Dep, Hdp) are 128-multiples -> slices below are
        # lane-aligned free views.
        hz = (jnp.dot(h, wh_ref[...], preferred_element_type=jnp.float32)
              + bh_ref[...])
        dec_att = hz[:, :Ap]                          # (Bt, Ap)
        gate = jax.nn.sigmoid(hz[:, Ap:Ap + Dep])     # (Bt, Dep)  sigmoid(beta(h))
        hh_gates = hz[:, Ap + Dep:]                   # (Bt, 4Hdp) h @ W_hh

        # Attention (encoder-side projection + both attention biases hoisted).
        e = jnp.maximum(encatt_ref[...] + dec_att[:, None, :], 0.0)     # (Bt,Pp,Ap)
        scores = jnp.sum(e * wfull_ref[...], axis=-1) + smask_ref[...]  # (Bt,Pp)
        # (full_att bias is a uniform shift over pixels -> softmax-invariant.)
        s_max = jnp.max(scores, axis=1, keepdims=True)
        s_exp = jnp.exp(scores - s_max)
        alpha = s_exp * pl.reciprocal(
            jnp.sum(s_exp, axis=1, keepdims=True), approx=True)         # (Bt,Pp)
        # TODO(synk): at production P*De move this contraction onto the MXU
        # (batched dot_general: alpha (B,1,P) x enc (B,P,De)); VPU form is
        # negligible at these sizes.
        context = jnp.sum(enc_ref[...] * alpha[:, :, None], axis=1)     # (Bt,Dep)
        awe = gate * context                                            # (Bt,Dep)

        # LSTMCell (embedding-side projection + all biases precomputed outside).
        gates = (emb_ref[t]
                 + jnp.dot(awe, wia_ref[...], preferred_element_type=jnp.float32)
                 + hh_gates)                                            # (Bt,4Hdp)
        i_g = jax.nn.sigmoid(gates[:, 0 * Hdp:1 * Hdp])
        f_g = jax.nn.sigmoid(gates[:, 1 * Hdp:2 * Hdp])
        g_g = jnp.tanh(gates[:, 2 * Hdp:3 * Hdp])
        o_g = jax.nn.sigmoid(gates[:, 3 * Hdp:4 * Hdp])
        c_new = f_g * c + i_g * g_g
        h_new = o_g * jnp.tanh(c_new)

        # Lane-dense per-step outputs (Hdp, Pp are 128-multiples -> unmasked vst).
        h_out_ref[t] = h_new
        alpha_out_ref[t] = alpha
        h_s[...] = h_new
        c_s[...] = c_new


def _run_decode_steps(enc, enc_att, smask, h0, c0, w_h, b_h, w_ih_a, w_full,
                      emb_gates, *, batch_block=8):
    Bp, Pp, Dep = enc.shape
    Ap = w_full.shape[1]
    Hdp = h0.shape[1]
    G = 4 * Hdp
    W = Ap + Dep + G
    Td = emb_gates.shape[0]

    Bt = min(batch_block, Bp)
    assert Bp % Bt == 0, "padded batch must be a multiple of the batch block"
    nb = Bp // Bt

    in_specs = [
        pl.BlockSpec((Bt, Pp, Dep), lambda i: (i, 0, 0)),    # enc
        pl.BlockSpec((Bt, Pp, Ap), lambda i: (i, 0, 0)),     # precomputed enc_att
        pl.BlockSpec((1, Pp), lambda i: (0, 0)),             # pixel score mask
        pl.BlockSpec((Bt, Hdp), lambda i: (i, 0)),           # h0
        pl.BlockSpec((Bt, Hdp), lambda i: (i, 0)),           # c0
        pl.BlockSpec((Hdp, W), lambda i: (0, 0)),            # fused h-weights
        pl.BlockSpec((1, W), lambda i: (0, 0)),              # fused h-bias
        pl.BlockSpec((Dep, G), lambda i: (0, 0)),            # LSTM W_ih (awe part)
        pl.BlockSpec((1, Ap), lambda i: (0, 0)),             # full_att weight
        pl.BlockSpec((Td, Bt, G), lambda i: (0, i, 0)),      # emb gates, all steps
    ]
    out_specs = [
        pl.BlockSpec((Td, Bt, Hdp), lambda i: (0, i, 0)),
        pl.BlockSpec((Td, Bt, Pp), lambda i: (0, i, 0)),
    ]

    grid_spec = pltpu.PrefetchScalarGridSpec(
        num_scalar_prefetch=0,
        grid=(nb,),                              # batch-block axis only
        in_specs=in_specs, out_specs=out_specs,
        scratch_shapes=[
            pltpu.VMEM((Bt, Hdp), jnp.float32),  # h state
            pltpu.VMEM((Bt, Hdp), jnp.float32),  # c state
        ])

    return pl.pallas_call(
        _decoder_kernel,
        out_shape=(jax.ShapeDtypeStruct((Td, Bp, Hdp), jnp.float32),
                   jax.ShapeDtypeStruct((Td, Bp, Pp), jnp.float32)),
        grid_spec=grid_spec,
        compiler_params=pltpu.CompilerParams(
            dimension_semantics=("parallel",),   # batch blocks are independent
            vmem_limit_bytes=48 * 1024 * 1024),  # fits v7x 64 MiB with headroom
    )(enc, enc_att, smask, h0, c0, w_h, b_h, w_ih_a, w_full, emb_gates)


# --------------------------------- wrapper ----------------------------------

def decoder_forward(params, enc_out, enc_captions, lengths):
    """Mirrors Decoder.forward (inference semantics: dropout = identity).

    Decode steps run for the static T - 1; steps past a row's decode length
    are zero, matching the torch.zeros initialization of predictions / alphas.
    """
    B = enc_out.shape[0]
    De = enc_out.shape[-1]
    enc_out = enc_out.reshape(B, -1, De)                    # (B, P, De)
    P = enc_out.shape[1]

    ind = jnp.argsort(-lengths)                             # sort descending
    caption_lengths = lengths[ind]
    enc_out_s = enc_out[ind].astype(jnp.float32)
    enc_captions_s = enc_captions[ind]
    decode_lengths = caption_lengths - 1

    Hd = params['w_hh'].shape[0]
    A = params['w_dec_att'].shape[1]
    T = enc_captions.shape[1]
    Td = T - 1

    # TPU-friendly padded dims: lane dims -> 128-multiples, batch -> sublane(8).
    Bt = 8
    Bp = max(Bt, _round_up(B, Bt))
    Ap = _round_up(A, 128)
    Dep = _round_up(De, 128)
    Hdp = _round_up(Hd, 128)
    Pp = _round_up(P, 128)

    # ---- time-invariant precompute, hoisted out of the kernel ----
    enc_att = (jnp.einsum('bpd,da->bpa', enc_out_s, params['w_enc_att'])
               + params['b_enc_att'] + params['b_dec_att'])           # (B, P, A)
    embeddings = jnp.take(params['embedding'], enc_captions_s, axis=0)  # (B,T,E)
    emb_tbe = jnp.transpose(embeddings[:, :Td, :], (1, 0, 2)).astype(jnp.float32)
    emb_gates = (jnp.einsum('tbe,eg->tbg', emb_tbe, params['w_ih_e'])
                 + params['b_lstm'])                                  # (Td, B, 4Hd)
    mean_a = jnp.mean(enc_out_s, axis=1)                              # (B, De)
    w_init = jnp.concatenate([params['w_init_h'], params['w_init_c']], axis=1)
    b_init = jnp.concatenate([params['b_init_h'], params['b_init_c']], axis=1)
    h0c0 = mean_a @ w_init + b_init                                   # (B, 2Hd)
    h0, c0 = h0c0[:, :Hd], h0c0[:, Hd:]

    # ---- pad everything to lane/sublane-aligned shapes (zeros are inert) ----
    enc_p = _pad_axis(_pad_axis(_pad_axis(enc_out_s, 2, Dep), 1, Pp), 0, Bp)
    encatt_p = _pad_axis(_pad_axis(_pad_axis(enc_att, 2, Ap), 1, Pp), 0, Bp)
    smask = jnp.where(jnp.arange(Pp) < P, 0.0, -1e30).astype(jnp.float32)[None, :]
    h0_p = _pad_axis(_pad_axis(h0, 1, Hdp), 0, Bp)
    c0_p = _pad_axis(_pad_axis(c0, 1, Hdp), 0, Bp)
    emb_gates_p = _pad_axis(_pad_gate_cols(emb_gates, Hd, Hdp), 1, Bp)

    # Fused, lane-aligned per-step h-projection [decoder_att | beta | W_hh]
    # (b_dec_att folded into enc_att, b_lstm folded into emb_gates).
    w_dec_att_p = _pad_axis(_pad_axis(params['w_dec_att'], 1, Ap), 0, Hdp)
    w_beta_p = _pad_axis(_pad_axis(params['w_beta'], 1, Dep), 0, Hdp)
    w_hh_p = _pad_axis(_pad_gate_cols(params['w_hh'], Hd, Hdp), 0, Hdp)
    w_h = jnp.concatenate([w_dec_att_p, w_beta_p, w_hh_p], axis=1)
    b_h = jnp.concatenate(
        [jnp.zeros((1, Ap), jnp.float32),
         _pad_axis(params['b_beta'], 1, Dep),
         jnp.zeros((1, 4 * Hdp), jnp.float32)], axis=1)
    w_ih_a_p = _pad_axis(_pad_gate_cols(params['w_ih_a'], Hd, Hdp), 0, Dep)
    w_full_p = _pad_axis(params['w_full'], 1, Ap)

    h_tbh, alphas_tbp = _run_decode_steps(
        enc_p, encatt_p, smask, h0_p, c0_p, w_h, b_h, w_ih_a_p, w_full_p,
        emb_gates_p, batch_block=Bt)

    # Strip padding, fc head as one batched matmul (Dropout(0.5) = identity at
    # inference), then mask time steps past each row's decode length.
    h_tbh = h_tbh[:, :B, :Hd]
    alphas_tbp = alphas_tbp[:, :B, :P]
    preds = jnp.einsum('tbh,hv->tbv', h_tbh, params['w_fc']) + params['b_fc']
    step_ids = jnp.arange(Td, dtype=decode_lengths.dtype)
    mask = (decode_lengths[None, :] > step_ids[:, None]).astype(jnp.float32)  # (Td,B)
    predictions = jnp.transpose(preds * mask[:, :, None], (1, 0, 2))   # (B, Td, V)
    alphas = jnp.transpose(alphas_tbp * mask[:, :, None], (1, 0, 2))   # (B, Td, P)
    return predictions, alphas, enc_captions_s, decode_lengths, ind


def make_params(key, vocab_size, embedding_dim, hidden_dim, attention_dim, encoder_dim):
    ks = jax.random.split(key, 19)
    u = lambda k, shape, s=0.1: jax.random.uniform(k, shape, jnp.float32, -s, s)
    return {
        'embedding': u(ks[0], (vocab_size, embedding_dim)),      # uniform(-0.1, 0.1)
        'w_init_h': u(ks[1], (encoder_dim, hidden_dim)),
        'b_init_h': u(ks[2], (1, hidden_dim)),
        'w_init_c': u(ks[3], (encoder_dim, hidden_dim)),
        'b_init_c': u(ks[4], (1, hidden_dim)),
        'w_enc_att': u(ks[5], (encoder_dim, attention_dim)),
        'b_enc_att': u(ks[6], (1, attention_dim)),
        'w_dec_att': u(ks[7], (hidden_dim, attention_dim)),
        'b_dec_att': u(ks[8], (1, attention_dim)),
        'w_full': u(ks[9], (1, attention_dim)),
        'b_full': u(ks[10], (1, 1)),      # uniform shift before softmax -> no effect
        'w_beta': u(ks[11], (hidden_dim, encoder_dim)),
        'b_beta': u(ks[12], (1, encoder_dim)),
        'w_ih_e': u(ks[13], (embedding_dim, 4 * hidden_dim)),
        'w_ih_a': u(ks[14], (encoder_dim, 4 * hidden_dim)),
        'w_hh': u(ks[15], (hidden_dim, 4 * hidden_dim)),
        'b_lstm': u(ks[16], (1, 4 * hidden_dim)),                # = bias_ih + bias_hh
        'w_fc': u(ks[17], (hidden_dim, vocab_size)),             # uniform(-0.1, 0.1)
        'b_fc': jnp.zeros((1, vocab_size), jnp.float32),         # fc bias filled with 0
    }


if __name__ == "__main__":
    key = jax.random.PRNGKey(0)
    k_p, k_enc, k_cap = jax.random.split(key, 3)

    # Small shapes consistent with the module.
    B, Hs, Ws = 4, 4, 4            # batch, encoder spatial map -> P = 16 pixels
    encoder_dim = 32
    embedding_dim = 16
    hidden_dim = 32
    attention_dim = 32
    vocab_size = 64
    T = 8                          # caption length (tokens)

    params = make_params(k_p, vocab_size, embedding_dim, hidden_dim,
                         attention_dim, encoder_dim)

    enc_out = jax.random.normal(k_enc, (B, Hs, Ws, encoder_dim), jnp.float32)
    enc_captions = jax.random.randint(k_cap, (B, T), 0, vocab_size, jnp.int32)
    lengths = jnp.array([8, 6, 5, 3], dtype=jnp.int32)

    fwd = jax.jit(decoder_forward)
    predictions, alphas, caps_sorted, decode_lengths, ind = fwd(
        params, enc_out, enc_captions, lengths)
    jax.block_until_ready((predictions, alphas, caps_sorted, decode_lengths, ind))
    print("KERNEL_OK")
</pallas_src>

<mosaic_0001>
module attributes {stable_mosaic.version = 11 : i64} {
  func.func @_decoder_kernel(%arg0: i32, %arg1: memref<8x128x128xf32, #tpu.memory_space<vmem>>, %arg2: memref<8x128x128xf32, #tpu.memory_space<vmem>>, %arg3: memref<1x128xf32, #tpu.memory_space<vmem>>, %arg4: memref<8x128xf32, #tpu.memory_space<vmem>>, %arg5: memref<8x128xf32, #tpu.memory_space<vmem>>, %arg6: memref<128x768xf32, #tpu.memory_space<vmem>>, %arg7: memref<1x768xf32, #tpu.memory_space<vmem>>, %arg8: memref<128x512xf32, #tpu.memory_space<vmem>>, %arg9: memref<1x128xf32, #tpu.memory_space<vmem>>, %arg10: memref<7x8x512xf32, #tpu.memory_space<vmem>>, %arg11: memref<7x8x128xf32, #tpu.memory_space<vmem>>, %arg12: memref<7x8x128xf32, #tpu.memory_space<vmem>>, %arg13: memref<8x128xf32, #tpu.memory_space<vmem>>, %arg14: memref<8x128xf32, #tpu.memory_space<vmem>>) attributes {dimension_semantics = [#tpu.dimension_semantics<parallel>], iteration_bounds = array<i64: 1>, scalar_prefetch = 0 : i64, scratch_operands = 2 : i64, tpu.core_type = #tpu.core_type<tc>, window_params = [{transform_indices = @transform_0, window_bounds = array<i64: 8, 128, 128>}, {transform_indices = @transform_1, window_bounds = array<i64: 8, 128, 128>}, {pipeline_mode = #tpu.pipeline_mode<synchronous>, transform_indices = @transform_2, window_bounds = array<i64: 1, 128>}, {transform_indices = @transform_3, window_bounds = array<i64: 8, 128>}, {transform_indices = @transform_4, window_bounds = array<i64: 8, 128>}, {pipeline_mode = #tpu.pipeline_mode<synchronous>, transform_indices = @transform_5, window_bounds = array<i64: 128, 768>}, {pipeline_mode = #tpu.pipeline_mode<synchronous>, transform_indices = @transform_6, window_bounds = array<i64: 1, 768>}, {pipeline_mode = #tpu.pipeline_mode<synchronous>, transform_indices = @transform_7, window_bounds = array<i64: 128, 512>}, {pipeline_mode = #tpu.pipeline_mode<synchronous>, transform_indices = @transform_8, window_bounds = array<i64: 1, 128>}, {transform_indices = @transform_9, window_bounds = array<i64: 7, 8, 512>}, {transform_indices = @transform_10, window_bounds = array<i64: 7, 8, 128>}, {transform_indices = @transform_11, window_bounds = array<i64: 7, 8, 128>}]} {
    %c0 = arith.constant 0 : index
    %c0_0 = arith.constant 0 : index
    %0 = vector.load %arg4[%c0, %c0_0] : memref<8x128xf32, #tpu.memory_space<vmem>>, vector<8x128xf32>
    %c0_1 = arith.constant 0 : index
    %c0_2 = arith.constant 0 : index
    %1 = vector.load %arg13[%c0_1, %c0_2] : memref<8x128xf32, #tpu.memory_space<vmem>>, vector<8x128xf32>
    tpu.vector_store %arg13[%c0_1, %c0_2], %0 {strides = array<i32>} : memref<8x128xf32, #tpu.memory_space<vmem>>, vector<8x128xf32>,
    %c0_3 = arith.constant 0 : index
    %c0_4 = arith.constant 0 : index
    %2 = vector.load %arg5[%c0_3, %c0_4] : memref<8x128xf32, #tpu.memory_space<vmem>>, vector<8x128xf32>
    %c0_5 = arith.constant 0 : index
    %c0_6 = arith.constant 0 : index
    %3 = vector.load %arg14[%c0_5, %c0_6] : memref<8x128xf32, #tpu.memory_space<vmem>>, vector<8x128xf32>
    tpu.vector_store %arg14[%c0_5, %c0_6], %2 {strides = array<i32>} : memref<8x128xf32, #tpu.memory_space<vmem>>, vector<8x128xf32>,
    %c0_i32 = arith.constant 0 : i32
    %c7_i32 = arith.constant 7 : i32
    %4 = arith.addi %c0_i32, %c7_i32 : i32
    %c1_i32 = arith.constant 1 : i32
    scf.for %arg15 = %c0_i32 to %4 step %c1_i32  : i32 {
      %c1_i32_8 = arith.constant 1 : i32
      %5 = arith.muli %arg15, %c1_i32_8 : i32
      %c0_i32_9 = arith.constant 0 : i32
      %6 = arith.addi %c0_i32_9, %5 : i32
      %c0_10 = arith.constant 0 : index
      %c0_11 = arith.constant 0 : index
      %7 = vector.load %arg13[%c0_10, %c0_11] : memref<8x128xf32, #tpu.memory_space<vmem>>, vector<8x128xf32>
      %c0_12 = arith.constant 0 : index
      %c0_13 = arith.constant 0 : index
      %8 = vector.load %arg14[%c0_12, %c0_13] : memref<8x128xf32, #tpu.memory_space<vmem>>, vector<8x128xf32>
      %c0_14 = arith.constant 0 : index
      %c0_15 = arith.constant 0 : index
      %9 = vector.load %arg6[%c0_14, %c0_15] : memref<128x768xf32, #tpu.memory_space<vmem>>, vector<128x768xf32>
      %cst = arith.constant dense<0.000000e+00> : vector<8x768xf32>
      %10 = tpu.matmul %7, %9, %cst {dimension_numbers = #tpu.dot_dimension_numbers<[1], [0], [0], [1], [0, 0, 1, 1], [], []>} : vector<8x128xf32>, vector<128x768xf32>, vector<8x768xf32> -> vector<8x768xf32>
      %c0_16 = arith.constant 0 : index
      %c0_17 = arith.constant 0 : index
      %11 = vector.load %arg7[%c0_16, %c0_17] : memref<1x768xf32, #tpu.memory_space<vmem>>, vector<1x768xf32>
      %12 = vector.broadcast %11 : vector<1x768xf32> to vector<8x768xf32>
      %13 = arith.addf %10, %12 : vector<8x768xf32>
      %14 = vector.extract_strided_slice %13 {offsets = [0, 0], sizes = [8, 128], strides = [1, 1]} : vector<8x768xf32> to vector<8x128xf32>
      %15 = vector.extract_strided_slice %13 {offsets = [0, 128], sizes = [8, 128], strides = [1, 1]} : vector<8x768xf32> to vector<8x128xf32>
      %16 = arith.negf %15 : vector<8x128xf32>
      %17 = math.exp %16 : vector<8x128xf32>
      %cst_18 = arith.constant 1.000000e+00 : f32
      %18 = vector.broadcast %cst_18 : f32 to vector<8x128xf32>
      %19 = arith.addf %18, %17 : vector<8x128xf32>
      %20 = arith.divf %18, %19 : vector<8x128xf32>
      %21 = vector.extract_strided_slice %13 {offsets = [0, 256], sizes = [8, 512], strides = [1, 1]} : vector<8x768xf32> to vector<8x512xf32>
      %c0_19 = arith.constant 0 : index
      %c0_20 = arith.constant 0 : index
      %c0_21 = arith.constant 0 : index
      %22 = vector.load %arg2[%c0_19, %c0_20, %c0_21] : memref<8x128x128xf32, #tpu.memory_space<vmem>>, vector<8x128x128xf32>
      %23 = vector.shape_cast %14 : vector<8x128xf32> to vector<8x1x128xf32>
      %24 = vector.broadcast %23 : vector<8x1x128xf32> to vector<8x128x128xf32>
      %25 = arith.addf %22, %24 : vector<8x128x128xf32>
      %cst_22 = arith.constant 0.000000e+00 : f32
      %26 = vector.broadcast %cst_22 : f32 to vector<8x128x128xf32>
      %27 = arith.maximumf %25, %26 : vector<8x128x128xf32>
      %c0_23 = arith.constant 0 : index
      %c0_24 = arith.constant 0 : index
      %28 = vector.load %arg9[%c0_23, %c0_24] : memref<1x128xf32, #tpu.memory_space<vmem>>, vector<1x128xf32>
      %29 = vector.shape_cast %28 : vector<1x128xf32> to vector<1x1x128xf32>
      %30 = vector.broadcast %29 : vector<1x1x128xf32> to vector<8x128x128xf32>
      %31 = arith.mulf %27, %30 : vector<8x128x128xf32>
      %cst_25 = arith.constant dense<0.000000e+00> : vector<8x128xf32>
      %32 = vector.multi_reduction <add>, %31, %cst_25 [2] : vector<8x128x128xf32> to vector<8x128xf32>
      %c0_26 = arith.constant 0 : index
      %c0_27 = arith.constant 0 : index
      %33 = vector.load %arg3[%c0_26, %c0_27] : memref<1x128xf32, #tpu.memory_space<vmem>>, vector<1x128xf32>
      %34 = vector.broadcast %33 : vector<1x128xf32> to vector<8x128xf32>
      %35 = arith.addf %32, %34 : vector<8x128xf32>
      %cst_28 = arith.constant dense<0xFF800000> : vector<8xf32>
      %36 = vector.multi_reduction <maximumf>, %35, %cst_28 [1] : vector<8x128xf32> to vector<8xf32>
      %37 = vector.shape_cast %36 : vector<8xf32> to vector<8x1xf32>
      %38 = vector.broadcast %37 : vector<8x1xf32> to vector<8x128xf32>
      %39 = arith.subf %35, %38 : vector<8x128xf32>
      %40 = math.exp %39 : vector<8x128xf32>
      %cst_29 = arith.constant dense<0.000000e+00> : vector<8xf32>
      %41 = vector.multi_reduction <add>, %40, %cst_29 [1] : vector<8x128xf32> to vector<8xf32>
      %42 = vector.shape_cast %41 : vector<8xf32> to vector<8x1xf32>
      %43 = tpu.reciprocal %42 {approx = true} : vector<8x1xf32> -> vector<8x1xf32>
      %44 = vector.broadcast %43 : vector<8x1xf32> to vector<8x128xf32>
      %45 = arith.mulf %40, %44 : vector<8x128xf32>
      %c0_30 = arith.constant 0 : index
      %c0_31 = arith.constant 0 : index
      %c0_32 = arith.constant 0 : index
      %46 = vector.load %arg1[%c0_30, %c0_31, %c0_32] : memref<8x128x128xf32, #tpu.memory_space<vmem>>, vector<8x128x128xf32>
      %47 = vector.shape_cast %45 : vector<8x128xf32> to vector<8x128x1xf32>
      %48 = vector.broadcast %47 : vector<8x128x1xf32> to vector<8x128x128xf32>
      %49 = arith.mulf %46, %48 : vector<8x128x128xf32>
      %cst_33 = arith.constant dense<0.000000e+00> : vector<8x128xf32>
      %50 = vector.multi_reduction <add>, %49, %cst_33 [1] : vector<8x128x128xf32> to vector<8x128xf32>
      %51 = arith.mulf %20, %50 : vector<8x128xf32>
      %52 = arith.index_cast %6 : i32 to index
      %c0_34 = arith.constant 0 : index
      %c0_35 = arith.constant 0 : index
      %53 = vector.load %arg10[%52, %c0_34, %c0_35] : memref<7x8x512xf32, #tpu.memory_space<vmem>>, vector<1x8x512xf32>
      %54 = vector.shape_cast %53 : vector<1x8x512xf32> to vector<8x512xf32>
      %c0_36 = arith.constant 0 : index
      %c0_37 = arith.constant 0 : index
      %55 = vector.load %arg8[%c0_36, %c0_37] : memref<128x512xf32, #tpu.memory_space<vmem>>, vector<128x512xf32>
      %cst_38 = arith.constant dense<0.000000e+00> : vector<8x512xf32>
      %56 = tpu.matmul %51, %55, %cst_38 {dimension_numbers = #tpu.dot_dimension_numbers<[1], [0], [0], [1], [0, 0, 1, 1], [], []>} : vector<8x128xf32>, vector<128x512xf32>, vector<8x512xf32> -> vector<8x512xf32>
      %57 = arith.addf %54, %56 : vector<8x512xf32>
      %58 = arith.addf %57, %21 : vector<8x512xf32>
      %59 = vector.extract_strided_slice %58 {offsets = [0, 0], sizes = [8, 128], strides = [1, 1]} : vector<8x512xf32> to vector<8x128xf32>
      %60 = arith.negf %59 : vector<8x128xf32>
      %61 = math.exp %60 : vector<8x128xf32>
      %cst_39 = arith.constant 1.000000e+00 : f32
      %62 = vector.broadcast %cst_39 : f32 to vector<8x128xf32>
      %63 = arith.addf %62, %61 : vector<8x128xf32>
      %64 = arith.divf %62, %63 : vector<8x128xf32>
      %65 = vector.extract_strided_slice %58 {offsets = [0, 128], sizes = [8, 128], strides = [1, 1]} : vector<8x512xf32> to vector<8x128xf32>
      %66 = arith.negf %65 : vector<8x128xf32>
      %67 = math.exp %66 : vector<8x128xf32>
      %cst_40 = arith.constant 1.000000e+00 : f32
      %68 = vector.broadcast %cst_40 : f32 to vector<8x128xf32>
      %69 = arith.addf %68, %67 : vector<8x128xf32>
      %70 = arith.divf %68, %69 : vector<8x128xf32>
      %71 = vector.extract_strided_slice %58 {offsets = [0, 256], sizes = [8, 128], strides = [1, 1]} : vector<8x512xf32> to vector<8x128xf32>
      %72 = math.tanh %71 : vector<8x128xf32>
      %73 = vector.extract_strided_slice %58 {offsets = [0, 384], sizes = [8, 128], strides = [1, 1]} : vector<8x512xf32> to vector<8x128xf32>
      %74 = arith.negf %73 : vector<8x128xf32>
      %75 = math.exp %74 : vector<8x128xf32>
      %cst_41 = arith.constant 1.000000e+00 : f32
      %76 = vector.broadcast %cst_41 : f32 to vector<8x128xf32>
      %77 = arith.addf %76, %75 : vector<8x128xf32>
      %78 = arith.divf %76, %77 : vector<8x128xf32>
      %79 = arith.mulf %70, %8 : vector<8x128xf32>
      %80 = arith.mulf %64, %72 : vector<8x128xf32>
      %81 = arith.addf %79, %80 : vector<8x128xf32>
      %82 = math.tanh %81 : vector<8x128xf32>
      %83 = arith.mulf %78, %82 : vector<8x128xf32>
      %84 = arith.index_cast %6 : i32 to index
      %c0_42 = arith.constant 0 : index
      %c0_43 = arith.constant 0 : index
      %85 = vector.load %arg11[%84, %c0_42, %c0_43] : memref<7x8x128xf32, #tpu.memory_space<vmem>>, vector<1x8x128xf32>
      %86 = vector.shape_cast %85 : vector<1x8x128xf32> to vector<8x128xf32>
      %87 = vector.shape_cast %83 : vector<8x128xf32> to vector<1x8x128xf32>
      tpu.vector_store %arg11[%84, %c0_42, %c0_43], %87 {strides = array<i32>} : memref<7x8x128xf32, #tpu.memory_space<vmem>>, vector<1x8x128xf32>,
      %88 = arith.index_cast %6 : i32 to index
      %c0_44 = arith.constant 0 : index
      %c0_45 = arith.constant 0 : index
      %89 = vector.load %arg12[%88, %c0_44, %c0_45] : memref<7x8x128xf32, #tpu.memory_space<vmem>>, vector<1x8x128xf32>
      %90 = vector.shape_cast %89 : vector<1x8x128xf32> to vector<8x128xf32>
      %91 = vector.shape_cast %45 : vector<8x128xf32> to vector<1x8x128xf32>
      tpu.vector_store %arg12[%88, %c0_44, %c0_45], %91 {strides = array<i32>} : memref<7x8x128xf32, #tpu.memory_space<vmem>>, vector<1x8x128xf32>,
      %c0_46 = arith.constant 0 : index
      %c0_47 = arith.constant 0 : index
      %92 = vector.load %arg13[%c0_46, %c0_47] : memref<8x128xf32, #tpu.memory_space<vmem>>, vector<8x128xf32>
      tpu.vector_store %arg13[%c0_46, %c0_47], %83 {strides = array<i32>} : memref<8x128xf32, #tpu.memory_space<vmem>>, vector<8x128xf32>,
      %c0_48 = arith.constant 0 : index
      %c0_49 = arith.constant 0 : index
      %93 = vector.load %arg14[%c0_48, %c0_49] : memref<8x128xf32, #tpu.memory_space<vmem>>, vector<8x128xf32>
      tpu.vector_store %arg14[%c0_48, %c0_49], %81 {strides = array<i32>} : memref<8x128xf32, #tpu.memory_space<vmem>>, vector<8x128xf32>,
    }
    %c7_i32_7 = arith.constant 7 : i32
    return
  }
  func.func @transform_0(%arg0: i32) -> (i32, i32, i32) {
    %c0_i32 = arith.constant 0 : i32
    %c0_i32_0 = arith.constant 0 : i32
    %c0_i32_1 = arith.constant 0 : i32
    return %arg0, %c0_i32, %c0_i32_0 : i32, i32, i32
  }
  func.func @transform_1(%arg0: i32) -> (i32, i32, i32) {
    %c0_i32 = arith.constant 0 : i32
    %c0_i32_0 = arith.constant 0 : i32
    %c0_i32_1 = arith.constant 0 : i32
    return %arg0, %c0_i32, %c0_i32_0 : i32, i32, i32
  }
  func.func @transform_2(%arg0: i32) -> (i32, i32) {
    %c0_i32 = arith.constant 0 : i32
    %c0_i32_0 = arith.constant 0 : i32
    %c0_i32_1 = arith.constant 0 : i32
    return %c0_i32, %c0_i32_0 : i32, i32
  }
  func.func @transform_3(%arg0: i32) -> (i32, i32) {
    %c0_i32 = arith.constant 0 : i32
    %c0_i32_0 = arith.constant 0 : i32
    return %arg0, %c0_i32 : i32, i32
  }
  func.func @transform_4(%arg0: i32) -> (i32, i32) {
    %c0_i32 = arith.constant 0 : i32
    %c0_i32_0 = arith.constant 0 : i32
    return %arg0, %c0_i32 : i32, i32
  }
  func.func @transform_5(%arg0: i32) -> (i32, i32) {
    %c0_i32 = arith.constant 0 : i32
    %c0_i32_0 = arith.constant 0 : i32
    %c0_i32_1 = arith.constant 0 : i32
    return %c0_i32, %c0_i32_0 : i32, i32
  }
  func.func @transform_6(%arg0: i32) -> (i32, i32) {
    %c0_i32 = arith.constant 0 : i32
    %c0_i32_0 = arith.constant 0 : i32
    %c0_i32_1 = arith.constant 0 : i32
    return %c0_i32, %c0_i32_0 : i32, i32
  }
  func.func @transform_7(%arg0: i32) -> (i32, i32) {
    %c0_i32 = arith.constant 0 : i32
    %c0_i32_0 = arith.constant 0 : i32
    %c0_i32_1 = arith.constant 0 : i32
    return %c0_i32, %c0_i32_0 : i32, i32
  }
  func.func @transform_8(%arg0: i32) -> (i32, i32) {
    %c0_i32 = arith.constant 0 : i32
    %c0_i32_0 = arith.constant 0 : i32
    %c0_i32_1 = arith.constant 0 : i32
    return %c0_i32, %c0_i32_0 : i32, i32
  }
  func.func @transform_9(%arg0: i32) -> (i32, i32, i32) {
    %c0_i32 = arith.constant 0 : i32
    %c0_i32_0 = arith.constant 0 : i32
    %c0_i32_1 = arith.constant 0 : i32
    return %c0_i32, %arg0, %c0_i32_0 : i32, i32, i32
  }
  func.func @transform_10(%arg0: i32) -> (i32, i32, i32) {
    %c0_i32 = arith.constant 0 : i32
    %c0_i32_0 = arith.constant 0 : i32
    %c0_i32_1 = arith.constant 0 : i32
    return %c0_i32, %arg0, %c0_i32_0 : i32, i32, i32
  }
  func.func @transform_11(%arg0: i32) -> (i32, i32, i32) {
    %c0_i32 = arith.constant 0 : i32
    %c0_i32_0 = arith.constant 0 : i32
    %c0_i32_1 = arith.constant 0 : i32
    return %c0_i32, %arg0, %c0_i32_0 : i32, i32, i32
  }
}

</mosaic_0001>

<llo_original>
// kernel: neg.1
$region0: #{neg.1}
  #allocation0 [shape = 's32[1]{0}', space=sflag, size = 0x4, scoped, tag = 'scoped memory for neg.1']
  %s0 = inlined_call_operand.vmem [shape: s32[4], index: 0, kind: input, shape index: {}]
  %s1 = inlined_call_operand.vmem [shape: s32[4], index: 1, kind: output, shape index: {}]
  %v2 = vld [vmem:[%s0] sm:$0x1]
  %3 = xla_tuple %v2
  %4 = xla_tuple %3
  %v5 = vsub.s32 0, %v2
  %6 = xla_tuple %v5
  %7 = vst [vmem:[%s1] sm:$0x1] %v5

// kernel: decoder_forward.1
$region0: #{decoder_forward.1}
  #allocation0 [shape = 'u32[]', space=smem, size = 0x4, offset = 0x4, fixed_abs, tag = 'smem constant byte address 0x4 - core index']
  #allocation1 [shape = 'u32[72,128]{1,0:T(1,128)}', space=vmem, size = 0x9000, scoped, tag = 'internal scratch']
  #allocation2 [shape = 'f32[8,128]{1,0:T(8,128)}', space=vmem, size = 0x1000, scoped, tag = 'scratch operand']
  #allocation3 [shape = 'f32[8,128]{1,0:T(8,128)}', space=vmem, size = 0x1000, scoped, tag = 'scratch operand']
  %s0 = inlined_call_operand.vmem [shape: f32[8,128,128], index: 0, kind: input, shape index: {}]
  %s1 = inlined_call_operand.vmem [shape: f32[8,128,128], index: 1, kind: input, shape index: {}]
  %s2 = inlined_call_operand.vmem [shape: f32[1,128], index: 2, kind: input, shape index: {}]
  %s3 = inlined_call_operand.vmem [shape: f32[8,128], index: 3, kind: input, shape index: {}]
  %s4 = inlined_call_operand.vmem [shape: f32[8,128], index: 4, kind: input, shape index: {}]
  %s5 = inlined_call_operand.vmem [shape: f32[128,768], index: 5, kind: input, shape index: {}]
  %s6 = inlined_call_operand.vmem [shape: f32[1,768], index: 6, kind: input, shape index: {}]
  %s7 = inlined_call_operand.vmem [shape: f32[128,512], index: 7, kind: input, shape index: {}]
  %s8 = inlined_call_operand.vmem [shape: f32[1,128], index: 8, kind: input, shape index: {}]
  %s9 = inlined_call_operand.vmem [shape: f32[7,8,512], index: 9, kind: input, shape index: {}]
  %s10 = inlined_call_operand.vmem [shape: f32[7,8,128], index: 10, kind: output, shape index: {0}]
  %s11 = inlined_call_operand.vmem [shape: f32[7,8,128], index: 11, kind: output, shape index: {1}]
  %12 = xla_tuple %s10, %s11
  %s13 = sld [smem:[#allocation0]]
  $region65: #{decoder_forward.1} parent=0
    _
  %s15 = ssub.s32 1, %s13
  %s16 = scalar_select 0, %s15, %s13
  // Predicated region
  $region2: #{decoder_forward.1} parent=0 // pred_check
    _
  $region3: #{decoder_forward.1} parent=0 // pred_check_branch
    %18 = sbr.rel (0) target = $region5
  $region4: #{decoder_forward.1} parent=0 // pred_region
    _
  $region5: #{decoder_forward.1} parent=0 // pred_fallthru
    _
  // Predicated region
  $region6: #{decoder_forward.1} parent=0 // pred_check
    _
  $region7: #{decoder_forward.1} parent=0 // pred_check_branch
    %20 = sbr.rel (0) target = $region9
  $region8: #{decoder_forward.1} parent=0 // pred_region
    _
  $region9: #{decoder_forward.1} parent=0 // pred_fallthru
    _
  // Predicated region
  $region10: #{decoder_forward.1} parent=0 // pred_check
    _
  $region11: #{decoder_forward.1} parent=0 // pred_check_branch
    %22 = sbr.rel (0) target = $region13
  $region12: #{decoder_forward.1} parent=0 // pred_region
    _
  $region13: #{decoder_forward.1} parent=0 // pred_fallthru
    _
  // Predicated region
  $region14: #{decoder_forward.1} parent=0 // pred_check
    _
  $region15: #{decoder_forward.1} parent=0 // pred_check_branch
    %24 = sbr.rel (0) target = $region17
  $region16: #{decoder_forward.1} parent=0 // pred_region
    _
  $region17: #{decoder_forward.1} parent=0 // pred_fallthru
    _
  // Predicated region
  $region18: #{decoder_forward.1} parent=0 // pred_check
    _
  $region19: #{decoder_forward.1} parent=0 // pred_check_branch
    %26 = sbr.rel (0) target = $region21
  $region20: #{decoder_forward.1} parent=0 // pred_region
    _
  $region21: #{decoder_forward.1} parent=0 // pred_fallthru
    _
  // Predicated region
  $region22: #{decoder_forward.1} parent=0 // pred_check
    _
  $region23: #{decoder_forward.1} parent=0 // pred_check_branch
    %28 = sbr.rel (0) target = $region25
  $region24: #{decoder_forward.1} parent=0 // pred_region
    _
  $region25: #{decoder_forward.1} parent=0 // pred_fallthru
    _
  // Predicated region
  $region26: #{decoder_forward.1} parent=0 // pred_check
    _
  $region27: #{decoder_forward.1} parent=0 // pred_check_branch
    %30 = sbr.rel (0) target = $region29
  $region28: #{decoder_forward.1} parent=0 // pred_region
    _
  $region29: #{decoder_forward.1} parent=0 // pred_fallthru
    _
  // Predicated region
  $region30: #{decoder_forward.1} parent=0 // pred_check
    _
  $region31: #{decoder_forward.1} parent=0 // pred_check_branch
    %32 = sbr.rel (0) target = $region33
  $region32: #{decoder_forward.1} parent=0 // pred_region
    _
  $region33: #{decoder_forward.1} parent=0 // pred_fallthru
    _
  // Predicated region
  $region34: #{decoder_forward.1} parent=0 // pred_check
    _
  $region35: #{decoder_forward.1} parent=0 // pred_check_branch
    %34 = sbr.rel (0) target = $region37
  $region36: #{decoder_forward.1} parent=0 // pred_region
    _
  $region37: #{decoder_forward.1} parent=0 // pred_fallthru
    _
  // Predicated region
  $region38: #{decoder_forward.1} parent=0 // pred_check
    _
  $region39: #{decoder_forward.1} parent=0 // pred_check_branch
    %36 = sbr.rel (0) target = $region41
  $region40: #{decoder_forward.1} parent=0 // pred_region
    _
  $region41: #{decoder_forward.1} parent=0 // pred_fallthru
    _
  %v37 = vld [vmem:[%s3] sm:$0xff]
  %38 = vst [vmem:[#allocation2] sm:$0xff] %v37
  %v39 = vld [vmem:[%s4] sm:$0xff]
  %40 = vst [vmem:[#allocation3] sm:$0xff] %v39
  loop: start=0, step=1, limit=7
  $region42: #{decoder_forward.1} parent=0 // loop_pre_header
    _
  $region43: #{decoder_forward.1} parent=0 // loop_header
    %s42 = sphi 0, %s46
    %p43 = scmp.ge.s32.totalorder %s42, 7
  $region44: #{decoder_forward.1} parent=0 // loop_header_branch
    %45 = sbr.rel (%p43) target = $region48
  $region45: #{decoder_forward.1} parent=0 // loop_body
    %v47 = vld [vmem:[#allocation2] sm:$0xff]
    %v48 = vld [vmem:[#allocation3] sm:$0xff]
    %v49 = vld [vmem:[%s5] sm:$0xff]
    %v50 = vld [vmem:[%s5 + $0x8] sm:$0xff]
    %v51 = vld [vmem:[%s5 + $0x10] sm:$0xff]
    %v52 = vld [vmem:[%s5 + $0x18] sm:$0xff]
    %v53 = vld [vmem:[%s5 + $0x20] sm:$0xff]
    %v54 = vld [vmem:[%s5 + $0x28] sm:$0xff]
    %v55 = vld [vmem:[%s5 + $0x30] sm:$0xff]
    %v56 = vld [vmem:[%s5 + $0x38] sm:$0xff]
    %v57 = vld [vmem:[%s5 + $0x40] sm:$0xff]
    %v58 = vld [vmem:[%s5 + $0x48] sm:$0xff]
    %v59 = vld [vmem:[%s5 + $0x50] sm:$0xff]
    %v60 = vld [vmem:[%s5 + $0x58] sm:$0xff]
    %v61 = vld [vmem:[%s5 + $0x60] sm:$0xff]
    %v62 = vld [vmem:[%s5 + $0x68] sm:$0xff]
    %v63 = vld [vmem:[%s5 + $0x70] sm:$0xff]
    %v64 = vld [vmem:[%s5 + $0x78] sm:$0xff]
    %v65 = vld [vmem:[%s5 + $0x80] sm:$0xff]
    %v66 = vld [vmem:[%s5 + $0x88] sm:$0xff]
    %v67 = vld [vmem:[%s5 + $0x90] sm:$0xff]
    %v68 = vld [vmem:[%s5 + $0x98] sm:$0xff]
    %v69 = vld [vmem:[%s5 + $0xa0] sm:$0xff]
    %v70 = vld [vmem:[%s5 + $0xa8] sm:$0xff]
    %v71 = vld [vmem:[%s5 + $0xb0] sm:$0xff]
    %v72 = vld [vmem:[%s5 + $0xb8] sm:$0xff]
    %v73 = vld [vmem:[%s5 + $0xc0] sm:$0xff]
    %v74 = vld [vmem:[%s5 + $0xc8] sm:$0xff]
    %v75 = vld [vmem:[%s5 + $0xd0] sm:$0xff]
    %v76 = vld [vmem:[%s5 + $0xd8] sm:$0xff]
    %v77 = vld [vmem:[%s5 + $0xe0] sm:$0xff]
    %v78 = vld [vmem:[%s5 + $0xe8] sm:$0xff]
    %v79 = vld [vmem:[%s5 + $0xf0] sm:$0xff]
    %v80 = vld [vmem:[%s5 + $0xf8] sm:$0xff]
    %v81 = vld [vmem:[%s5 + $0x100] sm:$0xff]
    %v82 = vld [vmem:[%s5 + $0x108] sm:$0xff]
    %v83 = vld [vmem:[%s5 + $0x110] sm:$0xff]
    %v84 = vld [vmem:[%s5 + $0x118] sm:$0xff]
    %v85 = vld [vmem:[%s5 + $0x120] sm:$0xff]
    %v86 = vld [vmem:[%s5 + $0x128] sm:$0xff]
    %v87 = vld [vmem:[%s5 + $0x130] sm:$0xff]
    %v88 = vld [vmem:[%s5 + $0x138] sm:$0xff]
    %v89 = vld [vmem:[%s5 + $0x140] sm:$0xff]
    %v90 = vld [vmem:[%s5 + $0x148] sm:$0xff]
    %v91 = vld [vmem:[%s5 + $0x150] sm:$0xff]
    %v92 = vld [vmem:[%s5 + $0x158] sm:$0xff]
    %v93 = vld [vmem:[%s5 + $0x160] sm:$0xff]
    %v94 = vld [vmem:[%s5 + $0x168] sm:$0xff]
    %v95 = vld [vmem:[%s5 + $0x170] sm:$0xff]
    %v96 = vld [vmem:[%s5 + $0x178] sm:$0xff]
    %v97 = vld [vmem:[%s5 + $0x180] sm:$0xff]
    %v98 = vld [vmem:[%s5 + $0x188] sm:$0xff]
    %v99 = vld [vmem:[%s5 + $0x190] sm:$0xff]
    %v100 = vld [vmem:[%s5 + $0x198] sm:$0xff]
    %v101 = vld [vmem:[%s5 + $0x1a0] sm:$0xff]
    %v102 = vld [vmem:[%s5 + $0x1a8] sm:$0xff]
    %v103 = vld [vmem:[%s5 + $0x1b0] sm:$0xff]
    %v104 = vld [vmem:[%s5 + $0x1b8] sm:$0xff]
    %v105 = vld [vmem:[%s5 + $0x1c0] sm:$0xff]
    %v106 = vld [vmem:[%s5 + $0x1c8] sm:$0xff]
    %v107 = vld [vmem:[%s5 + $0x1d0] sm:$0xff]
    %v108 = vld [vmem:[%s5 + $0x1d8] sm:$0xff]
    %v109 = vld [vmem:[%s5 + $0x1e0] sm:$0xff]
    %v110 = vld [vmem:[%s5 + $0x1e8] sm:$0xff]
    %v111 = vld [vmem:[%s5 + $0x1f0] sm:$0xff]
    %v112 = vld [vmem:[%s5 + $0x1f8] sm:$0xff]
    %v113 = vld [vmem:[%s5 + $0x200] sm:$0xff]
    %v114 = vld [vmem:[%s5 + $0x208] sm:$0xff]
    %v115 = vld [vmem:[%s5 + $0x210] sm:$0xff]
    %v116 = vld [vmem:[%s5 + $0x218] sm:$0xff]
    %v117 = vld [vmem:[%s5 + $0x220] sm:$0xff]
    %v118 = vld [vmem:[%s5 + $0x228] sm:$0xff]
    %v119 = vld [vmem:[%s5 + $0x230] sm:$0xff]
    %v120 = vld [vmem:[%s5 + $0x238] sm:$0xff]
    %v121 = vld [vmem:[%s5 + $0x240] sm:$0xff]
    %v122 = vld [vmem:[%s5 + $0x248] sm:$0xff]
    %v123 = vld [vmem:[%s5 + $0x250] sm:$0xff]
    %v124 = vld [vmem:[%s5 + $0x258] sm:$0xff]
    %v125 = vld [vmem:[%s5 + $0x260] sm:$0xff]
    %v126 = vld [vmem:[%s5 + $0x268] sm:$0xff]
    %v127 = vld [vmem:[%s5 + $0x270] sm:$0xff]
    %v128 = vld [vmem:[%s5 + $0x278] sm:$0xff]
    %v129 = vld [vmem:[%s5 + $0x280] sm:$0xff]
    %v130 = vld [vmem:[%s5 + $0x288] sm:$0xff]
    %v131 = vld [vmem:[%s5 + $0x290] sm:$0xff]
    %v132 = vld [vmem:[%s5 + $0x298] sm:$0xff]
    %v133 = vld [vmem:[%s5 + $0x2a0] sm:$0xff]
    %v134 = vld [vmem:[%s5 + $0x2a8] sm:$0xff]
    %v135 = vld [vmem:[%s5 + $0x2b0] sm:$0xff]
    %v136 = vld [vmem:[%s5 + $0x2b8] sm:$0xff]
    %v137 = vld [vmem:[%s5 + $0x2c0] sm:$0xff]
    %v138 = vld [vmem:[%s5 + $0x2c8] sm:$0xff]
    %v139 = vld [vmem:[%s5 + $0x2d0] sm:$0xff]
    %v140 = vld [vmem:[%s5 + $0x2d8] sm:$0xff]
    %v141 = vld [vmem:[%s5 + $0x2e0] sm:$0xff]
    %v142 = vld [vmem:[%s5 + $0x2e8] sm:$0xff]
    %v143 = vld [vmem:[%s5 + $0x2f0] sm:$0xff]
    %v144 = vld [vmem:[%s5 + $0x2f8] sm:$0xff]
    %v145 = vld [vmem:[%s6] sm:$0x3f]
    %v147 = vperm.slane %v145, 0
    %v148 = vperm.slane %v145, 1
    %v149 = vperm.slane %v145, 2
    %v150 = vperm.slane %v145, 3
    %v151 = vperm.slane %v145, 4
    %v152 = vperm.slane %v145, 5
    %159 = vmatpush.msra.mxu0 %v139
    %160 = vmatpush.msra.mxu0 %v133
    %161 = vmatpush.msra.mxu0 %v127
    %162 = vmatpush.msra.mxu0 %v121
    %163 = vmatpush.msra.mxu0 %v115
    %164 = vmatpush.msra.mxu0 %v109
    %165 = vmatpush.msra.mxu0 %v103
    %166 = vmatpush.msra.mxu0 %v97
    %167 = vmatpush.msra.mxu0 %v91
    %168 = vmatpush.msra.mxu0 %v85
    %169 = vmatpush.msra.mxu0 %v79
    %170 = vmatpush.msra.mxu0 %v73
    %171 = vmatpush.msra.mxu0 %v67
    %172 = vmatpush.msra.mxu0 %v61
    %173 = vmatpush.msra.mxu0 %v55
    %174 = vmatpush.msra.mxu0 %v49
    %175 = vmatmul.f32.gmra.mxu0 %v47
    %v176 = vpop.f32.mrf.mxu0
    %v177 = vadd.f32 %v147, %v176
    %178 = vdwg.mxu0
    %179 = vmatpush.msra.mxu0 %v140
    %180 = vmatpush.msra.mxu0 %v134
    %181 = vmatpush.msra.mxu0 %v128
    %182 = vmatpush.msra.mxu0 %v122
    %183 = vmatpush.msra.mxu0 %v116
    %184 = vmatpush.msra.mxu0 %v110
    %185 = vmatpush.msra.mxu0 %v104
    %186 = vmatpush.msra.mxu0 %v98
    %187 = vmatpush.msra.mxu0 %v92
    %188 = vmatpush.msra.mxu0 %v86
    %189 = vmatpush.msra.mxu0 %v80
    %190 = vmatpush.msra.mxu0 %v74
    %191 = vmatpush.msra.mxu0 %v68
    %192 = vmatpush.msra.mxu0 %v62
    %193 = vmatpush.msra.mxu0 %v56
    %194 = vmatpush.msra.mxu0 %v50
    %195 = vmatmul.f32.gmra.mxu0 %v47
    %v196 = vpop.f32.mrf.mxu0
    %v197 = vadd.f32 %v148, %v196
    %198 = vdwg.mxu0
    %199 = vmatpush.msra.mxu0 %v141
    %200 = vmatpush.msra.mxu0 %v135
    %201 = vmatpush.msra.mxu0 %v129
    %202 = vmatpush.msra.mxu0 %v123
    %203 = vmatpush.msra.mxu0 %v117
    %204 = vmatpush.msra.mxu0 %v111
    %205 = vmatpush.msra.mxu0 %v105
    %206 = vmatpush.msra.mxu0 %v99
    %207 = vmatpush.msra.mxu0 %v93
    %208 = vmatpush.msra.mxu0 %v87
    %209 = vmatpush.msra.mxu0 %v81
    %210 = vmatpush.msra.mxu0 %v75
    %211 = vmatpush.msra.mxu0 %v69
    %212 = vmatpush.msra.mxu0 %v63
    %213 = vmatpush.msra.mxu0 %v57
    %214 = vmatpush.msra.mxu0 %v51
    %215 = vmatmul.f32.gmra.mxu0 %v47
    %v216 = vpop.f32.mrf.mxu0
    %v217 = vadd.f32 %v149, %v216
    %218 = vdwg.mxu0
    %219 = vmatpush.msra.mxu0 %v142
    %220 = vmatpush.msra.mxu0 %v136
    %221 = vmatpush.msra.mxu0 %v130
    %222 = vmatpush.msra.mxu0 %v124
    %223 = vmatpush.msra.mxu0 %v118
    %224 = vmatpush.msra.mxu0 %v112
    %225 = vmatpush.msra.mxu0 %v106
    %226 = vmatpush.msra.mxu0 %v100
    %227 = vmatpush.msra.mxu0 %v94
    %228 = vmatpush.msra.mxu0 %v88
    %229 = vmatpush.msra.mxu0 %v82
    %230 = vmatpush.msra.mxu0 %v76
    %231 = vmatpush.msra.mxu0 %v70
    %232 = vmatpush.msra.mxu0 %v64
    %233 = vmatpush.msra.mxu0 %v58
    %234 = vmatpush.msra.mxu0 %v52
    %235 = vmatmul.f32.gmra.mxu0 %v47
    %v236 = vpop.f32.mrf.mxu0
    %v237 = vadd.f32 %v150, %v236
    %238 = vdwg.mxu0
    %239 = vmatpush.msra.mxu0 %v143
    %240 = vmatpush.msra.mxu0 %v137
    %241 = vmatpush.msra.mxu0 %v131
    %242 = vmatpush.msra.mxu0 %v125
    %243 = vmatpush.msra.mxu0 %v119
    %244 = vmatpush.msra.mxu0 %v113
    %245 = vmatpush.msra.mxu0 %v107
    %246 = vmatpush.msra.mxu0 %v101
    %247 = vmatpush.msra.mxu0 %v95
    %248 = vmatpush.msra.mxu0 %v89
    %249 = vmatpush.msra.mxu0 %v83
    %250 = vmatpush.msra.mxu0 %v77
    %251 = vmatpush.msra.mxu0 %v71
    %252 = vmatpush.msra.mxu0 %v65
    %253 = vmatpush.msra.mxu0 %v59
    %254 = vmatpush.msra.mxu0 %v53
    %255 = vmatmul.f32.gmra.mxu0 %v47
    %v256 = vpop.f32.mrf.mxu0
    %v257 = vadd.f32 %v151, %v256
    %258 = vdwg.mxu0
    %259 = vmatpush.msra.mxu0 %v144
    %260 = vmatpush.msra.mxu0 %v138
    %261 = vmatpush.msra.mxu0 %v132
    %262 = vmatpush.msra.mxu0 %v126
    %263 = vmatpush.msra.mxu0 %v120
    %264 = vmatpush.msra.mxu0 %v114
    %265 = vmatpush.msra.mxu0 %v108
    %266 = vmatpush.msra.mxu0 %v102
    %267 = vmatpush.msra.mxu0 %v96
    %268 = vmatpush.msra.mxu0 %v90
    %269 = vmatpush.msra.mxu0 %v84
    %270 = vmatpush.msra.mxu0 %v78
    %271 = vmatpush.msra.mxu0 %v72
    %272 = vmatpush.msra.mxu0 %v66
    %273 = vmatpush.msra.mxu0 %v60
    %274 = vmatpush.msra.mxu0 %v54
    %275 = vmatmul.f32.gmra.mxu0 %v47
    %v276 = vpop.f32.mrf.mxu0
    %v277 = vadd.f32 %v152, %v276
    %278 = vdwg.mxu0
    %v279 = vxor.u32 %v197, 2147483648
    %v280 = vmul.f32 %v279, 1.442695
    %v281 = vpow.pop %v280
    %v282 = vadd.f32 %v281, 1.0
    %v283 = vrcp.pop %v282
    %v284 = vmul.f32 %v282, %v283
    %v285 = vsub.f32 1.0, %v284
    %v286 = vmul.f32 %v283, %v285
    %v287 = vadd.f32 %v283, %v286
    %vm288 = vweird.f32 %v282
    %vm289 = vweird.f32 %v283
    %vm290 = vmor %vm288, %vm289
    %v291 = vsel %vm290, %v283, %v287
    %v292 = vand.u32 2147483647, %v282
    %vm293 = vcmp.eq.f32.partialorder %v292, 8.507059e+37
    %v294 = vand.u32 %v282, 2147483648
    %v295 = vor.u32 1.1754944e-38, %v294
    %v296 = vsel %vm293, %v295, %v291
    %v297 = vmul.f32 1.0, %v296
    %v298 = vld [vmem:[%s1] sm:$0xff]
    %v299 = vld [vmem:[%s1 + $0x8] sm:$0xff]
    %v300 = vld [vmem:[%s1 + $0x10] sm:$0xff]
    %v301 = vld [vmem:[%s1 + $0x18] sm:$0xff]
    %v302 = vld [vmem:[%s1 + $0x20] sm:$0xff]
    %v303 = vld [vmem:[%s1 + $0x28] sm:$0xff]
    %v304 = vld [vmem:[%s1 + $0x30] sm:$0xff]
    %v305 = vld [vmem:[%s1 + $0x38] sm:$0xff]
    %v306 = vld [vmem:[%s1 + $0x40] sm:$0xff]
    %v307 = vld [vmem:[%s1 + $0x48] sm:$0xff]
    %v308 = vld [vmem:[%s1 + $0x50] sm:$0xff]
    %v309 = vld [vmem:[%s1 + $0x58] sm:$0xff]
    %v310 = vld [vmem:[%s1 + $0x60] sm:$0xff]
    %v311 = vld [vmem:[%s1 + $0x68] sm:$0xff]
    %v312 = vld [vmem:[%s1 + $0x70] sm:$0xff]
    %v313 = vld [vmem:[%s1 + $0x78] sm:$0xff]
    %v314 = vld [vmem:[%s1 + $0x80] sm:$0xff]
    %v315 = vld [vmem:[%s1 + $0x88] sm:$0xff]
    %v316 = vld [vmem:[%s1 + $0x90] sm:$0xff]
    %v317 = vld [vmem:[%s1 + $0x98] sm:$0xff]
    %v318 = vld [vmem:[%s1 + $0xa0] sm:$0xff]
    %v319 = vld [vmem:[%s1 + $0xa8] sm:$0xff]
    %v320 = vld [vmem:[%s1 + $0xb0] sm:$0xff]
    %v321 = vld [vmem:[%s1 + $0xb8] sm:$0xff]
    %v322 = vld [vmem:[%s1 + $0xc0] sm:$0xff]
    %v323 = vld [vmem:[%s1 + $0xc8] sm:$0xff]
    %v324 = vld [vmem:[%s1 + $0xd0] sm:$0xff]
    %v325 = vld [vmem:[%s1 + $0xd8] sm:$0xff]
    %v326 = vld [vmem:[%s1 + $0xe0] sm:$0xff]
    %v327 = vld [vmem:[%s1 + $0xe8] sm:$0xff]
    %v328 = vld [vmem:[%s1 + $0xf0] sm:$0xff]
    %v329 = vld [vmem:[%s1 + $0xf8] sm:$0xff]
    %v330 = vld [vmem:[%s1 + $0x100] sm:$0xff]
    %v331 = vld [vmem:[%s1 + $0x108] sm:$0xff]
    %v332 = vld [vmem:[%s1 + $0x110] sm:$0xff]
    %v333 = vld [vmem:[%s1 + $0x118] sm:$0xff]
    %v334 = vld [vmem:[%s1 + $0x120] sm:$0xff]
    %v335 = vld [vmem:[%s1 + $0x128] sm:$0xff]
    %v336 = vld [vmem:[%s1 + $0x130] sm:$0xff]
    %v337 = vld [vmem:[%s1 + $0x138] sm:$0xff]
    %v338 = vld [vmem:[%s1 + $0x140] sm:$0xff]
    %v339 = vld [vmem:[%s1 + $0x148] sm:$0xff]
    %v340 = vld [vmem:[%s1 + $0x150] sm:$0xff]
    %v341 = vld [vmem:[%s1 + $0x158] sm:$0xff]
    %v342 = vld [vmem:[%s1 + $0x160] sm:$0xff]
    %v343 = vld [vmem:[%s1 + $0x168] sm:$0xff]
    %v344 = vld [vmem:[%s1 + $0x170] sm:$0xff]
    %v345 = vld [vmem:[%s1 + $0x178] sm:$0xff]
    %v346 = vld [vmem:[%s1 + $0x180] sm:$0xff]
    %v347 = vld [vmem:[%s1 + $0x188] sm:$0xff]
    %v348 = vld [vmem:[%s1 + $0x190] sm:$0xff]
    %v349 = vld [vmem:[%s1 + $0x198] sm:$0xff]
    %v350 = vld [vmem:[%s1 + $0x1a0] sm:$0xff]
    %v351 = vld [vmem:[%s1 + $0x1a8] sm:$0xff]
    %v352 = vld [vmem:[%s1 + $0x1b0] sm:$0xff]
    %v353 = vld [vmem:[%s1 + $0x1b8] sm:$0xff]
    %v354 = vld [vmem:[%s1 + $0x1c0] sm:$0xff]
    %v355 = vld [vmem:[%s1 + $0x1c8] sm:$0xff]
    %v356 = vld [vmem:[%s1 + $0x1d0] sm:$0xff]
    %v357 = vld [vmem:[%s1 + $0x1d8] sm:$0xff]
    %v358 = vld [vmem:[%s1 + $0x1e0] sm:$0xff]
    %v359 = vld [vmem:[%s1 + $0x1e8] sm:$0xff]
    %v360 = vld [vmem:[%s1 + $0x1f0] sm:$0xff]
    %v361 = vld [vmem:[%s1 + $0x1f8] sm:$0xff]
    %v362 = vld [vmem:[%s1 + $0x200] sm:$0xff]
    %v363 = vld [vmem:[%s1 + $0x208] sm:$0xff]
    %v364 = vld [vmem:[%s1 + $0x210] sm:$0xff]
    %v365 = vld [vmem:[%s1 + $0x218] sm:$0xff]
    %v366 = vld [vmem:[%s1 + $0x220] sm:$0xff]
    %v367 = vld [vmem:[%s1 + $0x228] sm:$0xff]
    %v368 = vld [vmem:[%s1 + $0x230] sm:$0xff]
    %v369 = vld [vmem:[%s1 + $0x238] sm:$0xff]
    %v370 = vld [vmem:[%s1 + $0x240] sm:$0xff]
    %v371 = vld [vmem:[%s1 + $0x248] sm:$0xff]
    %v372 = vld [vmem:[%s1 + $0x250] sm:$0xff]
    %v373 = vld [vmem:[%s1 + $0x258] sm:$0xff]
    %v374 = vld [vmem:[%s1 + $0x260] sm:$0xff]
    %v375 = vld [vmem:[%s1 + $0x268] sm:$0xff]
    %v376 = vld [vmem:[%s1 + $0x270] sm:$0xff]
    %v377 = vld [vmem:[%s1 + $0x278] sm:$0xff]
    %v378 = vld [vmem:[%s1 + $0x280] sm:$0xff]
    %v379 = vld [vmem:[%s1 + $0x288] sm:$0xff]
    %v380 = vld [vmem:[%s1 + $0x290] sm:$0xff]
    %v381 = vld [vmem:[%s1 + $0x298] sm:$0xff]
    %v382 = vld [vmem:[%s1 + $0x2a0] sm:$0xff]
    %v383 = vld [vmem:[%s1 + $0x2a8] sm:$0xff]
    %v384 = vld [vmem:[%s1 + $0x2b0] sm:$0xff]
    %v385 = vld [vmem:[%s1 + $0x2b8] sm:$0xff]
    %v386 = vld [vmem:[%s1 + $0x2c0] sm:$0xff]
    %v387 = vld [vmem:[%s1 + $0x2c8] sm:$0xff]
    %v388 = vld [vmem:[%s1 + $0x2d0] sm:$0xff]
    %v389 = vld [vmem:[%s1 + $0x2d8] sm:$0xff]
    %v390 = vld [vmem:[%s1 + $0x2e0] sm:$0xff]
    %v391 = vld [vmem:[%s1 + $0x2e8] sm:$0xff]
    %v392 = vld [vmem:[%s1 + $0x2f0] sm:$0xff]
    %v393 = vld [vmem:[%s1 + $0x2f8] sm:$0xff]
    %v394 = vld [vmem:[%s1 + $0x300] sm:$0xff]
    %v395 = vld [vmem:[%s1 + $0x308] sm:$0xff]
    %v396 = vld [vmem:[%s1 + $0x310] sm:$0xff]
    %v397 = vld [vmem:[%s1 + $0x318] sm:$0xff]
    %v398 = vld [vmem:[%s1 + $0x320] sm:$0xff]
    %v399 = vld [vmem:[%s1 + $0x328] sm:$0xff]
    %v400 = vld [vmem:[%s1 + $0x330] sm:$0xff]
    %v401 = vld [vmem:[%s1 + $0x338] sm:$0xff]
    %v402 = vld [vmem:[%s1 + $0x340] sm:$0xff]
    %v403 = vld [vmem:[%s1 + $0x348] sm:$0xff]
    %v404 = vld [vmem:[%s1 + $0x350] sm:$0xff]
    %v405 = vld [vmem:[%s1 + $0x358] sm:$0xff]
    %v406 = vld [vmem:[%s1 + $0x360] sm:$0xff]
    %v407 = vld [vmem:[%s1 + $0x368] sm:$0xff]
    %v408 = vld [vmem:[%s1 + $0x370] sm:$0xff]
    %v409 = vld [vmem:[%s1 + $0x378] sm:$0xff]
    %v410 = vld [vmem:[%s1 + $0x380] sm:$0xff]
    %v411 = vld [vmem:[%s1 + $0x388] sm:$0xff]
    %v412 = vld [vmem:[%s1 + $0x390] sm:$0xff]
    %v413 = vld [vmem:[%s1 + $0x398] sm:$0xff]
    %v414 = vld [vmem:[%s1 + $0x3a0] sm:$0xff]
    %v415 = vld [vmem:[%s1 + $0x3a8] sm:$0xff]
    %v416 = vld [vmem:[%s1 + $0x3b0] sm:$0xff]
    %v417 = vld [vmem:[%s1 + $0x3b8] sm:$0xff]
    %v418 = vld [vmem:[%s1 + $0x3c0] sm:$0xff]
    %v419 = vld [vmem:[%s1 + $0x3c8] sm:$0xff]
    %v420 = vld [vmem:[%s1 + $0x3d0] sm:$0xff]
    %v421 = vld [vmem:[%s1 + $0x3d8] sm:$0xff]
    %v422 = vld [vmem:[%s1 + $0x3e0] sm:$0xff]
    %v423 = vld [vmem:[%s1 + $0x3e8] sm:$0xff]
    %v424 = vld [vmem:[%s1 + $0x3f0] sm:$0xff]
    %v425 = vld [vmem:[%s1 + $0x3f8] sm:$0xff]
    %v427 = vrot.slane %v177, 1
    %v428 = vrot.slane %v177, 2
    %v429 = vrot.slane %v177, 3
    %v430 = vrot.slane %v177, 4
    %v431 = vrot.slane %v177, 5
    %v432 = vrot.slane %v177, 6
    %v433 = vrot.slane %v177, 7
    %v434 = vperm.slane %v177, 0
    %v435 = vperm.slane %v427, 0
    %v436 = vperm.slane %v428, 0
    %v437 = vperm.slane %v429, 0
    %v438 = vperm.slane %v430, 0
    %v439 = vperm.slane %v431, 0
    %v440 = vperm.slane %v432, 0
    %v441 = vperm.slane %v433, 0
    %v450 = vadd.f32 %v298, %v434
    %v451 = vadd.f32 %v299, %v434
    %v452 = vadd.f32 %v300, %v434
    %v453 = vadd.f32 %v301, %v434
    %v454 = vadd.f32 %v302, %v434
    %v455 = vadd.f32 %v303, %v434
    %v456 = vadd.f32 %v304, %v434
    %v457 = vadd.f32 %v305, %v434
    %v458 = vadd.f32 %v306, %v434
    %v459 = vadd.f32 %v307, %v434
    %v460 = vadd.f32 %v308, %v434
    %v461 = vadd.f32 %v309, %v434
    %v462 = vadd.f32 %v310, %v434
    %v463 = vadd.f32 %v311, %v434
    %v464 = vadd.f32 %v312, %v434
    %v465 = vadd.f32 %v313, %v434
    %v466 = vadd.f32 %v314, %v435
    %v467 = vadd.f32 %v315, %v435
    %v468 = vadd.f32 %v316, %v435
    %v469 = vadd.f32 %v317, %v435
    %v470 = vadd.f32 %v318, %v435
    %v471 = vadd.f32 %v319, %v435
    %v472 = vadd.f32 %v320, %v435
    %v473 = vadd.f32 %v321, %v435
    %v474 = vadd.f32 %v322, %v435
    %v475 = vadd.f32 %v323, %v435
    %v476 = vadd.f32 %v324, %v435
    %v477 = vadd.f32 %v325, %v435
    %v478 = vadd.f32 %v326, %v435
    %v479 = vadd.f32 %v327, %v435
    %v480 = vadd.f32 %v328, %v435
    %v481 = vadd.f32 %v329, %v435
    %v482 = vadd.f32 %v330, %v436
    %v483 = vadd.f32 %v331, %v436
    %v484 = vadd.f32 %v332, %v436
    %v485 = vadd.f32 %v333, %v436
    %v486 = vadd.f32 %v334, %v436
    %v487 = vadd.f32 %v335, %v436
    %v488 = vadd.f32 %v336, %v436
    %v489 = vadd.f32 %v337, %v436
    %v490 = vadd.f32 %v338, %v436
    %v491 = vadd.f32 %v339, %v436
    %v492 = vadd.f32 %v340, %v436
    %v493 = vadd.f32 %v341, %v436
    %v494 = vadd.f32 %v342, %v436
    %v495 = vadd.f32 %v343, %v436
    %v496 = vadd.f32 %v344, %v436
    %v497 = vadd.f32 %v345, %v436
    %v498 = vadd.f32 %v346, %v437
    %v499 = vadd.f32 %v347, %v437
    %v500 = vadd.f32 %v348, %v437
    %v501 = vadd.f32 %v349, %v437
    %v502 = vadd.f32 %v350, %v437
    %v503 = vadd.f32 %v351, %v437
    %v504 = vadd.f32 %v352, %v437
    %v505 = vadd.f32 %v353, %v437
    %v506 = vadd.f32 %v354, %v437
    %v507 = vadd.f32 %v355, %v437
    %v508 = vadd.f32 %v356, %v437
    %v509 = vadd.f32 %v357, %v437
    %v510 = vadd.f32 %v358, %v437
    %v511 = vadd.f32 %v359, %v437
    %v512 = vadd.f32 %v360, %v437
    %v513 = vadd.f32 %v361, %v437
    %v514 = vadd.f32 %v362, %v438
    %v515 = vadd.f32 %v363, %v438
    %v516 = vadd.f32 %v364, %v438
    %v517 = vadd.f32 %v365, %v438
    %v518 = vadd.f32 %v366, %v438
    %v519 = vadd.f32 %v367, %v438
    %v520 = vadd.f32 %v368, %v438
    %v521 = vadd.f32 %v369, %v438
    %v522 = vadd.f32 %v370, %v438
    %v523 = vadd.f32 %v371, %v438
    %v524 = vadd.f32 %v372, %v438
    %v525 = vadd.f32 %v373, %v438
    %v526 = vadd.f32 %v374, %v438
    %v527 = vadd.f32 %v375, %v438
    %v528 = vadd.f32 %v376, %v438
    %v529 = vadd.f32 %v377, %v438
    %v530 = vadd.f32 %v378, %v439
    %v531 = vadd.f32 %v379, %v439
    %v532 = vadd.f32 %v380, %v439
    %v533 = vadd.f32 %v381, %v439
    %v534 = vadd.f32 %v382, %v439
    %v535 = vadd.f32 %v383, %v439
    %v536 = vadd.f32 %v384, %v439
    %v537 = vadd.f32 %v385, %v439
    %v538 = vadd.f32 %v386, %v439
    %v539 = vadd.f32 %v387, %v439
    %v540 = vadd.f32 %v388, %v439
    %v541 = vadd.f32 %v389, %v439
    %v542 = vadd.f32 %v390, %v439
    %v543 = vadd.f32 %v391, %v439
    %v544 = vadd.f32 %v392, %v439
    %v545 = vadd.f32 %v393, %v439
    %v546 = vadd.f32 %v394, %v440
    %v547 = vadd.f32 %v395, %v440
    %v548 = vadd.f32 %v396, %v440
    %v549 = vadd.f32 %v397, %v440
    %v550 = vadd.f32 %v398, %v440
    %v551 = vadd.f32 %v399, %v440
    %v552 = vadd.f32 %v400, %v440
    %v553 = vadd.f32 %v401, %v440
    %v554 = vadd.f32 %v402, %v440
    %v555 = vadd.f32 %v403, %v440
    %v556 = vadd.f32 %v404, %v440
    %v557 = vadd.f32 %v405, %v440
    %v558 = vadd.f32 %v406, %v440
    %v559 = vadd.f32 %v407, %v440
    %v560 = vadd.f32 %v408, %v440
    %v561 = vadd.f32 %v409, %v440
    %v562 = vadd.f32 %v410, %v441
    %v563 = vadd.f32 %v411, %v441
    %v564 = vadd.f32 %v412, %v441
    %v565 = vadd.f32 %v413, %v441
    %v566 = vadd.f32 %v414, %v441
    %v567 = vadd.f32 %v415, %v441
    %v568 = vadd.f32 %v416, %v441
    %v569 = vadd.f32 %v417, %v441
    %v570 = vadd.f32 %v418, %v441
    %v571 = vadd.f32 %v419, %v441
    %v572 = vadd.f32 %v420, %v441
    %v573 = vadd.f32 %v421, %v441
    %v574 = vadd.f32 %v422, %v441
    %v575 = vadd.f32 %v423, %v441
    %v576 = vadd.f32 %v424, %v441
    %v577 = vadd.f32 %v425, %v441
    %v578 = vmax.f32 %v450, 0.0
    %v579 = vmax.f32 %v451, 0.0
    %v580 = vmax.f32 %v452, 0.0
    %v581 = vmax.f32 %v453, 0.0
    %v582 = vmax.f32 %v454, 0.0
    %v583 = vmax.f32 %v455, 0.0
    %v584 = vmax.f32 %v456, 0.0
    %v585 = vmax.f32 %v457, 0.0
    %v586 = vmax.f32 %v458, 0.0
    %v587 = vmax.f32 %v459, 0.0
    %v588 = vmax.f32 %v460, 0.0
    %v589 = vmax.f32 %v461, 0.0
    %v590 = vmax.f32 %v462, 0.0
    %v591 = vmax.f32 %v463, 0.0
    %v592 = vmax.f32 %v464, 0.0
    %v593 = vmax.f32 %v465, 0.0
    %v594 = vmax.f32 %v466, 0.0
    %v595 = vmax.f32 %v467, 0.0
    %v596 = vmax.f32 %v468, 0.0
    %v597 = vmax.f32 %v469, 0.0
    %v598 = vmax.f32 %v470, 0.0
    %v599 = vmax.f32 %v471, 0.0
    %v600 = vmax.f32 %v472, 0.0
    %v601 = vmax.f32 %v473, 0.0
    %v602 = vmax.f32 %v474, 0.0
    %v603 = vmax.f32 %v475, 0.0
    %v604 = vmax.f32 %v476, 0.0
    %v605 = vmax.f32 %v477, 0.0
    %v606 = vmax.f32 %v478, 0.0
    %v607 = vmax.f32 %v479, 0.0
    %v608 = vmax.f32 %v480, 0.0
    %v609 = vmax.f32 %v481, 0.0
    %v610 = vmax.f32 %v482, 0.0
    %v611 = vmax.f32 %v483, 0.0
    %v612 = vmax.f32 %v484, 0.0
    %v613 = vmax.f32 %v485, 0.0
    %v614 = vmax.f32 %v486, 0.0
    %v615 = vmax.f32 %v487, 0.0
    %v616 = vmax.f32 %v488, 0.0
    %v617 = vmax.f32 %v489, 0.0
    %v618 = vmax.f32 %v490, 0.0
    %v619 = vmax.f32 %v491, 0.0
    %v620 = vmax.f32 %v492, 0.0
    %v621 = vmax.f32 %v493, 0.0
    %v622 = vmax.f32 %v494, 0.0
    %v623 = vmax.f32 %v495, 0.0
    %v624 = vmax.f32 %v496, 0.0
    %v625 = vmax.f32 %v497, 0.0
    %v626 = vmax.f32 %v498, 0.0
    %v627 = vmax.f32 %v499, 0.0
    %v628 = vmax.f32 %v500, 0.0
    %v629 = vmax.f32 %v501, 0.0
    %v630 = vmax.f32 %v502, 0.0
    %v631 = vmax.f32 %v503, 0.0
    %v632 = vmax.f32 %v504, 0.0
    %v633 = vmax.f32 %v505, 0.0
    %v634 = vmax.f32 %v506, 0.0
    %v635 = vmax.f32 %v507, 0.0
    %v636 = vmax.f32 %v508, 0.0
    %v637 = vmax.f32 %v509, 0.0
    %v638 = vmax.f32 %v510, 0.0
    %v639 = vmax.f32 %v511, 0.0
    %v640 = vmax.f32 %v512, 0.0
    %v641 = vmax.f32 %v513, 0.0
    %v642 = vmax.f32 %v514, 0.0
    %v643 = vmax.f32 %v515, 0.0
    %v644 = vmax.f32 %v516, 0.0
    %v645 = vmax.f32 %v517, 0.0
    %v646 = vmax.f32 %v518, 0.0
    %v647 = vmax.f32 %v519, 0.0
    %v648 = vmax.f32 %v520, 0.0
    %v649 = vmax.f32 %v521, 0.0
    %v650 = vmax.f32 %v522, 0.0
    %v651 = vmax.f32 %v523, 0.0
    %v652 = vmax.f32 %v524, 0.0
    %v653 = vmax.f32 %v525, 0.0
    %v654 = vmax.f32 %v526, 0.0
    %v655 = vmax.f32 %v527, 0.0
    %v656 = vmax.f32 %v528, 0.0
    %v657 = vmax.f32 %v529, 0.0
    %v658 = vmax.f32 %v530, 0.0
    %v659 = vmax.f32 %v531, 0.0
    %v660 = vmax.f32 %v532, 0.0
    %v661 = vmax.f32 %v533, 0.0
    %v662 = vmax.f32 %v534, 0.0
    %v663 = vmax.f32 %v535, 0.0
    %v664 = vmax.f32 %v536, 0.0
    %v665 = vmax.f32 %v537, 0.0
    %v666 = vmax.f32 %v538, 0.0
    %v667 = vmax.f32 %v539, 0.0
    %v668 = vmax.f32 %v540, 0.0
    %v669 = vmax.f32 %v541, 0.0
    %v670 = vmax.f32 %v542, 0.0
    %v671 = vmax.f32 %v543, 0.0
    %v672 = vmax.f32 %v544, 0.0
    %v673 = vmax.f32 %v545, 0.0
    %v674 = vmax.f32 %v546, 0.0
    %v675 = vmax.f32 %v547, 0.0
    %v676 = vmax.f32 %v548, 0.0
    %v677 = vmax.f32 %v549, 0.0
    %v678 = vmax.f32 %v550, 0.0
    %v679 = vmax.f32 %v551, 0.0
    %v680 = vmax.f32 %v552, 0.0
    %v681 = vmax.f32 %v553, 0.0
    %v682 = vmax.f32 %v554, 0.0
    %v683 = vmax.f32 %v555, 0.0
    %v684 = vmax.f32 %v556, 0.0
    %v685 = vmax.f32 %v557, 0.0
    %v686 = vmax.f32 %v558, 0.0
    %v687 = vmax.f32 %v559, 0.0
    %v688 = vmax.f32 %v560, 0.0
    %v689 = vmax.f32 %v561, 0.0
    %v690 = vmax.f32 %v562, 0.0
    %v691 = vmax.f32 %v563, 0.0
    %v692 = vmax.f32 %v564, 0.0
    %v693 = vmax.f32 %v565, 0.0
    %v694 = vmax.f32 %v566, 0.0
    %v695 = vmax.f32 %v567, 0.0
    %v696 = vmax.f32 %v568, 0.0
    %v697 = vmax.f32 %v569, 0.0
    %v698 = vmax.f32 %v570, 0.0
    %v699 = vmax.f32 %v571, 0.0
    %v700 = vmax.f32 %v572, 0.0
    %v701 = vmax.f32 %v573, 0.0
    %v702 = vmax.f32 %v574, 0.0
    %v703 = vmax.f32 %v575, 0.0
    %v704 = vmax.f32 %v576, 0.0
    %v705 = vmax.f32 %v577, 0.0
    %v706 = vld [vmem:[%s8] sm:$0x1]
    %v708 = vperm.slane %v706, 0
    %v710 = vmul.f32 %v578, %v708
    %v711 = vmul.f32 %v579, %v708
    %v712 = vmul.f32 %v580, %v708
    %v713 = vmul.f32 %v581, %v708
    %v714 = vmul.f32 %v582, %v708
    %v715 = vmul.f32 %v583, %v708
    %v716 = vmul.f32 %v584, %v708
    %v717 = vmul.f32 %v585, %v708
    %v718 = vmul.f32 %v586, %v708
    %v719 = vmul.f32 %v587, %v708
    %v720 = vmul.f32 %v588, %v708
    %v721 = vmul.f32 %v589, %v708
    %v722 = vmul.f32 %v590, %v708
    %v723 = vmul.f32 %v591, %v708
    %v724 = vmul.f32 %v592, %v708
    %v725 = vmul.f32 %v593, %v708
    %v726 = vmul.f32 %v594, %v708
    %v727 = vmul.f32 %v595, %v708
    %v728 = vmul.f32 %v596, %v708
    %v729 = vmul.f32 %v597, %v708
    %v730 = vmul.f32 %v598, %v708
    %v731 = vmul.f32 %v599, %v708
    %v732 = vmul.f32 %v600, %v708
    %v733 = vmul.f32 %v601, %v708
    %v734 = vmul.f32 %v602, %v708
    %v735 = vmul.f32 %v603, %v708
    %v736 = vmul.f32 %v604, %v708
    %v737 = vmul.f32 %v605, %v708
    %v738 = vmul.f32 %v606, %v708
    %v739 = vmul.f32 %v607, %v708
    %v740 = vmul.f32 %v608, %v708
    %v741 = vmul.f32 %v609, %v708
    %v742 = vmul.f32 %v610, %v708
    %v743 = vmul.f32 %v611, %v708
    %v744 = vmul.f32 %v612, %v708
    %v745 = vmul.f32 %v613, %v708
    %v746 = vmul.f32 %v614, %v708
    %v747 = vmul.f32 %v615, %v708
    %v748 = vmul.f32 %v616, %v708
    %v749 = vmul.f32 %v617, %v708
    %v750 = vmul.f32 %v618, %v708
    %v751 = vmul.f32 %v619, %v708
    %v752 = vmul.f32 %v620, %v708
    %v753 = vmul.f32 %v621, %v708
    %v754 = vmul.f32 %v622, %v708
    %v755 = vmul.f32 %v623, %v708
    %v756 = vmul.f32 %v624, %v708
    %v757 = vmul.f32 %v625, %v708
    %v758 = vmul.f32 %v626, %v708
    %v759 = vmul.f32 %v627, %v708
    %v760 = vmul.f32 %v628, %v708
    %v761 = vmul.f32 %v629, %v708
    %v762 = vmul.f32 %v630, %v708
    %v763 = vmul.f32 %v631, %v708
    %v764 = vmul.f32 %v632, %v708
    %v765 = vmul.f32 %v633, %v708
    %v766 = vmul.f32 %v634, %v708
    %v767 = vmul.f32 %v635, %v708
    %v768 = vmul.f32 %v636, %v708
    %v769 = vmul.f32 %v637, %v708
    %v770 = vmul.f32 %v638, %v708
    %v771 = vmul.f32 %v639, %v708
    %v772 = vmul.f32 %v640, %v708
    %v773 = vmul.f32 %v641, %v708
    %v774 = vmul.f32 %v642, %v708
    %v775 = vmul.f32 %v643, %v708
    %v776 = vmul.f32 %v644, %v708
    %v777 = vmul.f32 %v645, %v708
    %v778 = vmul.f32 %v646, %v708
    %v779 = vmul.f32 %v647, %v708
    %v780 = vmul.f32 %v648, %v708
    %v781 = vmul.f32 %v649, %v708
    %v782 = vmul.f32 %v650, %v708
    %v783 = vmul.f32 %v651, %v708
    %v784 = vmul.f32 %v652, %v708
    %v785 = vmul.f32 %v653, %v708
    %v786 = vmul.f32 %v654, %v708
    %v787 = vmul.f32 %v655, %v708
    %v788 = vmul.f32 %v656, %v708
    %v789 = vmul.f32 %v657, %v708
    %v790 = vmul.f32 %v658, %v708
    %v791 = vmul.f32 %v659, %v708
    %v792 = vmul.f32 %v660, %v708
    %v793 = vmul.f32 %v661, %v708
    %v794 = vmul.f32 %v662, %v708
    %v795 = vmul.f32 %v663, %v708
    %v796 = vmul.f32 %v664, %v708
    %v797 = vmul.f32 %v665, %v708
    %v798 = vmul.f32 %v666, %v708
    %v799 = vmul.f32 %v667, %v708
    %v800 = vmul.f32 %v668, %v708
    %v801 = vmul.f32 %v669, %v708
    %v802 = vmul.f32 %v670, %v708
    %v803 = vmul.f32 %v671, %v708
    %v804 = vmul.f32 %v672, %v708
    %v805 = vmul.f32 %v673, %v708
    %v806 = vmul.f32 %v674, %v708
    %v807 = vmul.f32 %v675, %v708
    %v808 = vmul.f32 %v676, %v708
    %v809 = vmul.f32 %v677, %v708
    %v810 = vmul.f32 %v678, %v708
    %v811 = vmul.f32 %v679, %v708
    %v812 = vmul.f32 %v680, %v708
    %v813 = vmul.f32 %v681, %v708
    %v814 = vmul.f32 %v682, %v708
    %v815 = vmul.f32 %v683, %v708
    %v816 = vmul.f32 %v684, %v708
    %v817 = vmul.f32 %v685, %v708
    %v818 = vmul.f32 %v686, %v708
    %v819 = vmul.f32 %v687, %v708
    %v820 = vmul.f32 %v688, %v708
    %v821 = vmul.f32 %v689, %v708
    %v822 = vmul.f32 %v690, %v708
    %v823 = vmul.f32 %v691, %v708
    %v824 = vmul.f32 %v692, %v708
    %v825 = vmul.f32 %v693, %v708
    %v826 = vmul.f32 %v694, %v708
    %v827 = vmul.f32 %v695, %v708
    %v828 = vmul.f32 %v696, %v708
    %v829 = vmul.f32 %v697, %v708
    %v830 = vmul.f32 %v698, %v708
    %v831 = vmul.f32 %v699, %v708
    %v832 = vmul.f32 %v700, %v708
    %v833 = vmul.f32 %v701, %v708
    %v834 = vmul.f32 %v702, %v708
    %v835 = vmul.f32 %v703, %v708
    %v836 = vmul.f32 %v704, %v708
    %v837 = vmul.f32 %v705, %v708
    %838 = vadd.xlane.f32.xlu0 %v710
    %v839 = vpop.xlane.xlu0 %838
    %840 = vadd.xlane.f32.xlu0 %v711
    %v841 = vpop.xlane.xlu0 %840
    %842 = vadd.xlane.f32.xlu0 %v712
    %v843 = vpop.xlane.xlu0 %842
    %844 = vadd.xlane.f32.xlu0 %v713
    %v845 = vpop.xlane.xlu0 %844
    %846 = vadd.xlane.f32.xlu0 %v714
    %v847 = vpop.xlane.xlu0 %846
    %848 = vadd.xlane.f32.xlu0 %v715
    %v849 = vpop.xlane.xlu0 %848
    %850 = vadd.xlane.f32.xlu0 %v716
    %v851 = vpop.xlane.xlu0 %850
    %852 = vadd.xlane.f32.xlu0 %v717
    %v853 = vpop.xlane.xlu0 %852
    %854 = vadd.xlane.f32.xlu0 %v718
    %v855 = vpop.xlane.xlu0 %854
    %856 = vadd.xlane.f32.xlu0 %v719
    %v857 = vpop.xlane.xlu0 %856
    %858 = vadd.xlane.f32.xlu0 %v720
    %v859 = vpop.xlane.xlu0 %858
    %860 = vadd.xlane.f32.xlu0 %v721
    %v861 = vpop.xlane.xlu0 %860
    %862 = vadd.xlane.f32.xlu0 %v722
    %v863 = vpop.xlane.xlu0 %862
    %864 = vadd.xlane.f32.xlu0 %v723
    %v865 = vpop.xlane.xlu0 %864
    %866 = vadd.xlane.f32.xlu0 %v724
    %v867 = vpop.xlane.xlu0 %866
    %868 = vadd.xlane.f32.xlu0 %v725
    %v869 = vpop.xlane.xlu0 %868
    %870 = vadd.xlane.f32.xlu0 %v726
    %v871 = vpop.xlane.xlu0 %870
    %872 = vadd.xlane.f32.xlu0 %v727
    %v873 = vpop.xlane.xlu0 %872
    %874 = vadd.xlane.f32.xlu0 %v728
    %v875 = vpop.xlane.xlu0 %874
    %876 = vadd.xlane.f32.xlu0 %v729
    %v877 = vpop.xlane.xlu0 %876
    %878 = vadd.xlane.f32.xlu0 %v730
    %v879 = vpop.xlane.xlu0 %878
    %880 = vadd.xlane.f32.xlu0 %v731
    %v881 = vpop.xlane.xlu0 %880
    %882 = vadd.xlane.f32.xlu0 %v732
    %v883 = vpop.xlane.xlu0 %882
    %884 = vadd.xlane.f32.xlu0 %v733
    %v885 = vpop.xlane.xlu0 %884
    %886 = vadd.xlane.f32.xlu0 %v734
    %v887 = vpop.xlane.xlu0 %886
    %888 = vadd.xlane.f32.xlu0 %v735
    %v889 = vpop.xlane.xlu0 %888
    %890 = vadd.xlane.f32.xlu0 %v736
    %v891 = vpop.xlane.xlu0 %890
    %892 = vadd.xlane.f32.xlu0 %v737
    %v893 = vpop.xlane.xlu0 %892
    %894 = vadd.xlane.f32.xlu0 %v738
    %v895 = vpop.xlane.xlu0 %894
    %896 = vadd.xlane.f32.xlu0 %v739
    %v897 = vpop.xlane.xlu0 %896
    %898 = vadd.xlane.f32.xlu0 %v740
    %v899 = vpop.xlane.xlu0 %898
    %900 = vadd.xlane.f32.xlu0 %v741
    %v901 = vpop.xlane.xlu0 %900
    %902 = vadd.xlane.f32.xlu0 %v742
    %v903 = vpop.xlane.xlu0 %902
    %904 = vadd.xlane.f32.xlu0 %v743
    %v905 = vpop.xlane.xlu0 %904
    %906 = vadd.xlane.f32.xlu0 %v744
    %v907 = vpop.xlane.xlu0 %906
    %908 = vadd.xlane.f32.xlu0 %v745
    %v909 = vpop.xlane.xlu0 %908
    %910 = vadd.xlane.f32.xlu0 %v746
    %v911 = vpop.xlane.xlu0 %910
    %912 = vadd.xlane.f32.xlu0 %v747
    %v913 = vpop.xlane.xlu0 %912
    %914 = vadd.xlane.f32.xlu0 %v748
    %v915 = vpop.xlane.xlu0 %914
    %916 = vadd.xlane.f32.xlu0 %v749
    %v917 = vpop.xlane.xlu0 %916
    %918 = vadd.xlane.f32.xlu0 %v750
    %v919 = vpop.xlane.xlu0 %918
    %920 = vadd.xlane.f32.xlu0 %v751
    %v921 = vpop.xlane.xlu0 %920
    %922 = vadd.xlane.f32.xlu0 %v752
    %v923 = vpop.xlane.xlu0 %922
    %924 = vadd.xlane.f32.xlu0 %v753
    %v925 = vpop.xlane.xlu0 %924
    %926 = vadd.xlane.f32.xlu0 %v754
    %v927 = vpop.xlane.xlu0 %926
    %928 = vadd.xlane.f32.xlu0 %v755
    %v929 = vpop.xlane.xlu0 %928
    %930 = vadd.xlane.f32.xlu0 %v756
    %v931 = vpop.xlane.xlu0 %930
    %932 = vadd.xlane.f32.xlu0 %v757
    %v933 = vpop.xlane.xlu0 %932
    %934 = vadd.xlane.f32.xlu0 %v758
    %v935 = vpop.xlane.xlu0 %934
    %936 = vadd.xlane.f32.xlu0 %v759
    %v937 = vpop.xlane.xlu0 %936
    %938 = vadd.xlane.f32.xlu0 %v760
    %v939 = vpop.xlane.xlu0 %938
    %940 = vadd.xlane.f32.xlu0 %v761
    %v941 = vpop.xlane.xlu0 %940
    %942 = vadd.xlane.f32.xlu0 %v762
    %v943 = vpop.xlane.xlu0 %942
    %944 = vadd.xlane.f32.xlu0 %v763
    %v945 = vpop.xlane.xlu0 %944
    %946 = vadd.xlane.f32.xlu0 %v764
    %v947 = vpop.xlane.xlu0 %946
    %948 = vadd.xlane.f32.xlu0 %v765
    %v949 = vpop.xlane.xlu0 %948
    %950 = vadd.xlane.f32.xlu0 %v766
    %v951 = vpop.xlane.xlu0 %950
    %952 = vadd.xlane.f32.xlu0 %v767
    %v953 = vpop.xlane.xlu0 %952
    %954 = vadd.xlane.f32.xlu0 %v768
    %v955 = vpop.xlane.xlu0 %954
    %956 = vadd.xlane.f32.xlu0 %v769
    %v957 = vpop.xlane.xlu0 %956
    %958 = vadd.xlane.f32.xlu0 %v770
    %v959 = vpop.xlane.xlu0 %958
    %960 = vadd.xlane.f32.xlu0 %v771
    %v961 = vpop.xlane.xlu0 %960
    %962 = vadd.xlane.f32.xlu0 %v772
    %v963 = vpop.xlane.xlu0 %962
    %964 = vadd.xlane.f32.xlu0 %v773
    %v965 = vpop.xlane.xlu0 %964
    %966 = vadd.xlane.f32.xlu0 %v774
    %v967 = vpop.xlane.xlu0 %966
    %968 = vadd.xlane.f32.xlu0 %v775
    %v969 = vpop.xlane.xlu0 %968
    %970 = vadd.xlane.f32.xlu0 %v776
    %v971 = vpop.xlane.xlu0 %970
    %972 = vadd.xlane.f32.xlu0 %v777
    %v973 = vpop.xlane.xlu0 %972
    %974 = vadd.xlane.f32.xlu0 %v778
    %v975 = vpop.xlane.xlu0 %974
    %976 = vadd.xlane.f32.xlu0 %v779
    %v977 = vpop.xlane.xlu0 %976
    %978 = vadd.xlane.f32.xlu0 %v780
    %v979 = vpop.xlane.xlu0 %978
    %980 = vadd.xlane.f32.xlu0 %v781
    %v981 = vpop.xlane.xlu0 %980
    %982 = vadd.xlane.f32.xlu0 %v782
    %v983 = vpop.xlane.xlu0 %982
    %984 = vadd.xlane.f32.xlu0 %v783
    %v985 = vpop.xlane.xlu0 %984
    %986 = vadd.xlane.f32.xlu0 %v784
    %v987 = vpop.xlane.xlu0 %986
    %988 = vadd.xlane.f32.xlu0 %v785
    %v989 = vpop.xlane.xlu0 %988
    %990 = vadd.xlane.f32.xlu0 %v786
    %v991 = vpop.xlane.xlu0 %990
    %992 = vadd.xlane.f32.xlu0 %v787
    %v993 = vpop.xlane.xlu0 %992
    %994 = vadd.xlane.f32.xlu0 %v788
    %v995 = vpop.xlane.xlu0 %994
    %996 = vadd.xlane.f32.xlu0 %v789
    %v997 = vpop.xlane.xlu0 %996
    %998 = vadd.xlane.f32.xlu0 %v790
    %v999 = vpop.xlane.xlu0 %998
    %1000 = vadd.xlane.f32.xlu0 %v791
    %v1001 = vpop.xlane.xlu0 %1000
    %1002 = vadd.xlane.f32.xlu0 %v792
    %v1003 = vpop.xlane.xlu0 %1002
    %1004 = vadd.xlane.f32.xlu0 %v793
    %v1005 = vpop.xlane.xlu0 %1004
    %1006 = vadd.xlane.f32.xlu0 %v794
    %v1007 = vpop.xlane.xlu0 %1006
    %1008 = vadd.xlane.f32.xlu0 %v795
    %v1009 = vpop.xlane.xlu0 %1008
    %1010 = vadd.xlane.f32.xlu0 %v796
    %v1011 = vpop.xlane.xlu0 %1010
    %1012 = vadd.xlane.f32.xlu0 %v797
    %v1013 = vpop.xlane.xlu0 %1012
    %1014 = vadd.xlane.f32.xlu0 %v798
    %v1015 = vpop.xlane.xlu0 %1014
    %1016 = vadd.xlane.f32.xlu0 %v799
    %v1017 = vpop.xlane.xlu0 %1016
    %1018 = vadd.xlane.f32.xlu0 %v800
    %v1019 = vpop.xlane.xlu0 %1018
    %1020 = vadd.xlane.f32.xlu0 %v801
    %v1021 = vpop.xlane.xlu0 %1020
    %1022 = vadd.xlane.f32.xlu0 %v802
    %v1023 = vpop.xlane.xlu0 %1022
    %1024 = vadd.xlane.f32.xlu0 %v803
    %v1025 = vpop.xlane.xlu0 %1024
    %1026 = vadd.xlane.f32.xlu0 %v804
    %v1027 = vpop.xlane.xlu0 %1026
    %1028 = vadd.xlane.f32.xlu0 %v805
    %v1029 = vpop.xlane.xlu0 %1028
    %1030 = vadd.xlane.f32.xlu0 %v806
    %v1031 = vpop.xlane.xlu0 %1030
    %1032 = vadd.xlane.f32.xlu0 %v807
    %v1033 = vpop.xlane.xlu0 %1032
    %1034 = vadd.xlane.f32.xlu0 %v808
    %v1035 = vpop.xlane.xlu0 %1034
    %1036 = vadd.xlane.f32.xlu0 %v809
    %v1037 = vpop.xlane.xlu0 %1036
    %1038 = vadd.xlane.f32.xlu0 %v810
    %v1039 = vpop.xlane.xlu0 %1038
    %1040 = vadd.xlane.f32.xlu0 %v811
    %v1041 = vpop.xlane.xlu0 %1040
    %1042 = vadd.xlane.f32.xlu0 %v812
    %v1043 = vpop.xlane.xlu0 %1042
    %1044 = vadd.xlane.f32.xlu0 %v813
    %v1045 = vpop.xlane.xlu0 %1044
    %1046 = vadd.xlane.f32.xlu0 %v814
    %v1047 = vpop.xlane.xlu0 %1046
    %1048 = vadd.xlane.f32.xlu0 %v815
    %v1049 = vpop.xlane.xlu0 %1048
    %1050 = vadd.xlane.f32.xlu0 %v816
    %v1051 = vpop.xlane.xlu0 %1050
    %1052 = vadd.xlane.f32.xlu0 %v817
    %v1053 = vpop.xlane.xlu0 %1052
    %1054 = vadd.xlane.f32.xlu0 %v818
    %v1055 = vpop.xlane.xlu0 %1054
    %1056 = vadd.xlane.f32.xlu0 %v819
    %v1057 = vpop.xlane.xlu0 %1056
    %1058 = vadd.xlane.f32.xlu0 %v820
    %v1059 = vpop.xlane.xlu0 %1058
    %1060 = vadd.xlane.f32.xlu0 %v821
    %v1061 = vpop.xlane.xlu0 %1060
    %1062 = vadd.xlane.f32.xlu0 %v822
    %v1063 = vpop.xlane.xlu0 %1062
    %1064 = vadd.xlane.f32.xlu0 %v823
    %v1065 = vpop.xlane.xlu0 %1064
    %1066 = vadd.xlane.f32.xlu0 %v824
    %v1067 = vpop.xlane.xlu0 %1066
    %1068 = vadd.xlane.f32.xlu0 %v825
    %v1069 = vpop.xlane.xlu0 %1068
    %1070 = vadd.xlane.f32.xlu0 %v826
    %v1071 = vpop.xlane.xlu0 %1070
    %1072 = vadd.xlane.f32.xlu0 %v827
    %v1073 = vpop.xlane.xlu0 %1072
    %1074 = vadd.xlane.f32.xlu0 %v828
    %v1075 = vpop.xlane.xlu0 %1074
    %1076 = vadd.xlane.f32.xlu0 %v829
    %v1077 = vpop.xlane.xlu0 %1076
    %1078 = vadd.xlane.f32.xlu0 %v830
    %v1079 = vpop.xlane.xlu0 %1078
    %1080 = vadd.xlane.f32.xlu0 %v831
    %v1081 = vpop.xlane.xlu0 %1080
    %1082 = vadd.xlane.f32.xlu0 %v832
    %v1083 = vpop.xlane.xlu0 %1082
    %1084 = vadd.xlane.f32.xlu0 %v833
    %v1085 = vpop.xlane.xlu0 %1084
    %1086 = vadd.xlane.f32.xlu0 %v834
    %v1087 = vpop.xlane.xlu0 %1086
    %1088 = vadd.xlane.f32.xlu0 %v835
    %v1089 = vpop.xlane.xlu0 %1088
    %1090 = vadd.xlane.f32.xlu0 %v836
    %v1091 = vpop.xlane.xlu0 %1090
    %1092 = vadd.xlane.f32.xlu0 %v837
    %v1093 = vpop.xlane.xlu0 %1092
    %v1094 = vld [vmem:[%s2] sm:$0x1]
    %v1096 = vperm.slane %v1094, 0
    %v1097 = vlaneseq
    %v1098 = vshrl.u32 %v1097, 7
    %1100 = vset.pattern.permute.xlu0 %v1098
    %1101 = vperm.xlu0 %1100, %v1096
    %v1102 = vpop.permute.xlu0 %1101
    %v1103 = vlaneseq
    %v1104 = vshrl.u32 %v1103, 7
    %v1105 = vadd.s32 %v1104, 8
    %1106 = vset.pattern.permute.xlu0 %v1105
    %1107 = vperm.xlu0 %1106, %v1096
    %v1108 = vpop.permute.xlu0 %1107
    %v1109 = vlaneseq
    %v1110 = vshrl.u32 %v1109, 7
    %v1111 = vadd.s32 %v1110, 16
    %1112 = vset.pattern.permute.xlu0 %v1111
    %1113 = vperm.xlu0 %1112, %v1096
    %v1114 = vpop.permute.xlu0 %1113
    %v1115 = vlaneseq
    %v1116 = vshrl.u32 %v1115, 7
    %v1117 = vadd.s32 %v1116, 24
    %1118 = vset.pattern.permute.xlu0 %v1117
    %1119 = vperm.xlu0 %1118, %v1096
    %v1120 = vpop.permute.xlu0 %1119
    %v1121 = vlaneseq
    %v1122 = vshrl.u32 %v1121, 7
    %v1123 = vadd.s32 %v1122, 32
    %1124 = vset.pattern.permute.xlu0 %v1123
    %1125 = vperm.xlu0 %1124, %v1096
    %v1126 = vpop.permute.xlu0 %1125
    %v1127 = vlaneseq
    %v1128 = vshrl.u32 %v1127, 7
    %v1129 = vadd.s32 %v1128, 40
    %1130 = vset.pattern.permute.xlu0 %v1129
    %1131 = vperm.xlu0 %1130, %v1096
    %v1132 = vpop.permute.xlu0 %1131
    %v1133 = vlaneseq
    %v1134 = vshrl.u32 %v1133, 7
    %v1135 = vadd.s32 %v1134, 48
    %1136 = vset.pattern.permute.xlu0 %v1135
    %1137 = vperm.xlu0 %1136, %v1096
    %v1138 = vpop.permute.xlu0 %1137
    %v1139 = vlaneseq
    %v1140 = vshrl.u32 %v1139, 7
    %v1141 = vadd.s32 %v1140, 56
    %1142 = vset.pattern.permute.xlu0 %v1141
    %1143 = vperm.xlu0 %1142, %v1096
    %v1144 = vpop.permute.xlu0 %1143
    %v1145 = vlaneseq
    %v1146 = vshrl.u32 %v1145, 7
    %v1147 = vadd.s32 %v1146, 64
    %1148 = vset.pattern.permute.xlu0 %v1147
    %1149 = vperm.xlu0 %1148, %v1096
    %v1150 = vpop.permute.xlu0 %1149
    %v1151 = vlaneseq
    %v1152 = vshrl.u32 %v1151, 7
    %v1153 = vadd.s32 %v1152, 72
    %1154 = vset.pattern.permute.xlu0 %v1153
    %1155 = vperm.xlu0 %1154, %v1096
    %v1156 = vpop.permute.xlu0 %1155
    %v1157 = vlaneseq
    %v1158 = vshrl.u32 %v1157, 7
    %v1159 = vadd.s32 %v1158, 80
    %1160 = vset.pattern.permute.xlu0 %v1159
    %1161 = vperm.xlu0 %1160, %v1096
    %v1162 = vpop.permute.xlu0 %1161
    %v1163 = vlaneseq
    %v1164 = vshrl.u32 %v1163, 7
    %v1165 = vadd.s32 %v1164, 88
    %1166 = vset.pattern.permute.xlu0 %v1165
    %1167 = vperm.xlu0 %1166, %v1096
    %v1168 = vpop.permute.xlu0 %1167
    %v1169 = vlaneseq
    %v1170 = vshrl.u32 %v1169, 7
    %v1171 = vadd.s32 %v1170, 96
    %1172 = vset.pattern.permute.xlu0 %v1171
    %1173 = vperm.xlu0 %1172, %v1096
    %v1174 = vpop.permute.xlu0 %1173
    %v1175 = vlaneseq
    %v1176 = vshrl.u32 %v1175, 7
    %v1177 = vadd.s32 %v1176, 104
    %1178 = vset.pattern.permute.xlu0 %v1177
    %1179 = vperm.xlu0 %1178, %v1096
    %v1180 = vpop.permute.xlu0 %1179
    %v1181 = vlaneseq
    %v1182 = vshrl.u32 %v1181, 7
    %v1183 = vadd.s32 %v1182, 112
    %1184 = vset.pattern.permute.xlu0 %v1183
    %1185 = vperm.xlu0 %1184, %v1096
    %v1186 = vpop.permute.xlu0 %1185
    %v1187 = vlaneseq
    %v1188 = vshrl.u32 %v1187, 7
    %v1189 = vadd.s32 %v1188, 120
    %1190 = vset.pattern.permute.xlu0 %v1189
    %1191 = vperm.xlu0 %1190, %v1096
    %v1192 = vpop.permute.xlu0 %1191
    %v1209 = vadd.f32 %v839, %v1102
    %v1210 = vadd.f32 %v841, %v1108
    %v1211 = vadd.f32 %v843, %v1114
    %v1212 = vadd.f32 %v845, %v1120
    %v1213 = vadd.f32 %v847, %v1126
    %v1214 = vadd.f32 %v849, %v1132
    %v1215 = vadd.f32 %v851, %v1138
    %v1216 = vadd.f32 %v853, %v1144
    %v1217 = vadd.f32 %v855, %v1150
    %v1218 = vadd.f32 %v857, %v1156
    %v1219 = vadd.f32 %v859, %v1162
    %v1220 = vadd.f32 %v861, %v1168
    %v1221 = vadd.f32 %v863, %v1174
    %v1222 = vadd.f32 %v865, %v1180
    %v1223 = vadd.f32 %v867, %v1186
    %v1224 = vadd.f32 %v869, %v1192
    %v1225 = vadd.f32 %v871, %v1102
    %v1226 = vadd.f32 %v873, %v1108
    %v1227 = vadd.f32 %v875, %v1114
    %v1228 = vadd.f32 %v877, %v1120
    %v1229 = vadd.f32 %v879, %v1126
    %v1230 = vadd.f32 %v881, %v1132
    %v1231 = vadd.f32 %v883, %v1138
    %v1232 = vadd.f32 %v885, %v1144
    %v1233 = vadd.f32 %v887, %v1150
    %v1234 = vadd.f32 %v889, %v1156
    %v1235 = vadd.f32 %v891, %v1162
    %v1236 = vadd.f32 %v893, %v1168
    %v1237 = vadd.f32 %v895, %v1174
    %v1238 = vadd.f32 %v897, %v1180
    %v1239 = vadd.f32 %v899, %v1186
    %v1240 = vadd.f32 %v901, %v1192
    %v1241 = vadd.f32 %v903, %v1102
    %v1242 = vadd.f32 %v905, %v1108
    %v1243 = vadd.f32 %v907, %v1114
    %v1244 = vadd.f32 %v909, %v1120
    %v1245 = vadd.f32 %v911, %v1126
    %v1246 = vadd.f32 %v913, %v1132
    %v1247 = vadd.f32 %v915, %v1138
    %v1248 = vadd.f32 %v917, %v1144
    %v1249 = vadd.f32 %v919, %v1150
    %v1250 = vadd.f32 %v921, %v1156
    %v1251 = vadd.f32 %v923, %v1162
    %v1252 = vadd.f32 %v925, %v1168
    %v1253 = vadd.f32 %v927, %v1174
    %v1254 = vadd.f32 %v929, %v1180
    %v1255 = vadd.f32 %v931, %v1186
    %v1256 = vadd.f32 %v933, %v1192
    %v1257 = vadd.f32 %v935, %v1102
    %v1258 = vadd.f32 %v937, %v1108
    %v1259 = vadd.f32 %v939, %v1114
    %v1260 = vadd.f32 %v941, %v1120
    %v1261 = vadd.f32 %v943, %v1126
    %v1262 = vadd.f32 %v945, %v1132
    %v1263 = vadd.f32 %v947, %v1138
    %v1264 = vadd.f32 %v949, %v1144
    %v1265 = vadd.f32 %v951, %v1150
    %v1266 = vadd.f32 %v953, %v1156
    %v1267 = vadd.f32 %v955, %v1162
    %v1268 = vadd.f32 %v957, %v1168
    %v1269 = vadd.f32 %v959, %v1174
    %v1270 = vadd.f32 %v961, %v1180
    %v1271 = vadd.f32 %v963, %v1186
    %v1272 = vadd.f32 %v965, %v1192
    %v1273 = vadd.f32 %v967, %v1102
    %v1274 = vadd.f32 %v969, %v1108
    %v1275 = vadd.f32 %v971, %v1114
    %v1276 = vadd.f32 %v973, %v1120
    %v1277 = vadd.f32 %v975, %v1126
    %v1278 = vadd.f32 %v977, %v1132
    %v1279 = vadd.f32 %v979, %v1138
    %v1280 = vadd.f32 %v981, %v1144
    %v1281 = vadd.f32 %v983, %v1150
    %v1282 = vadd.f32 %v985, %v1156
    %v1283 = vadd.f32 %v987, %v1162
    %v1284 = vadd.f32 %v989, %v1168
    %v1285 = vadd.f32 %v991, %v1174
    %v1286 = vadd.f32 %v993, %v1180
    %v1287 = vadd.f32 %v995, %v1186
    %v1288 = vadd.f32 %v997, %v1192
    %v1289 = vadd.f32 %v999, %v1102
    %v1290 = vadd.f32 %v1001, %v1108
    %v1291 = vadd.f32 %v1003, %v1114
    %v1292 = vadd.f32 %v1005, %v1120
    %v1293 = vadd.f32 %v1007, %v1126
    %v1294 = vadd.f32 %v1009, %v1132
    %v1295 = vadd.f32 %v1011, %v1138
    %v1296 = vadd.f32 %v1013, %v1144
    %v1297 = vadd.f32 %v1015, %v1150
    %v1298 = vadd.f32 %v1017, %v1156
    %v1299 = vadd.f32 %v1019, %v1162
    %v1300 = vadd.f32 %v1021, %v1168
    %v1301 = vadd.f32 %v1023, %v1174
    %v1302 = vadd.f32 %v1025, %v1180
    %v1303 = vadd.f32 %v1027, %v1186
    %v1304 = vadd.f32 %v1029, %v1192
    %v1305 = vadd.f32 %v1031, %v1102
    %v1306 = vadd.f32 %v1033, %v1108
    %v1307 = vadd.f32 %v1035, %v1114
    %v1308 = vadd.f32 %v1037, %v1120
    %v1309 = vadd.f32 %v1039, %v1126
    %v1310 = vadd.f32 %v1041, %v1132
    %v1311 = vadd.f32 %v1043, %v1138
    %v1312 = vadd.f32 %v1045, %v1144
    %v1313 = vadd.f32 %v1047, %v1150
    %v1314 = vadd.f32 %v1049, %v1156
    %v1315 = vadd.f32 %v1051, %v1162
    %v1316 = vadd.f32 %v1053, %v1168
    %v1317 = vadd.f32 %v1055, %v1174
    %v1318 = vadd.f32 %v1057, %v1180
    %v1319 = vadd.f32 %v1059, %v1186
    %v1320 = vadd.f32 %v1061, %v1192
    %v1321 = vadd.f32 %v1063, %v1102
    %v1322 = vadd.f32 %v1065, %v1108
    %v1323 = vadd.f32 %v1067, %v1114
    %v1324 = vadd.f32 %v1069, %v1120
    %v1325 = vadd.f32 %v1071, %v1126
    %v1326 = vadd.f32 %v1073, %v1132
    %v1327 = vadd.f32 %v1075, %v1138
    %v1328 = vadd.f32 %v1077, %v1144
    %v1329 = vadd.f32 %v1079, %v1150
    %v1330 = vadd.f32 %v1081, %v1156
    %v1331 = vadd.f32 %v1083, %v1162
    %v1332 = vadd.f32 %v1085, %v1168
    %v1333 = vadd.f32 %v1087, %v1174
    %v1334 = vadd.f32 %v1089, %v1180
    %v1335 = vadd.f32 %v1091, %v1186
    %v1336 = vadd.f32 %v1093, %v1192
    %1465 = vset.pattern.permute.xlu0 0
    %1466 = vperm.xlu0 %1465, %v1209
    %v1467 = vpop.permute.xlu0 %1466
    %1468 = vset.pattern.permute.xlu0 0
    %1469 = vperm.xlu0 %1468, %v1210
    %v1470 = vpop.permute.xlu0 %1469
    %1471 = vset.pattern.permute.xlu0 0
    %1472 = vperm.xlu0 %1471, %v1211
    %v1473 = vpop.permute.xlu0 %1472
    %1474 = vset.pattern.permute.xlu0 0
    %1475 = vperm.xlu0 %1474, %v1212
    %v1476 = vpop.permute.xlu0 %1475
    %1477 = vset.pattern.permute.xlu0 0
    %1478 = vperm.xlu0 %1477, %v1213
    %v1479 = vpop.permute.xlu0 %1478
    %1480 = vset.pattern.permute.xlu0 0
    %1481 = vperm.xlu0 %1480, %v1214
    %v1482 = vpop.permute.xlu0 %1481
    %1483 = vset.pattern.permute.xlu0 0
    %1484 = vperm.xlu0 %1483, %v1215
    %v1485 = vpop.permute.xlu0 %1484
    %1486 = vset.pattern.permute.xlu0 0
    %1487 = vperm.xlu0 %1486, %v1216
    %v1488 = vpop.permute.xlu0 %1487
    %1489 = vset.pattern.permute.xlu0 0
    %1490 = vperm.xlu0 %1489, %v1217
    %v1491 = vpop.permute.xlu0 %1490
    %1492 = vset.pattern.permute.xlu0 0
    %1493 = vperm.xlu0 %1492, %v1218
    %v1494 = vpop.permute.xlu0 %1493
    %1495 = vset.pattern.permute.xlu0 0
    %1496 = vperm.xlu0 %1495, %v1219
    %v1497 = vpop.permute.xlu0 %1496
    %1498 = vset.pattern.permute.xlu0 0
    %1499 = vperm.xlu0 %1498, %v1220
    %v1500 = vpop.permute.xlu0 %1499
    %1501 = vset.pattern.permute.xlu0 0
    %1502 = vperm.xlu0 %1501, %v1221
    %v1503 = vpop.permute.xlu0 %1502
    %1504 = vset.pattern.permute.xlu0 0
    %1505 = vperm.xlu0 %1504, %v1222
    %v1506 = vpop.permute.xlu0 %1505
    %1507 = vset.pattern.permute.xlu0 0
    %1508 = vperm.xlu0 %1507, %v1223
    %v1509 = vpop.permute.xlu0 %1508
    %1510 = vset.pattern.permute.xlu0 0
    %1511 = vperm.xlu0 %1510, %v1224
    %v1512 = vpop.permute.xlu0 %1511
    %1513 = vset.pattern.permute.xlu0 0
    %1514 = vperm.xlu0 %1513, %v1225
    %v1515 = vpop.permute.xlu0 %1514
    %1516 = vset.pattern.permute.xlu0 0
    %1517 = vperm.xlu0 %1516, %v1226
    %v1518 = vpop.permute.xlu0 %1517
    %1519 = vset.pattern.permute.xlu0 0
    %1520 = vperm.xlu0 %1519, %v1227
    %v1521 = vpop.permute.xlu0 %1520
    %1522 = vset.pattern.permute.xlu0 0
    %1523 = vperm.xlu0 %1522, %v1228
    %v1524 = vpop.permute.xlu0 %1523
    %1525 = vset.pattern.permute.xlu0 0
    %1526 = vperm.xlu0 %1525, %v1229
    %v1527 = vpop.permute.xlu0 %1526
    %1528 = vset.pattern.permute.xlu0 0
    %1529 = vperm.xlu0 %1528, %v1230
    %v1530 = vpop.permute.xlu0 %1529
    %1531 = vset.pattern.permute.xlu0 0
    %1532 = vperm.xlu0 %1531, %v1231
    %v1533 = vpop.permute.xlu0 %1532
    %1534 = vset.pattern.permute.xlu0 0
    %1535 = vperm.xlu0 %1534, %v1232
    %v1536 = vpop.permute.xlu0 %1535
    %1537 = vset.pattern.permute.xlu0 0
    %1538 = vperm.xlu0 %1537, %v1233
    %v1539 = vpop.permute.xlu0 %1538
    %1540 = vset.pattern.permute.xlu0 0
    %1541 = vperm.xlu0 %1540, %v1234
    %v1542 = vpop.permute.xlu0 %1541
    %1543 = vset.pattern.permute.xlu0 0
    %1544 = vperm.xlu0 %1543, %v1235
    %v1545 = vpop.permute.xlu0 %1544
    %1546 = vset.pattern.permute.xlu0 0
    %1547 = vperm.xlu0 %1546, %v1236
    %v1548 = vpop.permute.xlu0 %1547
    %1549 = vset.pattern.permute.xlu0 0
    %1550 = vperm.xlu0 %1549, %v1237
    %v1551 = vpop.permute.xlu0 %1550
    %1552 = vset.pattern.permute.xlu0 0
    %1553 = vperm.xlu0 %1552, %v1238
    %v1554 = vpop.permute.xlu0 %1553
    %1555 = vset.pattern.permute.xlu0 0
    %1556 = vperm.xlu0 %1555, %v1239
    %v1557 = vpop.permute.xlu0 %1556
    %1558 = vset.pattern.permute.xlu0 0
    %1559 = vperm.xlu0 %1558, %v1240
    %v1560 = vpop.permute.xlu0 %1559
    %1561 = vset.pattern.permute.xlu0 0
    %1562 = vperm.xlu0 %1561, %v1241
    %v1563 = vpop.permute.xlu0 %1562
    %1564 = vset.pattern.permute.xlu0 0
    %1565 = vperm.xlu0 %1564, %v1242
    %v1566 = vpop.permute.xlu0 %1565
    %1567 = vset.pattern.permute.xlu0 0
    %1568 = vperm.xlu0 %1567, %v1243
    %v1569 = vpop.permute.xlu0 %1568
    %1570 = vset.pattern.permute.xlu0 0
    %1571 = vperm.xlu0 %1570, %v1244
    %v1572 = vpop.permute.xlu0 %1571
    %1573 = vset.pattern.permute.xlu0 0
    %1574 = vperm.xlu0 %1573, %v1245
    %v1575 = vpop.permute.xlu0 %1574
    %1576 = vset.pattern.permute.xlu0 0
    %1577 = vperm.xlu0 %1576, %v1246
    %v1578 = vpop.permute.xlu0 %1577
    %1579 = vset.pattern.permute.xlu0 0
    %1580 = vperm.xlu0 %1579, %v1247
    %v1581 = vpop.permute.xlu0 %1580
    %1582 = vset.pattern.permute.xlu0 0
    %1583 = vperm.xlu0 %1582, %v1248
    %v1584 = vpop.permute.xlu0 %1583
    %1585 = vset.pattern.permute.xlu0 0
    %1586 = vperm.xlu0 %1585, %v1249
    %v1587 = vpop.permute.xlu0 %1586
    %1588 = vset.pattern.permute.xlu0 0
    %1589 = vperm.xlu0 %1588, %v1250
    %v1590 = vpop.permute.xlu0 %1589
    %1591 = vset.pattern.permute.xlu0 0
    %1592 = vperm.xlu0 %1591, %v1251
    %v1593 = vpop.permute.xlu0 %1592
    %1594 = vset.pattern.permute.xlu0 0
    %1595 = vperm.xlu0 %1594, %v1252
    %v1596 = vpop.permute.xlu0 %1595
    %1597 = vset.pattern.permute.xlu0 0
    %1598 = vperm.xlu0 %1597, %v1253
    %v1599 = vpop.permute.xlu0 %1598
    %1600 = vset.pattern.permute.xlu0 0
    %1601 = vperm.xlu0 %1600, %v1254
    %v1602 = vpop.permute.xlu0 %1601
    %1603 = vset.pattern.permute.xlu0 0
    %1604 = vperm.xlu0 %1603, %v1255
    %v1605 = vpop.permute.xlu0 %1604
    %1606 = vset.pattern.permute.xlu0 0
    %1607 = vperm.xlu0 %1606, %v1256
    %v1608 = vpop.permute.xlu0 %1607
    %1609 = vset.pattern.permute.xlu0 0
    %1610 = vperm.xlu0 %1609, %v1257
    %v1611 = vpop.permute.xlu0 %1610
    %1612 = vset.pattern.permute.xlu0 0
    %1613 = vperm.xlu0 %1612, %v1258
    %v1614 = vpop.permute.xlu0 %1613
    %1615 = vset.pattern.permute.xlu0 0
    %1616 = vperm.xlu0 %1615, %v1259
    %v1617 = vpop.permute.xlu0 %1616
    %1618 = vset.pattern.permute.xlu0 0
    %1619 = vperm.xlu0 %1618, %v1260
    %v1620 = vpop.permute.xlu0 %1619
    %1621 = vset.pattern.permute.xlu0 0
    %1622 = vperm.xlu0 %1621, %v1261
    %v1623 = vpop.permute.xlu0 %1622
    %1624 = vset.pattern.permute.xlu0 0
    %1625 = vperm.xlu0 %1624, %v1262
    %v1626 = vpop.permute.xlu0 %1625
    %1627 = vset.pattern.permute.xlu0 0
    %1628 = vperm.xlu0 %1627, %v1263
    %v1629 = vpop.permute.xlu0 %1628
    %1630 = vset.pattern.permute.xlu0 0
    %1631 = vperm.xlu0 %1630, %v1264
    %v1632 = vpop.permute.xlu0 %1631
    %1633 = vset.pattern.permute.xlu0 0
    %1634 = vperm.xlu0 %1633, %v1265
    %v1635 = vpop.permute.xlu0 %1634
    %1636 = vset.pattern.permute.xlu0 0
    %1637 = vperm.xlu0 %1636, %v1266
    %v1638 = vpop.permute.xlu0 %1637
    %1639 = vset.pattern.permute.xlu0 0
    %1640 = vperm.xlu0 %1639, %v1267
    %v1641 = vpop.permute.xlu0 %1640
    %1642 = vset.pattern.permute.xlu0 0
    %1643 = vperm.xlu0 %1642, %v1268
    %v1644 = vpop.permute.xlu0 %1643
    %1645 = vset.pattern.permute.xlu0 0
    %1646 = vperm.xlu0 %1645, %v1269
    %v1647 = vpop.permute.xlu0 %1646
    %1648 = vset.pattern.permute.xlu0 0
    %1649 = vperm.xlu0 %1648, %v1270
    %v1650 = vpop.permute.xlu0 %1649
    %1651 = vset.pattern.permute.xlu0 0
    %1652 = vperm.xlu0 %1651, %v1271
    %v1653 = vpop.permute.xlu0 %1652
    %1654 = vset.pattern.permute.xlu0 0
    %1655 = vperm.xlu0 %1654, %v1272
    %v1656 = vpop.permute.xlu0 %1655
    %1657 = vset.pattern.permute.xlu0 0
    %1658 = vperm.xlu0 %1657, %v1273
    %v1659 = vpop.permute.xlu0 %1658
    %1660 = vset.pattern.permute.xlu0 0
    %1661 = vperm.xlu0 %1660, %v1274
    %v1662 = vpop.permute.xlu0 %1661
    %1663 = vset.pattern.permute.xlu0 0
    %1664 = vperm.xlu0 %1663, %v1275
    %v1665 = vpop.permute.xlu0 %1664
    %1666 = vset.pattern.permute.xlu0 0
    %1667 = vperm.xlu0 %1666, %v1276
    %v1668 = vpop.permute.xlu0 %1667
    %1669 = vset.pattern.permute.xlu0 0
    %1670 = vperm.xlu0 %1669, %v1277
    %v1671 = vpop.permute.xlu0 %1670
    %1672 = vset.pattern.permute.xlu0 0
    %1673 = vperm.xlu0 %1672, %v1278
    %v1674 = vpop.permute.xlu0 %1673
    %1675 = vset.pattern.permute.xlu0 0
    %1676 = vperm.xlu0 %1675, %v1279
    %v1677 = vpop.permute.xlu0 %1676
    %1678 = vset.pattern.permute.xlu0 0
    %1679 = vperm.xlu0 %1678, %v1280
    %v1680 = vpop.permute.xlu0 %1679
    %1681 = vset.pattern.permute.xlu0 0
    %1682 = vperm.xlu0 %1681, %v1281
    %v1683 = vpop.permute.xlu0 %1682
    %1684 = vset.pattern.permute.xlu0 0
    %1685 = vperm.xlu0 %1684, %v1282
    %v1686 = vpop.permute.xlu0 %1685
    %1687 = vset.pattern.permute.xlu0 0
    %1688 = vperm.xlu0 %1687, %v1283
    %v1689 = vpop.permute.xlu0 %1688
    %1690 = vset.pattern.permute.xlu0 0
    %1691 = vperm.xlu0 %1690, %v1284
    %v1692 = vpop.permute.xlu0 %1691
    %1693 = vset.pattern.permute.xlu0 0
    %1694 = vperm.xlu0 %1693, %v1285
    %v1695 = vpop.permute.xlu0 %1694
    %1696 = vset.pattern.permute.xlu0 0
    %1697 = vperm.xlu0 %1696, %v1286
    %v1698 = vpop.permute.xlu0 %1697
    %1699 = vset.pattern.permute.xlu0 0
    %1700 = vperm.xlu0 %1699, %v1287
    %v1701 = vpop.permute.xlu0 %1700
    %1702 = vset.pattern.permute.xlu0 0
    %1703 = vperm.xlu0 %1702, %v1288
    %v1704 = vpop.permute.xlu0 %1703
    %1705 = vset.pattern.permute.xlu0 0
    %1706 = vperm.xlu0 %1705, %v1289
    %v1707 = vpop.permute.xlu0 %1706
    %1708 = vset.pattern.permute.xlu0 0
    %1709 = vperm.xlu0 %1708, %v1290
    %v1710 = vpop.permute.xlu0 %1709
    %1711 = vset.pattern.permute.xlu0 0
    %1712 = vperm.xlu0 %1711, %v1291
    %v1713 = vpop.permute.xlu0 %1712
    %1714 = vset.pattern.permute.xlu0 0
    %1715 = vperm.xlu0 %1714, %v1292
    %v1716 = vpop.permute.xlu0 %1715
    %1717 = vset.pattern.permute.xlu0 0
    %1718 = vperm.xlu0 %1717, %v1293
    %v1719 = vpop.permute.xlu0 %1718
    %1720 = vset.pattern.permute.xlu0 0
    %1721 = vperm.xlu0 %1720, %v1294
    %v1722 = vpop.permute.xlu0 %1721
    %1723 = vset.pattern.permute.xlu0 0
    %1724 = vperm.xlu0 %1723, %v1295
    %v1725 = vpop.permute.xlu0 %1724
    %1726 = vset.pattern.permute.xlu0 0
    %1727 = vperm.xlu0 %1726, %v1296
    %v1728 = vpop.permute.xlu0 %1727
    %1729 = vset.pattern.permute.xlu0 0
    %1730 = vperm.xlu0 %1729, %v1297
    %v1731 = vpop.permute.xlu0 %1730
    %1732 = vset.pattern.permute.xlu0 0
    %1733 = vperm.xlu0 %1732, %v1298
    %v1734 = vpop.permute.xlu0 %1733
    %1735 = vset.pattern.permute.xlu0 0
    %1736 = vperm.xlu0 %1735, %v1299
    %v1737 = vpop.permute.xlu0 %1736
    %1738 = vset.pattern.permute.xlu0 0
    %1739 = vperm.xlu0 %1738, %v1300
    %v1740 = vpop.permute.xlu0 %1739
    %1741 = vset.pattern.permute.xlu0 0
    %1742 = vperm.xlu0 %1741, %v1301
    %v1743 = vpop.permute.xlu0 %1742
    %1744 = vset.pattern.permute.xlu0 0
    %1745 = vperm.xlu0 %1744, %v1302
    %v1746 = vpop.permute.xlu0 %1745
    %1747 = vset.pattern.permute.xlu0 0
    %1748 = vperm.xlu0 %1747, %v1303
    %v1749 = vpop.permute.xlu0 %1748
    %1750 = vset.pattern.permute.xlu0 0
    %1751 = vperm.xlu0 %1750, %v1304
    %v1752 = vpop.permute.xlu0 %1751
    %1753 = vset.pattern.permute.xlu0 0
    %1754 = vperm.xlu0 %1753, %v1305
    %v1755 = vpop.permute.xlu0 %1754
    %1756 = vset.pattern.permute.xlu0 0
    %1757 = vperm.xlu0 %1756, %v1306
    %v1758 = vpop.permute.xlu0 %1757
    %1759 = vset.pattern.permute.xlu0 0
    %1760 = vperm.xlu0 %1759, %v1307
    %v1761 = vpop.permute.xlu0 %1760
    %1762 = vset.pattern.permute.xlu0 0
    %1763 = vperm.xlu0 %1762, %v1308
    %v1764 = vpop.permute.xlu0 %1763
    %1765 = vset.pattern.permute.xlu0 0
    %1766 = vperm.xlu0 %1765, %v1309
    %v1767 = vpop.permute.xlu0 %1766
    %1768 = vset.pattern.permute.xlu0 0
    %1769 = vperm.xlu0 %1768, %v1310
    %v1770 = vpop.permute.xlu0 %1769
    %1771 = vset.pattern.permute.xlu0 0
    %1772 = vperm.xlu0 %1771, %v1311
    %v1773 = vpop.permute.xlu0 %1772
    %1774 = vset.pattern.permute.xlu0 0
    %1775 = vperm.xlu0 %1774, %v1312
    %v1776 = vpop.permute.xlu0 %1775
    %1777 = vset.pattern.permute.xlu0 0
    %1778 = vperm.xlu0 %1777, %v1313
    %v1779 = vpop.permute.xlu0 %1778
    %1780 = vset.pattern.permute.xlu0 0
    %1781 = vperm.xlu0 %1780, %v1314
    %v1782 = vpop.permute.xlu0 %1781
    %1783 = vset.pattern.permute.xlu0 0
    %1784 = vperm.xlu0 %1783, %v1315
    %v1785 = vpop.permute.xlu0 %1784
    %1786 = vset.pattern.permute.xlu0 0
    %1787 = vperm.xlu0 %1786, %v1316
    %v1788 = vpop.permute.xlu0 %1787
    %1789 = vset.pattern.permute.xlu0 0
    %1790 = vperm.xlu0 %1789, %v1317
    %v1791 = vpop.permute.xlu0 %1790
    %1792 = vset.pattern.permute.xlu0 0
    %1793 = vperm.xlu0 %1792, %v1318
    %v1794 = vpop.permute.xlu0 %1793
    %1795 = vset.pattern.permute.xlu0 0
    %1796 = vperm.xlu0 %1795, %v1319
    %v1797 = vpop.permute.xlu0 %1796
    %1798 = vset.pattern.permute.xlu0 0
    %1799 = vperm.xlu0 %1798, %v1320
    %v1800 = vpop.permute.xlu0 %1799
    %1801 = vset.pattern.permute.xlu0 0
    %1802 = vperm.xlu0 %1801, %v1321
    %v1803 = vpop.permute.xlu0 %1802
    %1804 = vset.pattern.permute.xlu0 0
    %1805 = vperm.xlu0 %1804, %v1322
    %v1806 = vpop.permute.xlu0 %1805
    %1807 = vset.pattern.permute.xlu0 0
    %1808 = vperm.xlu0 %1807, %v1323
    %v1809 = vpop.permute.xlu0 %1808
    %1810 = vset.pattern.permute.xlu0 0
    %1811 = vperm.xlu0 %1810, %v1324
    %v1812 = vpop.permute.xlu0 %1811
    %1813 = vset.pattern.permute.xlu0 0
    %1814 = vperm.xlu0 %1813, %v1325
    %v1815 = vpop.permute.xlu0 %1814
    %1816 = vset.pattern.permute.xlu0 0
    %1817 = vperm.xlu0 %1816, %v1326
    %v1818 = vpop.permute.xlu0 %1817
    %1819 = vset.pattern.permute.xlu0 0
    %1820 = vperm.xlu0 %1819, %v1327
    %v1821 = vpop.permute.xlu0 %1820
    %1822 = vset.pattern.permute.xlu0 0
    %1823 = vperm.xlu0 %1822, %v1328
    %v1824 = vpop.permute.xlu0 %1823
    %1825 = vset.pattern.permute.xlu0 0
    %1826 = vperm.xlu0 %1825, %v1329
    %v1827 = vpop.permute.xlu0 %1826
    %1828 = vset.pattern.permute.xlu0 0
    %1829 = vperm.xlu0 %1828, %v1330
    %v1830 = vpop.permute.xlu0 %1829
    %1831 = vset.pattern.permute.xlu0 0
    %1832 = vperm.xlu0 %1831, %v1331
    %v1833 = vpop.permute.xlu0 %1832
    %1834 = vset.pattern.permute.xlu0 0
    %1835 = vperm.xlu0 %1834, %v1332
    %v1836 = vpop.permute.xlu0 %1835
    %1837 = vset.pattern.permute.xlu0 0
    %1838 = vperm.xlu0 %1837, %v1333
    %v1839 = vpop.permute.xlu0 %1838
    %1840 = vset.pattern.permute.xlu0 0
    %1841 = vperm.xlu0 %1840, %v1334
    %v1842 = vpop.permute.xlu0 %1841
    %1843 = vset.pattern.permute.xlu0 0
    %1844 = vperm.xlu0 %1843, %v1335
    %v1845 = vpop.permute.xlu0 %1844
    %1846 = vset.pattern.permute.xlu0 0
    %1847 = vperm.xlu0 %1846, %v1336
    %v1848 = vpop.permute.xlu0 %1847
    %v1849 = vlaneseq
    %v1850 = vand.u32 %v1849, 127
    %v1851 = vperm.slane %v1467, %v1850
    %v1852 = vadd.s32 %v1850, 4294967288
    %v1853 = vperm.slane %v1470, %v1852
    %vm1854 = vcmask 130112
    %v1855 = vsel %vm1854, %v1853, %v1851
    %v1856 = vadd.s32 %v1850, 4294967280
    %v1857 = vperm.slane %v1473, %v1856
    %vm1858 = vcmask 195712
    %v1859 = vsel %vm1858, %v1857, %v1855
    %v1860 = vadd.s32 %v1850, 4294967272
    %v1861 = vperm.slane %v1476, %v1860
    %vm1862 = vcmask 261312
    %v1863 = vsel %vm1862, %v1861, %v1859
    %v1864 = vadd.s32 %v1850, 4294967264
    %v1865 = vperm.slane %v1479, %v1864
    %vm1866 = vcmask 326912
    %v1867 = vsel %vm1866, %v1865, %v1863
    %v1868 = vadd.s32 %v1850, 4294967256
    %v1869 = vperm.slane %v1482, %v1868
    %vm1870 = vcmask 392512
    %v1871 = vsel %vm1870, %v1869, %v1867
    %v1872 = vadd.s32 %v1850, 4294967248
    %v1873 = vperm.slane %v1485, %v1872
    %vm1874 = vcmask 458112
    %v1875 = vsel %vm1874, %v1873, %v1871
    %v1876 = vadd.s32 %v1850, 4294967240
    %v1877 = vperm.slane %v1488, %v1876
    %vm1878 = vcmask 523712
    %v1879 = vsel %vm1878, %v1877, %v1875
    %v1880 = vadd.s32 %v1850, 4294967232
    %v1881 = vperm.slane %v1491, %v1880
    %vm1882 = vcmask 589312
    %v1883 = vsel %vm1882, %v1881, %v1879
    %v1884 = vadd.s32 %v1850, 4294967224
    %v1885 = vperm.slane %v1494, %v1884
    %vm1886 = vcmask 654912
    %v1887 = vsel %vm1886, %v1885, %v1883
    %v1888 = vadd.s32 %v1850, 4294967216
    %v1889 = vperm.slane %v1497, %v1888
    %vm1890 = vcmask 720512
    %v1891 = vsel %vm1890, %v1889, %v1887
    %v1892 = vadd.s32 %v1850, 4294967208
    %v1893 = vperm.slane %v1500, %v1892
    %vm1894 = vcmask 786112
    %v1895 = vsel %vm1894, %v1893, %v1891
    %v1896 = vadd.s32 %v1850, 4294967200
    %v1897 = vperm.slane %v1503, %v1896
    %vm1898 = vcmask 851712
    %v1899 = vsel %vm1898, %v1897, %v1895
    %v1900 = vadd.s32 %v1850, 4294967192
    %v1901 = vperm.slane %v1506, %v1900
    %vm1902 = vcmask 917312
    %v1903 = vsel %vm1902, %v1901, %v1899
    %v1904 = vadd.s32 %v1850, 4294967184
    %v1905 = vperm.slane %v1509, %v1904
    %vm1906 = vcmask 982912
    %v1907 = vsel %vm1906, %v1905, %v1903
    %v1908 = vadd.s32 %v1850, 4294967176
    %v1909 = vperm.slane %v1512, %v1908
    %vm1910 = vcmask 1048512
    %v1911 = vsel %vm1910, %v1909, %v1907
    %v1912 = vperm.slane %v1515, %v1850
    %v1913 = vperm.slane %v1518, %v1852
    %v1914 = vsel %vm1854, %v1913, %v1912
    %v1915 = vperm.slane %v1521, %v1856
    %v1916 = vsel %vm1858, %v1915, %v1914
    %v1917 = vperm.slane %v1524, %v1860
    %v1918 = vsel %vm1862, %v1917, %v1916
    %v1919 = vperm.slane %v1527, %v1864
    %v1920 = vsel %vm1866, %v1919, %v1918
    %v1921 = vperm.slane %v1530, %v1868
    %v1922 = vsel %vm1870, %v1921, %v1920
    %v1923 = vperm.slane %v1533, %v1872
    %v1924 = vsel %vm1874, %v1923, %v1922
    %v1925 = vperm.slane %v1536, %v1876
    %v1926 = vsel %vm1878, %v1925, %v1924
    %v1927 = vperm.slane %v1539, %v1880
    %v1928 = vsel %vm1882, %v1927, %v1926
    %v1929 = vperm.slane %v1542, %v1884
    %v1930 = vsel %vm1886, %v1929, %v1928
    %v1931 = vperm.slane %v1545, %v1888
    %v1932 = vsel %vm1890, %v1931, %v1930
    %v1933 = vperm.slane %v1548, %v1892
    %v1934 = vsel %vm1894, %v1933, %v1932
    %v1935 = vperm.slane %v1551, %v1896
    %v1936 = vsel %vm1898, %v1935, %v1934
    %v1937 = vperm.slane %v1554, %v1900
    %v1938 = vsel %vm1902, %v1937, %v1936
    %v1939 = vperm.slane %v1557, %v1904
    %v1940 = vsel %vm1906, %v1939, %v1938
    %v1941 = vperm.slane %v1560, %v1908
    %v1942 = vsel %vm1910, %v1941, %v1940
    %v1943 = vperm.slane %v1563, %v1850
    %v1944 = vperm.slane %v1566, %v1852
    %v1945 = vsel %vm1854, %v1944, %v1943
    %v1946 = vperm.slane %v1569, %v1856
    %v1947 = vsel %vm1858, %v1946, %v1945
    %v1948 = vperm.slane %v1572, %v1860
    %v1949 = vsel %vm1862, %v1948, %v1947
    %v1950 = vperm.slane %v1575, %v1864
    %v1951 = vsel %vm1866, %v1950, %v1949
    %v1952 = vperm.slane %v1578, %v1868
    %v1953 = vsel %vm1870, %v1952, %v1951
    %v1954 = vperm.slane %v1581, %v1872
    %v1955 = vsel %vm1874, %v1954, %v1953
    %v1956 = vperm.slane %v1584, %v1876
    %v1957 = vsel %vm1878, %v1956, %v1955
    %v1958 = vperm.slane %v1587, %v1880
    %v1959 = vsel %vm1882, %v1958, %v1957
    %v1960 = vperm.slane %v1590, %v1884
    %v1961 = vsel %vm1886, %v1960, %v1959
    %v1962 = vperm.slane %v1593, %v1888
    %v1963 = vsel %vm1890, %v1962, %v1961
    %v1964 = vperm.slane %v1596, %v1892
    %v1965 = vsel %vm1894, %v1964, %v1963
    %v1966 = vperm.slane %v1599, %v1896
    %v1967 = vsel %vm1898, %v1966, %v1965
    %v1968 = vperm.slane %v1602, %v1900
    %v1969 = vsel %vm1902, %v1968, %v1967
    %v1970 = vperm.slane %v1605, %v1904
    %v1971 = vsel %vm1906, %v1970, %v1969
    %v1972 = vperm.slane %v1608, %v1908
    %v1973 = vsel %vm1910, %v1972, %v1971
    %v1974 = vperm.slane %v1611, %v1850
    %v1975 = vperm.slane %v1614, %v1852
    %v1976 = vsel %vm1854, %v1975, %v1974
    %v1977 = vperm.slane %v1617, %v1856
    %v1978 = vsel %vm1858, %v1977, %v1976
    %v1979 = vperm.slane %v1620, %v1860
    %v1980 = vsel %vm1862, %v1979, %v1978
    %v1981 = vperm.slane %v1623, %v1864
    %v1982 = vsel %vm1866, %v1981, %v1980
    %v1983 = vperm.slane %v1626, %v1868
    %v1984 = vsel %vm1870, %v1983, %v1982
    %v1985 = vperm.slane %v1629, %v1872
    %v1986 = vsel %vm1874, %v1985, %v1984
    %v1987 = vperm.slane %v1632, %v1876
    %v1988 = vsel %vm1878, %v1987, %v1986
    %v1989 = vperm.slane %v1635, %v1880
    %v1990 = vsel %vm1882, %v1989, %v1988
    %v1991 = vperm.slane %v1638, %v1884
    %v1992 = vsel %vm1886, %v1991, %v1990
    %v1993 = vperm.slane %v1641, %v1888
    %v1994 = vsel %vm1890, %v1993, %v1992
    %v1995 = vperm.slane %v1644, %v1892
    %v1996 = vsel %vm1894, %v1995, %v1994
    %v1997 = vperm.slane %v1647, %v1896
    %v1998 = vsel %vm1898, %v1997, %v1996
    %v1999 = vperm.slane %v1650, %v1900
    %v2000 = vsel %vm1902, %v1999, %v1998
    %v2001 = vperm.slane %v1653, %v1904
    %v2002 = vsel %vm1906, %v2001, %v2000
    %v2003 = vperm.slane %v1656, %v1908
    %v2004 = vsel %vm1910, %v2003, %v2002
    %v2005 = vperm.slane %v1659, %v1850
    %v2006 = vperm.slane %v1662, %v1852
    %v2007 = vsel %vm1854, %v2006, %v2005
    %v2008 = vperm.slane %v1665, %v1856
    %v2009 = vsel %vm1858, %v2008, %v2007
    %v2010 = vperm.slane %v1668, %v1860
    %v2011 = vsel %vm1862, %v2010, %v2009
    %v2012 = vperm.slane %v1671, %v1864
    %v2013 = vsel %vm1866, %v2012, %v2011
    %v2014 = vperm.slane %v1674, %v1868
    %v2015 = vsel %vm1870, %v2014, %v2013
    %v2016 = vperm.slane %v1677, %v1872
    %v2017 = vsel %vm1874, %v2016, %v2015
    %v2018 = vperm.slane %v1680, %v1876
    %v2019 = vsel %vm1878, %v2018, %v2017
    %v2020 = vperm.slane %v1683, %v1880
    %v2021 = vsel %vm1882, %v2020, %v2019
    %v2022 = vperm.slane %v1686, %v1884
    %v2023 = vsel %vm1886, %v2022, %v2021
    %v2024 = vperm.slane %v1689, %v1888
    %v2025 = vsel %vm1890, %v2024, %v2023
    %v2026 = vperm.slane %v1692, %v1892
    %v2027 = vsel %vm1894, %v2026, %v2025
    %v2028 = vperm.slane %v1695, %v1896
    %v2029 = vsel %vm1898, %v2028, %v2027
    %v2030 = vperm.slane %v1698, %v1900
    %v2031 = vsel %vm1902, %v2030, %v2029
    %v2032 = vperm.slane %v1701, %v1904
    %v2033 = vsel %vm1906, %v2032, %v2031
    %v2034 = vperm.slane %v1704, %v1908
    %v2035 = vsel %vm1910, %v2034, %v2033
    %v2036 = vperm.slane %v1707, %v1850
    %v2037 = vperm.slane %v1710, %v1852
    %v2038 = vsel %vm1854, %v2037, %v2036
    %v2039 = vperm.slane %v1713, %v1856
    %v2040 = vsel %vm1858, %v2039, %v2038
    %v2041 = vperm.slane %v1716, %v1860
    %v2042 = vsel %vm1862, %v2041, %v2040
    %v2043 = vperm.slane %v1719, %v1864
    %v2044 = vsel %vm1866, %v2043, %v2042
    %v2045 = vperm.slane %v1722, %v1868
    %v2046 = vsel %vm1870, %v2045, %v2044
    %v2047 = vperm.slane %v1725, %v1872
    %v2048 = vsel %vm1874, %v2047, %v2046
    %v2049 = vperm.slane %v1728, %v1876
    %v2050 = vsel %vm1878, %v2049, %v2048
    %v2051 = vperm.slane %v1731, %v1880
    %v2052 = vsel %vm1882, %v2051, %v2050
    %v2053 = vperm.slane %v1734, %v1884
    %v2054 = vsel %vm1886, %v2053, %v2052
    %v2055 = vperm.slane %v1737, %v1888
    %v2056 = vsel %vm1890, %v2055, %v2054
    %v2057 = vperm.slane %v1740, %v1892
    %v2058 = vsel %vm1894, %v2057, %v2056
    %v2059 = vperm.slane %v1743, %v1896
    %v2060 = vsel %vm1898, %v2059, %v2058
    %v2061 = vperm.slane %v1746, %v1900
    %v2062 = vsel %vm1902, %v2061, %v2060
    %v2063 = vperm.slane %v1749, %v1904
    %v2064 = vsel %vm1906, %v2063, %v2062
    %v2065 = vperm.slane %v1752, %v1908
    %v2066 = vsel %vm1910, %v2065, %v2064
    %v2067 = vperm.slane %v1755, %v1850
    %v2068 = vperm.slane %v1758, %v1852
    %v2069 = vsel %vm1854, %v2068, %v2067
    %v2070 = vperm.slane %v1761, %v1856
    %v2071 = vsel %vm1858, %v2070, %v2069
    %v2072 = vperm.slane %v1764, %v1860
    %v2073 = vsel %vm1862, %v2072, %v2071
    %v2074 = vperm.slane %v1767, %v1864
    %v2075 = vsel %vm1866, %v2074, %v2073
    %v2076 = vperm.slane %v1770, %v1868
    %v2077 = vsel %vm1870, %v2076, %v2075
    %v2078 = vperm.slane %v1773, %v1872
    %v2079 = vsel %vm1874, %v2078, %v2077
    %v2080 = vperm.slane %v1776, %v1876
    %v2081 = vsel %vm1878, %v2080, %v2079
    %v2082 = vperm.slane %v1779, %v1880
    %v2083 = vsel %vm1882, %v2082, %v2081
    %v2084 = vperm.slane %v1782, %v1884
    %v2085 = vsel %vm1886, %v2084, %v2083
    %v2086 = vperm.slane %v1785, %v1888
    %v2087 = vsel %vm1890, %v2086, %v2085
    %v2088 = vperm.slane %v1788, %v1892
    %v2089 = vsel %vm1894, %v2088, %v2087
    %v2090 = vperm.slane %v1791, %v1896
    %v2091 = vsel %vm1898, %v2090, %v2089
    %v2092 = vperm.slane %v1794, %v1900
    %v2093 = vsel %vm1902, %v2092, %v2091
    %v2094 = vperm.slane %v1797, %v1904
    %v2095 = vsel %vm1906, %v2094, %v2093
    %v2096 = vperm.slane %v1800, %v1908
    %v2097 = vsel %vm1910, %v2096, %v2095
    %v2098 = vperm.slane %v1803, %v1850
    %v2099 = vperm.slane %v1806, %v1852
    %v2100 = vsel %vm1854, %v2099, %v2098
    %v2101 = vperm.slane %v1809, %v1856
    %v2102 = vsel %vm1858, %v2101, %v2100
    %v2103 = vperm.slane %v1812, %v1860
    %v2104 = vsel %vm1862, %v2103, %v2102
    %v2105 = vperm.slane %v1815, %v1864
    %v2106 = vsel %vm1866, %v2105, %v2104
    %v2107 = vperm.slane %v1818, %v1868
    %v2108 = vsel %vm1870, %v2107, %v2106
    %v2109 = vperm.slane %v1821, %v1872
    %v2110 = vsel %vm1874, %v2109, %v2108
    %v2111 = vperm.slane %v1824, %v1876
    %v2112 = vsel %vm1878, %v2111, %v2110
    %v2113 = vperm.slane %v1827, %v1880
    %v2114 = vsel %vm1882, %v2113, %v2112
    %v2115 = vperm.slane %v1830, %v1884
    %v2116 = vsel %vm1886, %v2115, %v2114
    %v2117 = vperm.slane %v1833, %v1888
    %v2118 = vsel %vm1890, %v2117, %v2116
    %v2119 = vperm.slane %v1836, %v1892
    %v2120 = vsel %vm1894, %v2119, %v2118
    %v2121 = vperm.slane %v1839, %v1896
    %v2122 = vsel %vm1898, %v2121, %v2120
    %v2123 = vperm.slane %v1842, %v1900
    %v2124 = vsel %vm1902, %v2123, %v2122
    %v2125 = vperm.slane %v1845, %v1904
    %v2126 = vsel %vm1906, %v2125, %v2124
    %v2127 = vperm.slane %v1848, %v1908
    %v2128 = vsel %vm1910, %v2127, %v2126
    %vm2129 = vcmask 1041409
    %v2130 = vsel %vm2129, %v1942, %v1911
    %vm2131 = vcmask 1042434
    %v2132 = vsel %vm2131, %v1973, %v2130
    %vm2133 = vcmask 1043459
    %v2134 = vsel %vm2133, %v2004, %v2132
    %vm2135 = vcmask 1044484
    %v2136 = vsel %vm2135, %v2035, %v2134
    %vm2137 = vcmask 1045509
    %v2138 = vsel %vm2137, %v2066, %v2136
    %vm2139 = vcmask 1046534
    %v2140 = vsel %vm2139, %v2097, %v2138
    %vm2141 = vcmask 1047559
    %v2142 = vsel %vm2141, %v2128, %v2140
    %2144 = vmax.xlane.f32.xlu0 %v2142
    %v2145 = vpop.xlane.xlu0 %2144
    %v2147 = vperm.slane %v2145, 0
    %v2148 = vperm.slane %v2145, 1
    %v2149 = vperm.slane %v2145, 2
    %v2150 = vperm.slane %v2145, 3
    %v2151 = vperm.slane %v2145, 4
    %v2152 = vperm.slane %v2145, 5
    %v2153 = vperm.slane %v2145, 6
    %v2154 = vperm.slane %v2145, 7
    %v2163 = vsub.f32 %v1209, %v2147
    %v2164 = vsub.f32 %v1210, %v2147
    %v2165 = vsub.f32 %v1211, %v2147
    %v2166 = vsub.f32 %v1212, %v2147
    %v2167 = vsub.f32 %v1213, %v2147
    %v2168 = vsub.f32 %v1214, %v2147
    %v2169 = vsub.f32 %v1215, %v2147
    %v2170 = vsub.f32 %v1216, %v2147
    %v2171 = vsub.f32 %v1217, %v2147
    %v2172 = vsub.f32 %v1218, %v2147
    %v2173 = vsub.f32 %v1219, %v2147
    %v2174 = vsub.f32 %v1220, %v2147
    %v2175 = vsub.f32 %v1221, %v2147
    %v2176 = vsub.f32 %v1222, %v2147
    %v2177 = vsub.f32 %v1223, %v2147
    %v2178 = vsub.f32 %v1224, %v2147
    %v2179 = vsub.f32 %v1225, %v2148
    %v2180 = vsub.f32 %v1226, %v2148
    %v2181 = vsub.f32 %v1227, %v2148
    %v2182 = vsub.f32 %v1228, %v2148
    %v2183 = vsub.f32 %v1229, %v2148
    %v2184 = vsub.f32 %v1230, %v2148
    %v2185 = vsub.f32 %v1231, %v2148
    %v2186 = vsub.f32 %v1232, %v2148
    %v2187 = vsub.f32 %v1233, %v2148
    %v2188 = vsub.f32 %v1234, %v2148
    %v2189 = vsub.f32 %v1235, %v2148
    %v2190 = vsub.f32 %v1236, %v2148
    %v2191 = vsub.f32 %v1237, %v2148
    %v2192 = vsub.f32 %v1238, %v2148
    %v2193 = vsub.f32 %v1239, %v2148
    %v2194 = vsub.f32 %v1240, %v2148
    %v2195 = vsub.f32 %v1241, %v2149
    %v2196 = vsub.f32 %v1242, %v2149
    %v2197 = vsub.f32 %v1243, %v2149
    %v2198 = vsub.f32 %v1244, %v2149
    %v2199 = vsub.f32 %v1245, %v2149
    %v2200 = vsub.f32 %v1246, %v2149
    %v2201 = vsub.f32 %v1247, %v2149
    %v2202 = vsub.f32 %v1248, %v2149
    %v2203 = vsub.f32 %v1249, %v2149
    %v2204 = vsub.f32 %v1250, %v2149
    %v2205 = vsub.f32 %v1251, %v2149
    %v2206 = vsub.f32 %v1252, %v2149
    %v2207 = vsub.f32 %v1253, %v2149
    %v2208 = vsub.f32 %v1254, %v2149
    %v2209 = vsub.f32 %v1255, %v2149
    %v2210 = vsub.f32 %v1256, %v2149
    %v2211 = vsub.f32 %v1257, %v2150
    %v2212 = vsub.f32 %v1258, %v2150
    %v2213 = vsub.f32 %v1259, %v2150
    %v2214 = vsub.f32 %v1260, %v2150
    %v2215 = vsub.f32 %v1261, %v2150
    %v2216 = vsub.f32 %v1262, %v2150
    %v2217 = vsub.f32 %v1263, %v2150
    %v2218 = vsub.f32 %v1264, %v2150
    %v2219 = vsub.f32 %v1265, %v2150
    %v2220 = vsub.f32 %v1266, %v2150
    %v2221 = vsub.f32 %v1267, %v2150
    %v2222 = vsub.f32 %v1268, %v2150
    %v2223 = vsub.f32 %v1269, %v2150
    %v2224 = vsub.f32 %v1270, %v2150
    %v2225 = vsub.f32 %v1271, %v2150
    %v2226 = vsub.f32 %v1272, %v2150
    %v2227 = vsub.f32 %v1273, %v2151
    %v2228 = vsub.f32 %v1274, %v2151
    %v2229 = vsub.f32 %v1275, %v2151
    %v2230 = vsub.f32 %v1276, %v2151
    %v2231 = vsub.f32 %v1277, %v2151
    %v2232 = vsub.f32 %v1278, %v2151
    %v2233 = vsub.f32 %v1279, %v2151
    %v2234 = vsub.f32 %v1280, %v2151
    %v2235 = vsub.f32 %v1281, %v2151
    %v2236 = vsub.f32 %v1282, %v2151
    %v2237 = vsub.f32 %v1283, %v2151
    %v2238 = vsub.f32 %v1284, %v2151
    %v2239 = vsub.f32 %v1285, %v2151
    %v2240 = vsub.f32 %v1286, %v2151
    %v2241 = vsub.f32 %v1287, %v2151
    %v2242 = vsub.f32 %v1288, %v2151
    %v2243 = vsub.f32 %v1289, %v2152
    %v2244 = vsub.f32 %v1290, %v2152
    %v2245 = vsub.f32 %v1291, %v2152
    %v2246 = vsub.f32 %v1292, %v2152
    %v2247 = vsub.f32 %v1293, %v2152
    %v2248 = vsub.f32 %v1294, %v2152
    %v2249 = vsub.f32 %v1295, %v2152
    %v2250 = vsub.f32 %v1296, %v2152
    %v2251 = vsub.f32 %v1297, %v2152
    %v2252 = vsub.f32 %v1298, %v2152
    %v2253 = vsub.f32 %v1299, %v2152
    %v2254 = vsub.f32 %v1300, %v2152
    %v2255 = vsub.f32 %v1301, %v2152
    %v2256 = vsub.f32 %v1302, %v2152
    %v2257 = vsub.f32 %v1303, %v2152
    %v2258 = vsub.f32 %v1304, %v2152
    %v2259 = vsub.f32 %v1305, %v2153
    %v2260 = vsub.f32 %v1306, %v2153
    %v2261 = vsub.f32 %v1307, %v2153
    %v2262 = vsub.f32 %v1308, %v2153
    %v2263 = vsub.f32 %v1309, %v2153
    %v2264 = vsub.f32 %v1310, %v2153
    %v2265 = vsub.f32 %v1311, %v2153
    %v2266 = vsub.f32 %v1312, %v2153
    %v2267 = vsub.f32 %v1313, %v2153
    %v2268 = vsub.f32 %v1314, %v2153
    %v2269 = vsub.f32 %v1315, %v2153
    %v2270 = vsub.f32 %v1316, %v2153
    %v2271 = vsub.f32 %v1317, %v2153
    %v2272 = vsub.f32 %v1318, %v2153
    %v2273 = vsub.f32 %v1319, %v2153
    %v2274 = vsub.f32 %v1320, %v2153
    %v2275 = vsub.f32 %v1321, %v2154
    %v2276 = vsub.f32 %v1322, %v2154
    %v2277 = vsub.f32 %v1323, %v2154
    %v2278 = vsub.f32 %v1324, %v2154
    %v2279 = vsub.f32 %v1325, %v2154
    %v2280 = vsub.f32 %v1326, %v2154
    %v2281 = vsub.f32 %v1327, %v2154
    %v2282 = vsub.f32 %v1328, %v2154
    %v2283 = vsub.f32 %v1329, %v2154
    %v2284 = vsub.f32 %v1330, %v2154
    %v2285 = vsub.f32 %v1331, %v2154
    %v2286 = vsub.f32 %v1332, %v2154
    %v2287 = vsub.f32 %v1333, %v2154
    %v2288 = vsub.f32 %v1334, %v2154
    %v2289 = vsub.f32 %v1335, %v2154
    %v2290 = vsub.f32 %v1336, %v2154
    %v2291 = vmul.f32 %v2163, 1.442695
    %v2292 = vpow.pop %v2291
    %v2293 = vmul.f32 %v2164, 1.442695
    %v2294 = vpow.pop %v2293
    %v2295 = vmul.f32 %v2165, 1.442695
    %v2296 = vpow.pop %v2295
    %v2297 = vmul.f32 %v2166, 1.442695
    %v2298 = vpow.pop %v2297
    %v2299 = vmul.f32 %v2167, 1.442695
    %v2300 = vpow.pop %v2299
    %v2301 = vmul.f32 %v2168, 1.442695
    %v2302 = vpow.pop %v2301
    %v2303 = vmul.f32 %v2169, 1.442695
    %v2304 = vpow.pop %v2303
    %v2305 = vmul.f32 %v2170, 1.442695
    %v2306 = vpow.pop %v2305
    %v2307 = vmul.f32 %v2171, 1.442695
    %v2308 = vpow.pop %v2307
    %v2309 = vmul.f32 %v2172, 1.442695
    %v2310 = vpow.pop %v2309
    %v2311 = vmul.f32 %v2173, 1.442695
    %v2312 = vpow.pop %v2311
    %v2313 = vmul.f32 %v2174, 1.442695
    %v2314 = vpow.pop %v2313
    %v2315 = vmul.f32 %v2175, 1.442695
    %v2316 = vpow.pop %v2315
    %v2317 = vmul.f32 %v2176, 1.442695
    %v2318 = vpow.pop %v2317
    %v2319 = vmul.f32 %v2177, 1.442695
    %v2320 = vpow.pop %v2319
    %v2321 = vmul.f32 %v2178, 1.442695
    %v2322 = vpow.pop %v2321
    %v2323 = vmul.f32 %v2179, 1.442695
    %v2324 = vpow.pop %v2323
    %v2325 = vmul.f32 %v2180, 1.442695
    %v2326 = vpow.pop %v2325
    %v2327 = vmul.f32 %v2181, 1.442695
    %v2328 = vpow.pop %v2327
    %v2329 = vmul.f32 %v2182, 1.442695
    %v2330 = vpow.pop %v2329
    %v2331 = vmul.f32 %v2183, 1.442695
    %v2332 = vpow.pop %v2331
    %v2333 = vmul.f32 %v2184, 1.442695
    %v2334 = vpow.pop %v2333
    %v2335 = vmul.f32 %v2185, 1.442695
    %v2336 = vpow.pop %v2335
    %v2337 = vmul.f32 %v2186, 1.442695
    %v2338 = vpow.pop %v2337
    %v2339 = vmul.f32 %v2187, 1.442695
    %v2340 = vpow.pop %v2339
    %v2341 = vmul.f32 %v2188, 1.442695
    %v2342 = vpow.pop %v2341
    %v2343 = vmul.f32 %v2189, 1.442695
    %v2344 = vpow.pop %v2343
    %v2345 = vmul.f32 %v2190, 1.442695
    %v2346 = vpow.pop %v2345
    %v2347 = vmul.f32 %v2191, 1.442695
    %v2348 = vpow.pop %v2347
    %v2349 = vmul.f32 %v2192, 1.442695
    %v2350 = vpow.pop %v2349
    %v2351 = vmul.f32 %v2193, 1.442695
    %v2352 = vpow.pop %v2351
    %v2353 = vmul.f32 %v2194, 1.442695
    %v2354 = vpow.pop %v2353
    %v2355 = vmul.f32 %v2195, 1.442695
    %v2356 = vpow.pop %v2355
    %v2357 = vmul.f32 %v2196, 1.442695
    %v2358 = vpow.pop %v2357
    %v2359 = vmul.f32 %v2197, 1.442695
    %v2360 = vpow.pop %v2359
    %v2361 = vmul.f32 %v2198, 1.442695
    %v2362 = vpow.pop %v2361
    %v2363 = vmul.f32 %v2199, 1.442695
    %v2364 = vpow.pop %v2363
    %v2365 = vmul.f32 %v2200, 1.442695
    %v2366 = vpow.pop %v2365
    %v2367 = vmul.f32 %v2201, 1.442695
    %v2368 = vpow.pop %v2367
    %v2369 = vmul.f32 %v2202, 1.442695
    %v2370 = vpow.pop %v2369
    %v2371 = vmul.f32 %v2203, 1.442695
    %v2372 = vpow.pop %v2371
    %v2373 = vmul.f32 %v2204, 1.442695
    %v2374 = vpow.pop %v2373
    %v2375 = vmul.f32 %v2205, 1.442695
    %v2376 = vpow.pop %v2375
    %v2377 = vmul.f32 %v2206, 1.442695
    %v2378 = vpow.pop %v2377
    %v2379 = vmul.f32 %v2207, 1.442695
    %v2380 = vpow.pop %v2379
    %v2381 = vmul.f32 %v2208, 1.442695
    %v2382 = vpow.pop %v2381
    %v2383 = vmul.f32 %v2209, 1.442695
    %v2384 = vpow.pop %v2383
    %v2385 = vmul.f32 %v2210, 1.442695
    %v2386 = vpow.pop %v2385
    %v2387 = vmul.f32 %v2211, 1.442695
    %v2388 = vpow.pop %v2387
    %v2389 = vmul.f32 %v2212, 1.442695
    %v2390 = vpow.pop %v2389
    %v2391 = vmul.f32 %v2213, 1.442695
    %v2392 = vpow.pop %v2391
    %v2393 = vmul.f32 %v2214, 1.442695
    %v2394 = vpow.pop %v2393
    %v2395 = vmul.f32 %v2215, 1.442695
    %v2396 = vpow.pop %v2395
    %v2397 = vmul.f32 %v2216, 1.442695
    %v2398 = vpow.pop %v2397
    %v2399 = vmul.f32 %v2217, 1.442695
    %v2400 = vpow.pop %v2399
    %v2401 = vmul.f32 %v2218, 1.442695
    %v2402 = vpow.pop %v2401
    %v2403 = vmul.f32 %v2219, 1.442695
    %v2404 = vpow.pop %v2403
    %v2405 = vmul.f32 %v2220, 1.442695
    %v2406 = vpow.pop %v2405
    %v2407 = vmul.f32 %v2221, 1.442695
    %v2408 = vpow.pop %v2407
    %v2409 = vmul.f32 %v2222, 1.442695
    %v2410 = vpow.pop %v2409
    %v2411 = vmul.f32 %v2223, 1.442695
    %v2412 = vpow.pop %v2411
    %v2413 = vmul.f32 %v2224, 1.442695
    %v2414 = vpow.pop %v2413
    %v2415 = vmul.f32 %v2225, 1.442695
    %v2416 = vpow.pop %v2415
    %v2417 = vmul.f32 %v2226, 1.442695
    %v2418 = vpow.pop %v2417
    %v2419 = vmul.f32 %v2227, 1.442695
    %v2420 = vpow.pop %v2419
    %v2421 = vmul.f32 %v2228, 1.442695
    %v2422 = vpow.pop %v2421
    %v2423 = vmul.f32 %v2229, 1.442695
    %v2424 = vpow.pop %v2423
    %v2425 = vmul.f32 %v2230, 1.442695
    %v2426 = vpow.pop %v2425
    %v2427 = vmul.f32 %v2231, 1.442695
    %v2428 = vpow.pop %v2427
    %v2429 = vmul.f32 %v2232, 1.442695
    %v2430 = vpow.pop %v2429
    %v2431 = vmul.f32 %v2233, 1.442695
    %v2432 = vpow.pop %v2431
    %v2433 = vmul.f32 %v2234, 1.442695
    %v2434 = vpow.pop %v2433
    %v2435 = vmul.f32 %v2235, 1.442695
    %v2436 = vpow.pop %v2435
    %v2437 = vmul.f32 %v2236, 1.442695
    %v2438 = vpow.pop %v2437
    %v2439 = vmul.f32 %v2237, 1.442695
    %v2440 = vpow.pop %v2439
    %v2441 = vmul.f32 %v2238, 1.442695
    %v2442 = vpow.pop %v2441
    %v2443 = vmul.f32 %v2239, 1.442695
    %v2444 = vpow.pop %v2443
    %v2445 = vmul.f32 %v2240, 1.442695
    %v2446 = vpow.pop %v2445
    %v2447 = vmul.f32 %v2241, 1.442695
    %v2448 = vpow.pop %v2447
    %v2449 = vmul.f32 %v2242, 1.442695
    %v2450 = vpow.pop %v2449
    %v2451 = vmul.f32 %v2243, 1.442695
    %v2452 = vpow.pop %v2451
    %v2453 = vmul.f32 %v2244, 1.442695
    %v2454 = vpow.pop %v2453
    %v2455 = vmul.f32 %v2245, 1.442695
    %v2456 = vpow.pop %v2455
    %v2457 = vmul.f32 %v2246, 1.442695
    %v2458 = vpow.pop %v2457
    %v2459 = vmul.f32 %v2247, 1.442695
    %v2460 = vpow.pop %v2459
    %v2461 = vmul.f32 %v2248, 1.442695
    %v2462 = vpow.pop %v2461
    %v2463 = vmul.f32 %v2249, 1.442695
    %v2464 = vpow.pop %v2463
    %v2465 = vmul.f32 %v2250, 1.442695
    %v2466 = vpow.pop %v2465
    %v2467 = vmul.f32 %v2251, 1.442695
    %v2468 = vpow.pop %v2467
    %v2469 = vmul.f32 %v2252, 1.442695
    %v2470 = vpow.pop %v2469
    %v2471 = vmul.f32 %v2253, 1.442695
    %v2472 = vpow.pop %v2471
    %v2473 = vmul.f32 %v2254, 1.442695
    %v2474 = vpow.pop %v2473
    %v2475 = vmul.f32 %v2255, 1.442695
    %v2476 = vpow.pop %v2475
    %v2477 = vmul.f32 %v2256, 1.442695
    %v2478 = vpow.pop %v2477
    %v2479 = vmul.f32 %v2257, 1.442695
    %v2480 = vpow.pop %v2479
    %v2481 = vmul.f32 %v2258, 1.442695
    %v2482 = vpow.pop %v2481
    %v2483 = vmul.f32 %v2259, 1.442695
    %v2484 = vpow.pop %v2483
    %v2485 = vmul.f32 %v2260, 1.442695
    %v2486 = vpow.pop %v2485
    %v2487 = vmul.f32 %v2261, 1.442695
    %v2488 = vpow.pop %v2487
    %v2489 = vmul.f32 %v2262, 1.442695
    %v2490 = vpow.pop %v2489
    %v2491 = vmul.f32 %v2263, 1.442695
    %v2492 = vpow.pop %v2491
    %v2493 = vmul.f32 %v2264, 1.442695
    %v2494 = vpow.pop %v2493
    %v2495 = vmul.f32 %v2265, 1.442695
    %v2496 = vpow.pop %v2495
    %v2497 = vmul.f32 %v2266, 1.442695
    %v2498 = vpow.pop %v2497
    %v2499 = vmul.f32 %v2267, 1.442695
    %v2500 = vpow.pop %v2499
    %v2501 = vmul.f32 %v2268, 1.442695
    %v2502 = vpow.pop %v2501
    %v2503 = vmul.f32 %v2269, 1.442695
    %v2504 = vpow.pop %v2503
    %v2505 = vmul.f32 %v2270, 1.442695
    %v2506 = vpow.pop %v2505
    %v2507 = vmul.f32 %v2271, 1.442695
    %v2508 = vpow.pop %v2507
    %v2509 = vmul.f32 %v2272, 1.442695
    %v2510 = vpow.pop %v2509
    %v2511 = vmul.f32 %v2273, 1.442695
    %v2512 = vpow.pop %v2511
    %v2513 = vmul.f32 %v2274, 1.442695
    %v2514 = vpow.pop %v2513
    %v2515 = vmul.f32 %v2275, 1.442695
    %v2516 = vpow.pop %v2515
    %v2517 = vmul.f32 %v2276, 1.442695
    %v2518 = vpow.pop %v2517
    %v2519 = vmul.f32 %v2277, 1.442695
    %v2520 = vpow.pop %v2519
    %v2521 = vmul.f32 %v2278, 1.442695
    %v2522 = vpow.pop %v2521
    %v2523 = vmul.f32 %v2279, 1.442695
    %v2524 = vpow.pop %v2523
    %v2525 = vmul.f32 %v2280, 1.442695
    %v2526 = vpow.pop %v2525
    %v2527 = vmul.f32 %v2281, 1.442695
    %v2528 = vpow.pop %v2527
    %v2529 = vmul.f32 %v2282, 1.442695
    %v2530 = vpow.pop %v2529
    %v2531 = vmul.f32 %v2283, 1.442695
    %v2532 = vpow.pop %v2531
    %v2533 = vmul.f32 %v2284, 1.442695
    %v2534 = vpow.pop %v2533
    %v2535 = vmul.f32 %v2285, 1.442695
    %v2536 = vpow.pop %v2535
    %v2537 = vmul.f32 %v2286, 1.442695
    %v2538 = vpow.pop %v2537
    %v2539 = vmul.f32 %v2287, 1.442695
    %v2540 = vpow.pop %v2539
    %v2541 = vmul.f32 %v2288, 1.442695
    %v2542 = vpow.pop %v2541
    %v2543 = vmul.f32 %v2289, 1.442695
    %v2544 = vpow.pop %v2543
    %v2545 = vmul.f32 %v2290, 1.442695
    %v2546 = vpow.pop %v2545
    %2675 = vset.pattern.permute.xlu0 0
    %2676 = vperm.xlu0 %2675, %v2292
    %v2677 = vpop.permute.xlu0 %2676
    %2678 = vset.pattern.permute.xlu0 0
    %2679 = vperm.xlu0 %2678, %v2294
    %v2680 = vpop.permute.xlu0 %2679
    %2681 = vset.pattern.permute.xlu0 0
    %2682 = vperm.xlu0 %2681, %v2296
    %v2683 = vpop.permute.xlu0 %2682
    %2684 = vset.pattern.permute.xlu0 0
    %2685 = vperm.xlu0 %2684, %v2298
    %v2686 = vpop.permute.xlu0 %2685
    %2687 = vset.pattern.permute.xlu0 0
    %2688 = vperm.xlu0 %2687, %v2300
    %v2689 = vpop.permute.xlu0 %2688
    %2690 = vset.pattern.permute.xlu0 0
    %2691 = vperm.xlu0 %2690, %v2302
    %v2692 = vpop.permute.xlu0 %2691
    %2693 = vset.pattern.permute.xlu0 0
    %2694 = vperm.xlu0 %2693, %v2304
    %v2695 = vpop.permute.xlu0 %2694
    %2696 = vset.pattern.permute.xlu0 0
    %2697 = vperm.xlu0 %2696, %v2306
    %v2698 = vpop.permute.xlu0 %2697
    %2699 = vset.pattern.permute.xlu0 0
    %2700 = vperm.xlu0 %2699, %v2308
    %v2701 = vpop.permute.xlu0 %2700
    %2702 = vset.pattern.permute.xlu0 0
    %2703 = vperm.xlu0 %2702, %v2310
    %v2704 = vpop.permute.xlu0 %2703
    %2705 = vset.pattern.permute.xlu0 0
    %2706 = vperm.xlu0 %2705, %v2312
    %v2707 = vpop.permute.xlu0 %2706
    %2708 = vset.pattern.permute.xlu0 0
    %2709 = vperm.xlu0 %2708, %v2314
    %v2710 = vpop.permute.xlu0 %2709
    %2711 = vset.pattern.permute.xlu0 0
    %2712 = vperm.xlu0 %2711, %v2316
    %v2713 = vpop.permute.xlu0 %2712
    %2714 = vset.pattern.permute.xlu0 0
    %2715 = vperm.xlu0 %2714, %v2318
    %v2716 = vpop.permute.xlu0 %2715
    %2717 = vset.pattern.permute.xlu0 0
    %2718 = vperm.xlu0 %2717, %v2320
    %v2719 = vpop.permute.xlu0 %2718
    %2720 = vset.pattern.permute.xlu0 0
    %2721 = vperm.xlu0 %2720, %v2322
    %v2722 = vpop.permute.xlu0 %2721
    %2723 = vset.pattern.permute.xlu0 0
    %2724 = vperm.xlu0 %2723, %v2324
    %v2725 = vpop.permute.xlu0 %2724
    %2726 = vset.pattern.permute.xlu0 0
    %2727 = vperm.xlu0 %2726, %v2326
    %v2728 = vpop.permute.xlu0 %2727
    %2729 = vset.pattern.permute.xlu0 0
    %2730 = vperm.xlu0 %2729, %v2328
    %v2731 = vpop.permute.xlu0 %2730
    %2732 = vset.pattern.permute.xlu0 0
    %2733 = vperm.xlu0 %2732, %v2330
    %v2734 = vpop.permute.xlu0 %2733
    %2735 = vset.pattern.permute.xlu0 0
    %2736 = vperm.xlu0 %2735, %v2332
    %v2737 = vpop.permute.xlu0 %2736
    %2738 = vset.pattern.permute.xlu0 0
    %2739 = vperm.xlu0 %2738, %v2334
    %v2740 = vpop.permute.xlu0 %2739
    %2741 = vset.pattern.permute.xlu0 0
    %2742 = vperm.xlu0 %2741, %v2336
    %v2743 = vpop.permute.xlu0 %2742
    %2744 = vset.pattern.permute.xlu0 0
    %2745 = vperm.xlu0 %2744, %v2338
    %v2746 = vpop.permute.xlu0 %2745
    %2747 = vset.pattern.permute.xlu0 0
    %2748 = vperm.xlu0 %2747, %v2340
    %v2749 = vpop.permute.xlu0 %2748
    %2750 = vset.pattern.permute.xlu0 0
    %2751 = vperm.xlu0 %2750, %v2342
    %v2752 = vpop.permute.xlu0 %2751
    %2753 = vset.pattern.permute.xlu0 0
    %2754 = vperm.xlu0 %2753, %v2344
    %v2755 = vpop.permute.xlu0 %2754
    %2756 = vset.pattern.permute.xlu0 0
    %2757 = vperm.xlu0 %2756, %v2346
    %v2758 = vpop.permute.xlu0 %2757
    %2759 = vset.pattern.permute.xlu0 0
    %2760 = vperm.xlu0 %2759, %v2348
    %v2761 = vpop.permute.xlu0 %2760
    %2762 = vset.pattern.permute.xlu0 0
    %2763 = vperm.xlu0 %2762, %v2350
    %v2764 = vpop.permute.xlu0 %2763
    %2765 = vset.pattern.permute.xlu0 0
    %2766 = vperm.xlu0 %2765, %v2352
    %v2767 = vpop.permute.xlu0 %2766
    %2768 = vset.pattern.permute.xlu0 0
    %2769 = vperm.xlu0 %2768, %v2354
    %v2770 = vpop.permute.xlu0 %2769
    %2771 = vset.pattern.permute.xlu0 0
    %2772 = vperm.xlu0 %2771, %v2356
    %v2773 = vpop.permute.xlu0 %2772
    %2774 = vset.pattern.permute.xlu0 0
    %2775 = vperm.xlu0 %2774, %v2358
    %v2776 = vpop.permute.xlu0 %2775
    %2777 = vset.pattern.permute.xlu0 0
    %2778 = vperm.xlu0 %2777, %v2360
    %v2779 = vpop.permute.xlu0 %2778
    %2780 = vset.pattern.permute.xlu0 0
    %2781 = vperm.xlu0 %2780, %v2362
    %v2782 = vpop.permute.xlu0 %2781
    %2783 = vset.pattern.permute.xlu0 0
    %2784 = vperm.xlu0 %2783, %v2364
    %v2785 = vpop.permute.xlu0 %2784
    %2786 = vset.pattern.permute.xlu0 0
    %2787 = vperm.xlu0 %2786, %v2366
    %v2788 = vpop.permute.xlu0 %2787
    %2789 = vset.pattern.permute.xlu0 0
    %2790 = vperm.xlu0 %2789, %v2368
    %v2791 = vpop.permute.xlu0 %2790
    %2792 = vset.pattern.permute.xlu0 0
    %2793 = vperm.xlu0 %2792, %v2370
    %v2794 = vpop.permute.xlu0 %2793
    %2795 = vset.pattern.permute.xlu0 0
    %2796 = vperm.xlu0 %2795, %v2372
    %v2797 = vpop.permute.xlu0 %2796
    %2798 = vset.pattern.permute.xlu0 0
    %2799 = vperm.xlu0 %2798, %v2374
    %v2800 = vpop.permute.xlu0 %2799
    %2801 = vset.pattern.permute.xlu0 0
    %2802 = vperm.xlu0 %2801, %v2376
    %v2803 = vpop.permute.xlu0 %2802
    %2804 = vset.pattern.permute.xlu0 0
    %2805 = vperm.xlu0 %2804, %v2378
    %v2806 = vpop.permute.xlu0 %2805
    %2807 = vset.pattern.permute.xlu0 0
    %2808 = vperm.xlu0 %2807, %v2380
    %v2809 = vpop.permute.xlu0 %2808
    %2810 = vset.pattern.permute.xlu0 0
    %2811 = vperm.xlu0 %2810, %v2382
    %v2812 = vpop.permute.xlu0 %2811
    %2813 = vset.pattern.permute.xlu0 0
    %2814 = vperm.xlu0 %2813, %v2384
    %v2815 = vpop.permute.xlu0 %2814
    %2816 = vset.pattern.permute.xlu0 0
    %2817 = vperm.xlu0 %2816, %v2386
    %v2818 = vpop.permute.xlu0 %2817
    %2819 = vset.pattern.permute.xlu0 0
    %2820 = vperm.xlu0 %2819, %v2388
    %v2821 = vpop.permute.xlu0 %2820
    %2822 = vset.pattern.permute.xlu0 0
    %2823 = vperm.xlu0 %2822, %v2390
    %v2824 = vpop.permute.xlu0 %2823
    %2825 = vset.pattern.permute.xlu0 0
    %2826 = vperm.xlu0 %2825, %v2392
    %v2827 = vpop.permute.xlu0 %2826
    %2828 = vset.pattern.permute.xlu0 0
    %2829 = vperm.xlu0 %2828, %v2394
    %v2830 = vpop.permute.xlu0 %2829
    %2831 = vset.pattern.permute.xlu0 0
    %2832 = vperm.xlu0 %2831, %v2396
    %v2833 = vpop.permute.xlu0 %2832
    %2834 = vset.pattern.permute.xlu0 0
    %2835 = vperm.xlu0 %2834, %v2398
    %v2836 = vpop.permute.xlu0 %2835
    %2837 = vset.pattern.permute.xlu0 0
    %2838 = vperm.xlu0 %2837, %v2400
    %v2839 = vpop.permute.xlu0 %2838
    %2840 = vset.pattern.permute.xlu0 0
    %2841 = vperm.xlu0 %2840, %v2402
    %v2842 = vpop.permute.xlu0 %2841
    %2843 = vset.pattern.permute.xlu0 0
    %2844 = vperm.xlu0 %2843, %v2404
    %v2845 = vpop.permute.xlu0 %2844
    %2846 = vset.pattern.permute.xlu0 0
    %2847 = vperm.xlu0 %2846, %v2406
    %v2848 = vpop.permute.xlu0 %2847
    %2849 = vset.pattern.permute.xlu0 0
    %2850 = vperm.xlu0 %2849, %v2408
    %v2851 = vpop.permute.xlu0 %2850
    %2852 = vset.pattern.permute.xlu0 0
    %2853 = vperm.xlu0 %2852, %v2410
    %v2854 = vpop.permute.xlu0 %2853
    %2855 = vset.pattern.permute.xlu0 0
    %2856 = vperm.xlu0 %2855, %v2412
    %v2857 = vpop.permute.xlu0 %2856
    %2858 = vset.pattern.permute.xlu0 0
    %2859 = vperm.xlu0 %2858, %v2414
    %v2860 = vpop.permute.xlu0 %2859
    %2861 = vset.pattern.permute.xlu0 0
    %2862 = vperm.xlu0 %2861, %v2416
    %v2863 = vpop.permute.xlu0 %2862
    %2864 = vset.pattern.permute.xlu0 0
    %2865 = vperm.xlu0 %2864, %v2418
    %v2866 = vpop.permute.xlu0 %2865
    %2867 = vset.pattern.permute.xlu0 0
    %2868 = vperm.xlu0 %2867, %v2420
    %v2869 = vpop.permute.xlu0 %2868
    %2870 = vset.pattern.permute.xlu0 0
    %2871 = vperm.xlu0 %2870, %v2422
    %v2872 = vpop.permute.xlu0 %2871
    %2873 = vset.pattern.permute.xlu0 0
    %2874 = vperm.xlu0 %2873, %v2424
    %v2875 = vpop.permute.xlu0 %2874
    %2876 = vset.pattern.permute.xlu0 0
    %2877 = vperm.xlu0 %2876, %v2426
    %v2878 = vpop.permute.xlu0 %2877
    %2879 = vset.pattern.permute.xlu0 0
    %2880 = vperm.xlu0 %2879, %v2428
    %v2881 = vpop.permute.xlu0 %2880
    %2882 = vset.pattern.permute.xlu0 0
    %2883 = vperm.xlu0 %2882, %v2430
    %v2884 = vpop.permute.xlu0 %2883
    %2885 = vset.pattern.permute.xlu0 0
    %2886 = vperm.xlu0 %2885, %v2432
    %v2887 = vpop.permute.xlu0 %2886
    %2888 = vset.pattern.permute.xlu0 0
    %2889 = vperm.xlu0 %2888, %v2434
    %v2890 = vpop.permute.xlu0 %2889
    %2891 = vset.pattern.permute.xlu0 0
    %2892 = vperm.xlu0 %2891, %v2436
    %v2893 = vpop.permute.xlu0 %2892
    %2894 = vset.pattern.permute.xlu0 0
    %2895 = vperm.xlu0 %2894, %v2438
    %v2896 = vpop.permute.xlu0 %2895
    %2897 = vset.pattern.permute.xlu0 0
    %2898 = vperm.xlu0 %2897, %v2440
    %v2899 = vpop.permute.xlu0 %2898
    %2900 = vset.pattern.permute.xlu0 0
    %2901 = vperm.xlu0 %2900, %v2442
    %v2902 = vpop.permute.xlu0 %2901
    %2903 = vset.pattern.permute.xlu0 0
    %2904 = vperm.xlu0 %2903, %v2444
    %v2905 = vpop.permute.xlu0 %2904
    %2906 = vset.pattern.permute.xlu0 0
    %2907 = vperm.xlu0 %2906, %v2446
    %v2908 = vpop.permute.xlu0 %2907
    %2909 = vset.pattern.permute.xlu0 0
    %2910 = vperm.xlu0 %2909, %v2448
    %v2911 = vpop.permute.xlu0 %2910
    %2912 = vset.pattern.permute.xlu0 0
    %2913 = vperm.xlu0 %2912, %v2450
    %v2914 = vpop.permute.xlu0 %2913
    %2915 = vset.pattern.permute.xlu0 0
    %2916 = vperm.xlu0 %2915, %v2452
    %v2917 = vpop.permute.xlu0 %2916
    %2918 = vset.pattern.permute.xlu0 0
    %2919 = vperm.xlu0 %2918, %v2454
    %v2920 = vpop.permute.xlu0 %2919
    %2921 = vset.pattern.permute.xlu0 0
    %2922 = vperm.xlu0 %2921, %v2456
    %v2923 = vpop.permute.xlu0 %2922
    %2924 = vset.pattern.permute.xlu0 0
    %2925 = vperm.xlu0 %2924, %v2458
    %v2926 = vpop.permute.xlu0 %2925
    %2927 = vset.pattern.permute.xlu0 0
    %2928 = vperm.xlu0 %2927, %v2460
    %v2929 = vpop.permute.xlu0 %2928
    %2930 = vset.pattern.permute.xlu0 0
    %2931 = vperm.xlu0 %2930, %v2462
    %v2932 = vpop.permute.xlu0 %2931
    %2933 = vset.pattern.permute.xlu0 0
    %2934 = vperm.xlu0 %2933, %v2464
    %v2935 = vpop.permute.xlu0 %2934
    %2936 = vset.pattern.permute.xlu0 0
    %2937 = vperm.xlu0 %2936, %v2466
    %v2938 = vpop.permute.xlu0 %2937
    %2939 = vset.pattern.permute.xlu0 0
    %2940 = vperm.xlu0 %2939, %v2468
    %v2941 = vpop.permute.xlu0 %2940
    %2942 = vset.pattern.permute.xlu0 0
    %2943 = vperm.xlu0 %2942, %v2470
    %v2944 = vpop.permute.xlu0 %2943
    %2945 = vset.pattern.permute.xlu0 0
    %2946 = vperm.xlu0 %2945, %v2472
    %v2947 = vpop.permute.xlu0 %2946
    %2948 = vset.pattern.permute.xlu0 0
    %2949 = vperm.xlu0 %2948, %v2474
    %v2950 = vpop.permute.xlu0 %2949
    %2951 = vset.pattern.permute.xlu0 0
    %2952 = vperm.xlu0 %2951, %v2476
    %v2953 = vpop.permute.xlu0 %2952
    %2954 = vset.pattern.permute.xlu0 0
    %2955 = vperm.xlu0 %2954, %v2478
    %v2956 = vpop.permute.xlu0 %2955
    %2957 = vset.pattern.permute.xlu0 0
    %2958 = vperm.xlu0 %2957, %v2480
    %v2959 = vpop.permute.xlu0 %2958
    %2960 = vset.pattern.permute.xlu0 0
    %2961 = vperm.xlu0 %2960, %v2482
    %v2962 = vpop.permute.xlu0 %2961
    %2963 = vset.pattern.permute.xlu0 0
    %2964 = vperm.xlu0 %2963, %v2484
    %v2965 = vpop.permute.xlu0 %2964
    %2966 = vset.pattern.permute.xlu0 0
    %2967 = vperm.xlu0 %2966, %v2486
    %v2968 = vpop.permute.xlu0 %2967
    %2969 = vset.pattern.permute.xlu0 0
    %2970 = vperm.xlu0 %2969, %v2488
    %v2971 = vpop.permute.xlu0 %2970
    %2972 = vset.pattern.permute.xlu0 0
    %2973 = vperm.xlu0 %2972, %v2490
    %v2974 = vpop.permute.xlu0 %2973
    %2975 = vset.pattern.permute.xlu0 0
    %2976 = vperm.xlu0 %2975, %v2492
    %v2977 = vpop.permute.xlu0 %2976
    %2978 = vset.pattern.permute.xlu0 0
    %2979 = vperm.xlu0 %2978, %v2494
    %v2980 = vpop.permute.xlu0 %2979
    %2981 = vset.pattern.permute.xlu0 0
    %2982 = vperm.xlu0 %2981, %v2496
    %v2983 = vpop.permute.xlu0 %2982
    %2984 = vset.pattern.permute.xlu0 0
    %2985 = vperm.xlu0 %2984, %v2498
    %v2986 = vpop.permute.xlu0 %2985
    %2987 = vset.pattern.permute.xlu0 0
    %2988 = vperm.xlu0 %2987, %v2500
    %v2989 = vpop.permute.xlu0 %2988
    %2990 = vset.pattern.permute.xlu0 0
    %2991 = vperm.xlu0 %2990, %v2502
    %v2992 = vpop.permute.xlu0 %2991
    %2993 = vset.pattern.permute.xlu0 0
    %2994 = vperm.xlu0 %2993, %v2504
    %v2995 = vpop.permute.xlu0 %2994
    %2996 = vset.pattern.permute.xlu0 0
    %2997 = vperm.xlu0 %2996, %v2506
    %v2998 = vpop.permute.xlu0 %2997
    %2999 = vset.pattern.permute.xlu0 0
    %3000 = vperm.xlu0 %2999, %v2508
    %v3001 = vpop.permute.xlu0 %3000
    %3002 = vset.pattern.permute.xlu0 0
    %3003 = vperm.xlu0 %3002, %v2510
    %v3004 = vpop.permute.xlu0 %3003
    %3005 = vset.pattern.permute.xlu0 0
    %3006 = vperm.xlu0 %3005, %v2512
    %v3007 = vpop.permute.xlu0 %3006
    %3008 = vset.pattern.permute.xlu0 0
    %3009 = vperm.xlu0 %3008, %v2514
    %v3010 = vpop.permute.xlu0 %3009
    %3011 = vset.pattern.permute.xlu0 0
    %3012 = vperm.xlu0 %3011, %v2516
    %v3013 = vpop.permute.xlu0 %3012
    %3014 = vset.pattern.permute.xlu0 0
    %3015 = vperm.xlu0 %3014, %v2518
    %v3016 = vpop.permute.xlu0 %3015
    %3017 = vset.pattern.permute.xlu0 0
    %3018 = vperm.xlu0 %3017, %v2520
    %v3019 = vpop.permute.xlu0 %3018
    %3020 = vset.pattern.permute.xlu0 0
    %3021 = vperm.xlu0 %3020, %v2522
    %v3022 = vpop.permute.xlu0 %3021
    %3023 = vset.pattern.permute.xlu0 0
    %3024 = vperm.xlu0 %3023, %v2524
    %v3025 = vpop.permute.xlu0 %3024
    %3026 = vset.pattern.permute.xlu0 0
    %3027 = vperm.xlu0 %3026, %v2526
    %v3028 = vpop.permute.xlu0 %3027
    %3029 = vset.pattern.permute.xlu0 0
    %3030 = vperm.xlu0 %3029, %v2528
    %v3031 = vpop.permute.xlu0 %3030
    %3032 = vset.pattern.permute.xlu0 0
    %3033 = vperm.xlu0 %3032, %v2530
    %v3034 = vpop.permute.xlu0 %3033
    %3035 = vset.pattern.permute.xlu0 0
    %3036 = vperm.xlu0 %3035, %v2532
    %v3037 = vpop.permute.xlu0 %3036
    %3038 = vset.pattern.permute.xlu0 0
    %3039 = vperm.xlu0 %3038, %v2534
    %v3040 = vpop.permute.xlu0 %3039
    %3041 = vset.pattern.permute.xlu0 0
    %3042 = vperm.xlu0 %3041, %v2536
    %v3043 = vpop.permute.xlu0 %3042
    %3044 = vset.pattern.permute.xlu0 0
    %3045 = vperm.xlu0 %3044, %v2538
    %v3046 = vpop.permute.xlu0 %3045
    %3047 = vset.pattern.permute.xlu0 0
    %3048 = vperm.xlu0 %3047, %v2540
    %v3049 = vpop.permute.xlu0 %3048
    %3050 = vset.pattern.permute.xlu0 0
    %3051 = vperm.xlu0 %3050, %v2542
    %v3052 = vpop.permute.xlu0 %3051
    %3053 = vset.pattern.permute.xlu0 0
    %3054 = vperm.xlu0 %3053, %v2544
    %v3055 = vpop.permute.xlu0 %3054
    %3056 = vset.pattern.permute.xlu0 0
    %3057 = vperm.xlu0 %3056, %v2546
    %v3058 = vpop.permute.xlu0 %3057
    %v3059 = vperm.slane %v2677, %v1850
    %v3060 = vperm.slane %v2680, %v1852
    %v3061 = vsel %vm1854, %v3060, %v3059
    %v3062 = vperm.slane %v2683, %v1856
    %v3063 = vsel %vm1858, %v3062, %v3061
    %v3064 = vperm.slane %v2686, %v1860
    %v3065 = vsel %vm1862, %v3064, %v3063
    %v3066 = vperm.slane %v2689, %v1864
    %v3067 = vsel %vm1866, %v3066, %v3065
    %v3068 = vperm.slane %v2692, %v1868
    %v3069 = vsel %vm1870, %v3068, %v3067
    %v3070 = vperm.slane %v2695, %v1872
    %v3071 = vsel %vm1874, %v3070, %v3069
    %v3072 = vperm.slane %v2698, %v1876
    %v3073 = vsel %vm1878, %v3072, %v3071
    %v3074 = vperm.slane %v2701, %v1880
    %v3075 = vsel %vm1882, %v3074, %v3073
    %v3076 = vperm.slane %v2704, %v1884
    %v3077 = vsel %vm1886, %v3076, %v3075
    %v3078 = vperm.slane %v2707, %v1888
    %v3079 = vsel %vm1890, %v3078, %v3077
    %v3080 = vperm.slane %v2710, %v1892
    %v3081 = vsel %vm1894, %v3080, %v3079
    %v3082 = vperm.slane %v2713, %v1896
    %v3083 = vsel %vm1898, %v3082, %v3081
    %v3084 = vperm.slane %v2716, %v1900
    %v3085 = vsel %vm1902, %v3084, %v3083
    %v3086 = vperm.slane %v2719, %v1904
    %v3087 = vsel %vm1906, %v3086, %v3085
    %v3088 = vperm.slane %v2722, %v1908
    %v3089 = vsel %vm1910, %v3088, %v3087
    %v3090 = vperm.slane %v2725, %v1850
    %v3091 = vperm.slane %v2728, %v1852
    %v3092 = vsel %vm1854, %v3091, %v3090
    %v3093 = vperm.slane %v2731, %v1856
    %v3094 = vsel %vm1858, %v3093, %v3092
    %v3095 = vperm.slane %v2734, %v1860
    %v3096 = vsel %vm1862, %v3095, %v3094
    %v3097 = vperm.slane %v2737, %v1864
    %v3098 = vsel %vm1866, %v3097, %v3096
    %v3099 = vperm.slane %v2740, %v1868
    %v3100 = vsel %vm1870, %v3099, %v3098
    %v3101 = vperm.slane %v2743, %v1872
    %v3102 = vsel %vm1874, %v3101, %v3100
    %v3103 = vperm.slane %v2746, %v1876
    %v3104 = vsel %vm1878, %v3103, %v3102
    %v3105 = vperm.slane %v2749, %v1880
    %v3106 = vsel %vm1882, %v3105, %v3104
    %v3107 = vperm.slane %v2752, %v1884
    %v3108 = vsel %vm1886, %v3107, %v3106
    %v3109 = vperm.slane %v2755, %v1888
    %v3110 = vsel %vm1890, %v3109, %v3108
    %v3111 = vperm.slane %v2758, %v1892
    %v3112 = vsel %vm1894, %v3111, %v3110
    %v3113 = vperm.slane %v2761, %v1896
    %v3114 = vsel %vm1898, %v3113, %v3112
    %v3115 = vperm.slane %v2764, %v1900
    %v3116 = vsel %vm1902, %v3115, %v3114
    %v3117 = vperm.slane %v2767, %v1904
    %v3118 = vsel %vm1906, %v3117, %v3116
    %v3119 = vperm.slane %v2770, %v1908
    %v3120 = vsel %vm1910, %v3119, %v3118
    %v3121 = vperm.slane %v2773, %v1850
    %v3122 = vperm.slane %v2776, %v1852
    %v3123 = vsel %vm1854, %v3122, %v3121
    %v3124 = vperm.slane %v2779, %v1856
    %v3125 = vsel %vm1858, %v3124, %v3123
    %v3126 = vperm.slane %v2782, %v1860
    %v3127 = vsel %vm1862, %v3126, %v3125
    %v3128 = vperm.slane %v2785, %v1864
    %v3129 = vsel %vm1866, %v3128, %v3127
    %v3130 = vperm.slane %v2788, %v1868
    %v3131 = vsel %vm1870, %v3130, %v3129
    %v3132 = vperm.slane %v2791, %v1872
    %v3133 = vsel %vm1874, %v3132, %v3131
    %v3134 = vperm.slane %v2794, %v1876
    %v3135 = vsel %vm1878, %v3134, %v3133
    %v3136 = vperm.slane %v2797, %v1880
    %v3137 = vsel %vm1882, %v3136, %v3135
    %v3138 = vperm.slane %v2800, %v1884
    %v3139 = vsel %vm1886, %v3138, %v3137
    %v3140 = vperm.slane %v2803, %v1888
    %v3141 = vsel %vm1890, %v3140, %v3139
    %v3142 = vperm.slane %v2806, %v1892
    %v3143 = vsel %vm1894, %v3142, %v3141
    %v3144 = vperm.slane %v2809, %v1896
    %v3145 = vsel %vm1898, %v3144, %v3143
    %v3146 = vperm.slane %v2812, %v1900
    %v3147 = vsel %vm1902, %v3146, %v3145
    %v3148 = vperm.slane %v2815, %v1904
    %v3149 = vsel %vm1906, %v3148, %v3147
    %v3150 = vperm.slane %v2818, %v1908
    %v3151 = vsel %vm1910, %v3150, %v3149
    %v3152 = vperm.slane %v2821, %v1850
    %v3153 = vperm.slane %v2824, %v1852
    %v3154 = vsel %vm1854, %v3153, %v3152
    %v3155 = vperm.slane %v2827, %v1856
    %v3156 = vsel %vm1858, %v3155, %v3154
    %v3157 = vperm.slane %v2830, %v1860
    %v3158 = vsel %vm1862, %v3157, %v3156
    %v3159 = vperm.slane %v2833, %v1864
    %v3160 = vsel %vm1866, %v3159, %v3158
    %v3161 = vperm.slane %v2836, %v1868
    %v3162 = vsel %vm1870, %v3161, %v3160
    %v3163 = vperm.slane %v2839, %v1872
    %v3164 = vsel %vm1874, %v3163, %v3162
    %v3165 = vperm.slane %v2842, %v1876
    %v3166 = vsel %vm1878, %v3165, %v3164
    %v3167 = vperm.slane %v2845, %v1880
    %v3168 = vsel %vm1882, %v3167, %v3166
    %v3169 = vperm.slane %v2848, %v1884
    %v3170 = vsel %vm1886, %v3169, %v3168
    %v3171 = vperm.slane %v2851, %v1888
    %v3172 = vsel %vm1890, %v3171, %v3170
    %v3173 = vperm.slane %v2854, %v1892
    %v3174 = vsel %vm1894, %v3173, %v3172
    %v3175 = vperm.slane %v2857, %v1896
    %v3176 = vsel %vm1898, %v3175, %v3174
    %v3177 = vperm.slane %v2860, %v1900
    %v3178 = vsel %vm1902, %v3177, %v3176
    %v3179 = vperm.slane %v2863, %v1904
    %v3180 = vsel %vm1906, %v3179, %v3178
    %v3181 = vperm.slane %v2866, %v1908
    %v3182 = vsel %vm1910, %v3181, %v3180
    %v3183 = vperm.slane %v2869, %v1850
    %v3184 = vperm.slane %v2872, %v1852
    %v3185 = vsel %vm1854, %v3184, %v3183
    %v3186 = vperm.slane %v2875, %v1856
    %v3187 = vsel %vm1858, %v3186, %v3185
    %v3188 = vperm.slane %v2878, %v1860
    %v3189 = vsel %vm1862, %v3188, %v3187
    %v3190 = vperm.slane %v2881, %v1864
    %v3191 = vsel %vm1866, %v3190, %v3189
    %v3192 = vperm.slane %v2884, %v1868
    %v3193 = vsel %vm1870, %v3192, %v3191
    %v3194 = vperm.slane %v2887, %v1872
    %v3195 = vsel %vm1874, %v3194, %v3193
    %v3196 = vperm.slane %v2890, %v1876
    %v3197 = vsel %vm1878, %v3196, %v3195
    %v3198 = vperm.slane %v2893, %v1880
    %v3199 = vsel %vm1882, %v3198, %v3197
    %v3200 = vperm.slane %v2896, %v1884
    %v3201 = vsel %vm1886, %v3200, %v3199
    %v3202 = vperm.slane %v2899, %v1888
    %v3203 = vsel %vm1890, %v3202, %v3201
    %v3204 = vperm.slane %v2902, %v1892
    %v3205 = vsel %vm1894, %v3204, %v3203
    %v3206 = vperm.slane %v2905, %v1896
    %v3207 = vsel %vm1898, %v3206, %v3205
    %v3208 = vperm.slane %v2908, %v1900
    %v3209 = vsel %vm1902, %v3208, %v3207
    %v3210 = vperm.slane %v2911, %v1904
    %v3211 = vsel %vm1906, %v3210, %v3209
    %v3212 = vperm.slane %v2914, %v1908
    %v3213 = vsel %vm1910, %v3212, %v3211
    %v3214 = vperm.slane %v2917, %v1850
    %v3215 = vperm.slane %v2920, %v1852
    %v3216 = vsel %vm1854, %v3215, %v3214
    %v3217 = vperm.slane %v2923, %v1856
    %v3218 = vsel %vm1858, %v3217, %v3216
    %v3219 = vperm.slane %v2926, %v1860
    %v3220 = vsel %vm1862, %v3219, %v3218
    %v3221 = vperm.slane %v2929, %v1864
    %v3222 = vsel %vm1866, %v3221, %v3220
    %v3223 = vperm.slane %v2932, %v1868
    %v3224 = vsel %vm1870, %v3223, %v3222
    %v3225 = vperm.slane %v2935, %v1872
    %v3226 = vsel %vm1874, %v3225, %v3224
    %v3227 = vperm.slane %v2938, %v1876
    %v3228 = vsel %vm1878, %v3227, %v3226
    %v3229 = vperm.slane %v2941, %v1880
    %v3230 = vsel %vm1882, %v3229, %v3228
    %v3231 = vperm.slane %v2944, %v1884
    %v3232 = vsel %vm1886, %v3231, %v3230
    %v3233 = vperm.slane %v2947, %v1888
    %v3234 = vsel %vm1890, %v3233, %v3232
    %v3235 = vperm.slane %v2950, %v1892
    %v3236 = vsel %vm1894, %v3235, %v3234
    %v3237 = vperm.slane %v2953, %v1896
    %v3238 = vsel %vm1898, %v3237, %v3236
    %v3239 = vperm.slane %v2956, %v1900
    %v3240 = vsel %vm1902, %v3239, %v3238
    %v3241 = vperm.slane %v2959, %v1904
    %v3242 = vsel %vm1906, %v3241, %v3240
    %v3243 = vperm.slane %v2962, %v1908
    %v3244 = vsel %vm1910, %v3243, %v3242
    %v3245 = vperm.slane %v2965, %v1850
    %v3246 = vperm.slane %v2968, %v1852
    %v3247 = vsel %vm1854, %v3246, %v3245
    %v3248 = vperm.slane %v2971, %v1856
    %v3249 = vsel %vm1858, %v3248, %v3247
    %v3250 = vperm.slane %v2974, %v1860
    %v3251 = vsel %vm1862, %v3250, %v3249
    %v3252 = vperm.slane %v2977, %v1864
    %v3253 = vsel %vm1866, %v3252, %v3251
    %v3254 = vperm.slane %v2980, %v1868
    %v3255 = vsel %vm1870, %v3254, %v3253
    %v3256 = vperm.slane %v2983, %v1872
    %v3257 = vsel %vm1874, %v3256, %v3255
    %v3258 = vperm.slane %v2986, %v1876
    %v3259 = vsel %vm1878, %v3258, %v3257
    %v3260 = vperm.slane %v2989, %v1880
    %v3261 = vsel %vm1882, %v3260, %v3259
    %v3262 = vperm.slane %v2992, %v1884
    %v3263 = vsel %vm1886, %v3262, %v3261
    %v3264 = vperm.slane %v2995, %v1888
    %v3265 = vsel %vm1890, %v3264, %v3263
    %v3266 = vperm.slane %v2998, %v1892
    %v3267 = vsel %vm1894, %v3266, %v3265
    %v3268 = vperm.slane %v3001, %v1896
    %v3269 = vsel %vm1898, %v3268, %v3267
    %v3270 = vperm.slane %v3004, %v1900
    %v3271 = vsel %vm1902, %v3270, %v3269
    %v3272 = vperm.slane %v3007, %v1904
    %v3273 = vsel %vm1906, %v3272, %v3271
    %v3274 = vperm.slane %v3010, %v1908
    %v3275 = vsel %vm1910, %v3274, %v3273
    %v3276 = vperm.slane %v3013, %v1850
    %v3277 = vperm.slane %v3016, %v1852
    %v3278 = vsel %vm1854, %v3277, %v3276
    %v3279 = vperm.slane %v3019, %v1856
    %v3280 = vsel %vm1858, %v3279, %v3278
    %v3281 = vperm.slane %v3022, %v1860
    %v3282 = vsel %vm1862, %v3281, %v3280
    %v3283 = vperm.slane %v3025, %v1864
    %v3284 = vsel %vm1866, %v3283, %v3282
    %v3285 = vperm.slane %v3028, %v1868
    %v3286 = vsel %vm1870, %v3285, %v3284
    %v3287 = vperm.slane %v3031, %v1872
    %v3288 = vsel %vm1874, %v3287, %v3286
    %v3289 = vperm.slane %v3034, %v1876
    %v3290 = vsel %vm1878, %v3289, %v3288
    %v3291 = vperm.slane %v3037, %v1880
    %v3292 = vsel %vm1882, %v3291, %v3290
    %v3293 = vperm.slane %v3040, %v1884
    %v3294 = vsel %vm1886, %v3293, %v3292
    %v3295 = vperm.slane %v3043, %v1888
    %v3296 = vsel %vm1890, %v3295, %v3294
    %v3297 = vperm.slane %v3046, %v1892
    %v3298 = vsel %vm1894, %v3297, %v3296
    %v3299 = vperm.slane %v3049, %v1896
    %v3300 = vsel %vm1898, %v3299, %v3298
    %v3301 = vperm.slane %v3052, %v1900
    %v3302 = vsel %vm1902, %v3301, %v3300
    %v3303 = vperm.slane %v3055, %v1904
    %v3304 = vsel %vm1906, %v3303, %v3302
    %v3305 = vperm.slane %v3058, %v1908
    %v3306 = vsel %vm1910, %v3305, %v3304
    %v3307 = vsel %vm2129, %v3120, %v3089
    %v3308 = vsel %vm2131, %v3151, %v3307
    %v3309 = vsel %vm2133, %v3182, %v3308
    %v3310 = vsel %vm2135, %v3213, %v3309
    %v3311 = vsel %vm2137, %v3244, %v3310
    %v3312 = vsel %vm2139, %v3275, %v3311
    %v3313 = vsel %vm2141, %v3306, %v3312
    %3315 = vadd.xlane.f32.xlu0 %v3313
    %v3316 = vpop.xlane.xlu0 %3315
    %v3317 = vrcp.pop %v3316
    %v3319 = vperm.slane %v3317, 0
    %v3320 = vperm.slane %v3317, 1
    %v3321 = vperm.slane %v3317, 2
    %v3322 = vperm.slane %v3317, 3
    %v3323 = vperm.slane %v3317, 4
    %v3324 = vperm.slane %v3317, 5
    %v3325 = vperm.slane %v3317, 6
    %v3326 = vperm.slane %v3317, 7
    %v3335 = vmul.f32 %v2292, %v3319
    %v3336 = vmul.f32 %v2294, %v3319
    %v3337 = vmul.f32 %v2296, %v3319
    %v3338 = vmul.f32 %v2298, %v3319
    %v3339 = vmul.f32 %v2300, %v3319
    %v3340 = vmul.f32 %v2302, %v3319
    %v3341 = vmul.f32 %v2304, %v3319
    %v3342 = vmul.f32 %v2306, %v3319
    %v3343 = vmul.f32 %v2308, %v3319
    %v3344 = vmul.f32 %v2310, %v3319
    %v3345 = vmul.f32 %v2312, %v3319
    %v3346 = vmul.f32 %v2314, %v3319
    %v3347 = vmul.f32 %v2316, %v3319
    %v3348 = vmul.f32 %v2318, %v3319
    %v3349 = vmul.f32 %v2320, %v3319
    %v3350 = vmul.f32 %v2322, %v3319
    %v3351 = vmul.f32 %v2324, %v3320
    %v3352 = vmul.f32 %v2326, %v3320
    %v3353 = vmul.f32 %v2328, %v3320
    %v3354 = vmul.f32 %v2330, %v3320
    %v3355 = vmul.f32 %v2332, %v3320
    %v3356 = vmul.f32 %v2334, %v3320
    %v3357 = vmul.f32 %v2336, %v3320
    %v3358 = vmul.f32 %v2338, %v3320
    %v3359 = vmul.f32 %v2340, %v3320
    %v3360 = vmul.f32 %v2342, %v3320
    %v3361 = vmul.f32 %v2344, %v3320
    %v3362 = vmul.f32 %v2346, %v3320
    %v3363 = vmul.f32 %v2348, %v3320
    %v3364 = vmul.f32 %v2350, %v3320
    %v3365 = vmul.f32 %v2352, %v3320
    %v3366 = vmul.f32 %v2354, %v3320
    %v3367 = vmul.f32 %v2356, %v3321
    %v3368 = vmul.f32 %v2358, %v3321
    %v3369 = vmul.f32 %v2360, %v3321
    %v3370 = vmul.f32 %v2362, %v3321
    %v3371 = vmul.f32 %v2364, %v3321
    %v3372 = vmul.f32 %v2366, %v3321
    %v3373 = vmul.f32 %v2368, %v3321
    %v3374 = vmul.f32 %v2370, %v3321
    %v3375 = vmul.f32 %v2372, %v3321
    %v3376 = vmul.f32 %v2374, %v3321
    %v3377 = vmul.f32 %v2376, %v3321
    %v3378 = vmul.f32 %v2378, %v3321
    %v3379 = vmul.f32 %v2380, %v3321
    %v3380 = vmul.f32 %v2382, %v3321
    %v3381 = vmul.f32 %v2384, %v3321
    %v3382 = vmul.f32 %v2386, %v3321
    %v3383 = vmul.f32 %v2388, %v3322
    %v3384 = vmul.f32 %v2390, %v3322
    %v3385 = vmul.f32 %v2392, %v3322
    %v3386 = vmul.f32 %v2394, %v3322
    %v3387 = vmul.f32 %v2396, %v3322
    %v3388 = vmul.f32 %v2398, %v3322
    %v3389 = vmul.f32 %v2400, %v3322
    %v3390 = vmul.f32 %v2402, %v3322
    %v3391 = vmul.f32 %v2404, %v3322
    %v3392 = vmul.f32 %v2406, %v3322
    %v3393 = vmul.f32 %v2408, %v3322
    %v3394 = vmul.f32 %v2410, %v3322
    %v3395 = vmul.f32 %v2412, %v3322
    %v3396 = vmul.f32 %v2414, %v3322
    %v3397 = vmul.f32 %v2416, %v3322
    %v3398 = vmul.f32 %v2418, %v3322
    %v3399 = vmul.f32 %v2420, %v3323
    %v3400 = vmul.f32 %v2422, %v3323
    %v3401 = vmul.f32 %v2424, %v3323
    %v3402 = vmul.f32 %v2426, %v3323
    %v3403 = vmul.f32 %v2428, %v3323
    %v3404 = vmul.f32 %v2430, %v3323
    %v3405 = vmul.f32 %v2432, %v3323
    %v3406 = vmul.f32 %v2434, %v3323
    %v3407 = vmul.f32 %v2436, %v3323
    %v3408 = vmul.f32 %v2438, %v3323
    %v3409 = vmul.f32 %v2440, %v3323
    %v3410 = vmul.f32 %v2442, %v3323
    %v3411 = vmul.f32 %v2444, %v3323
    %v3412 = vmul.f32 %v2446, %v3323
    %v3413 = vmul.f32 %v2448, %v3323
    %v3414 = vmul.f32 %v2450, %v3323
    %v3415 = vmul.f32 %v2452, %v3324
    %v3416 = vmul.f32 %v2454, %v3324
    %v3417 = vmul.f32 %v2456, %v3324
    %v3418 = vmul.f32 %v2458, %v3324
    %v3419 = vmul.f32 %v2460, %v3324
    %v3420 = vmul.f32 %v2462, %v3324
    %v3421 = vmul.f32 %v2464, %v3324
    %v3422 = vmul.f32 %v2466, %v3324
    %v3423 = vmul.f32 %v2468, %v3324
    %v3424 = vmul.f32 %v2470, %v3324
    %v3425 = vmul.f32 %v2472, %v3324
    %v3426 = vmul.f32 %v2474, %v3324
    %v3427 = vmul.f32 %v2476, %v3324
    %v3428 = vmul.f32 %v2478, %v3324
    %v3429 = vmul.f32 %v2480, %v3324
    %v3430 = vmul.f32 %v2482, %v3324
    %v3431 = vmul.f32 %v2484, %v3325
    %v3432 = vmul.f32 %v2486, %v3325
    %v3433 = vmul.f32 %v2488, %v3325
    %v3434 = vmul.f32 %v2490, %v3325
    %v3435 = vmul.f32 %v2492, %v3325
    %v3436 = vmul.f32 %v2494, %v3325
    %v3437 = vmul.f32 %v2496, %v3325
    %v3438 = vmul.f32 %v2498, %v3325
    %v3439 = vmul.f32 %v2500, %v3325
    %v3440 = vmul.f32 %v2502, %v3325
    %v3441 = vmul.f32 %v2504, %v3325
    %v3442 = vmul.f32 %v2506, %v3325
    %v3443 = vmul.f32 %v2508, %v3325
    %v3444 = vmul.f32 %v2510, %v3325
    %v3445 = vmul.f32 %v2512, %v3325
    %v3446 = vmul.f32 %v2514, %v3325
    %v3447 = vmul.f32 %v2516, %v3326
    %v3448 = vmul.f32 %v2518, %v3326
    %v3449 = vmul.f32 %v2520, %v3326
    %v3450 = vmul.f32 %v2522, %v3326
    %v3451 = vmul.f32 %v2524, %v3326
    %v3452 = vmul.f32 %v2526, %v3326
    %v3453 = vmul.f32 %v2528, %v3326
    %v3454 = vmul.f32 %v2530, %v3326
    %v3455 = vmul.f32 %v2532, %v3326
    %v3456 = vmul.f32 %v2534, %v3326
    %v3457 = vmul.f32 %v2536, %v3326
    %v3458 = vmul.f32 %v2538, %v3326
    %v3459 = vmul.f32 %v2540, %v3326
    %v3460 = vmul.f32 %v2542, %v3326
    %v3461 = vmul.f32 %v2544, %v3326
    %v3462 = vmul.f32 %v2546, %v3326
    %v3463 = vld [vmem:[%s0] sm:$0xff]
    %v3464 = vld [vmem:[%s0 + $0x8] sm:$0xff]
    %v3465 = vld [vmem:[%s0 + $0x10] sm:$0xff]
    %v3466 = vld [vmem:[%s0 + $0x18] sm:$0xff]
    %v3467 = vld [vmem:[%s0 + $0x20] sm:$0xff]
    %v3468 = vld [vmem:[%s0 + $0x28] sm:$0xff]
    %v3469 = vld [vmem:[%s0 + $0x30] sm:$0xff]
    %v3470 = vld [vmem:[%s0 + $0x38] sm:$0xff]
    %v3471 = vld [vmem:[%s0 + $0x40] sm:$0xff]
    %v3472 = vld [vmem:[%s0 + $0x48] sm:$0xff]
    %v3473 = vld [vmem:[%s0 + $0x50] sm:$0xff]
    %v3474 = vld [vmem:[%s0 + $0x58] sm:$0xff]
    %v3475 = vld [vmem:[%s0 + $0x60] sm:$0xff]
    %v3476 = vld [vmem:[%s0 + $0x68] sm:$0xff]
    %v3477 = vld [vmem:[%s0 + $0x70] sm:$0xff]
    %v3478 = vld [vmem:[%s0 + $0x78] sm:$0xff]
    %v3479 = vld [vmem:[%s0 + $0x80] sm:$0xff]
    %v3480 = vld [vmem:[%s0 + $0x88] sm:$0xff]
    %v3481 = vld [vmem:[%s0 + $0x90] sm:$0xff]
    %v3482 = vld [vmem:[%s0 + $0x98] sm:$0xff]
    %v3483 = vld [vmem:[%s0 + $0xa0] sm:$0xff]
    %v3484 = vld [vmem:[%s0 + $0xa8] sm:$0xff]
    %v3485 = vld [vmem:[%s0 + $0xb0] sm:$0xff]
    %v3486 = vld [vmem:[%s0 + $0xb8] sm:$0xff]
    %v3487 = vld [vmem:[%s0 + $0xc0] sm:$0xff]
    %v3488 = vld [vmem:[%s0 + $0xc8] sm:$0xff]
    %v3489 = vld [vmem:[%s0 + $0xd0] sm:$0xff]
    %v3490 = vld [vmem:[%s0 + $0xd8] sm:$0xff]
    %v3491 = vld [vmem:[%s0 + $0xe0] sm:$0xff]
    %v3492 = vld [vmem:[%s0 + $0xe8] sm:$0xff]
    %v3493 = vld [vmem:[%s0 + $0xf0] sm:$0xff]
    %v3494 = vld [vmem:[%s0 + $0xf8] sm:$0xff]
    %v3495 = vld [vmem:[%s0 + $0x100] sm:$0xff]
    %v3496 = vld [vmem:[%s0 + $0x108] sm:$0xff]
    %v3497 = vld [vmem:[%s0 + $0x110] sm:$0xff]
    %v3498 = vld [vmem:[%s0 + $0x118] sm:$0xff]
    %v3499 = vld [vmem:[%s0 + $0x120] sm:$0xff]
    %v3500 = vld [vmem:[%s0 + $0x128] sm:$0xff]
    %v3501 = vld [vmem:[%s0 + $0x130] sm:$0xff]
    %v3502 = vld [vmem:[%s0 + $0x138] sm:$0xff]
    %v3503 = vld [vmem:[%s0 + $0x140] sm:$0xff]
    %v3504 = vld [vmem:[%s0 + $0x148] sm:$0xff]
    %v3505 = vld [vmem:[%s0 + $0x150] sm:$0xff]
    %v3506 = vld [vmem:[%s0 + $0x158] sm:$0xff]
    %v3507 = vld [vmem:[%s0 + $0x160] sm:$0xff]
    %v3508 = vld [vmem:[%s0 + $0x168] sm:$0xff]
    %v3509 = vld [vmem:[%s0 + $0x170] sm:$0xff]
    %v3510 = vld [vmem:[%s0 + $0x178] sm:$0xff]
    %v3511 = vld [vmem:[%s0 + $0x180] sm:$0xff]
    %v3512 = vld [vmem:[%s0 + $0x188] sm:$0xff]
    %v3513 = vld [vmem:[%s0 + $0x190] sm:$0xff]
    %v3514 = vld [vmem:[%s0 + $0x198] sm:$0xff]
    %v3515 = vld [vmem:[%s0 + $0x1a0] sm:$0xff]
    %v3516 = vld [vmem:[%s0 + $0x1a8] sm:$0xff]
    %v3517 = vld [vmem:[%s0 + $0x1b0] sm:$0xff]
    %v3518 = vld [vmem:[%s0 + $0x1b8] sm:$0xff]
    %v3519 = vld [vmem:[%s0 + $0x1c0] sm:$0xff]
    %v3520 = vld [vmem:[%s0 + $0x1c8] sm:$0xff]
    %v3521 = vld [vmem:[%s0 + $0x1d0] sm:$0xff]
    %v3522 = vld [vmem:[%s0 + $0x1d8] sm:$0xff]
    %v3523 = vld [vmem:[%s0 + $0x1e0] sm:$0xff]
    %v3524 = vld [vmem:[%s0 + $0x1e8] sm:$0xff]
    %v3525 = vld [vmem:[%s0 + $0x1f0] sm:$0xff]
    %v3526 = vld [vmem:[%s0 + $0x1f8] sm:$0xff]
    %v3527 = vld [vmem:[%s0 + $0x200] sm:$0xff]
    %v3528 = vld [vmem:[%s0 + $0x208] sm:$0xff]
    %v3529 = vld [vmem:[%s0 + $0x210] sm:$0xff]
    %v3530 = vld [vmem:[%s0 + $0x218] sm:$0xff]
    %v3531 = vld [vmem:[%s0 + $0x220] sm:$0xff]
    %v3532 = vld [vmem:[%s0 + $0x228] sm:$0xff]
    %v3533 = vld [vmem:[%s0 + $0x230] sm:$0xff]
    %v3534 = vld [vmem:[%s0 + $0x238] sm:$0xff]
    %v3535 = vld [vmem:[%s0 + $0x240] sm:$0xff]
    %v3536 = vld [vmem:[%s0 + $0x248] sm:$0xff]
    %v3537 = vld [vmem:[%s0 + $0x250] sm:$0xff]
    %v3538 = vld [vmem:[%s0 + $0x258] sm:$0xff]
    %v3539 = vld [vmem:[%s0 + $0x260] sm:$0xff]
    %v3540 = vld [vmem:[%s0 + $0x268] sm:$0xff]
    %v3541 = vld [vmem:[%s0 + $0x270] sm:$0xff]
    %v3542 = vld [vmem:[%s0 + $0x278] sm:$0xff]
    %v3543 = vld [vmem:[%s0 + $0x280] sm:$0xff]
    %v3544 = vld [vmem:[%s0 + $0x288] sm:$0xff]
    %v3545 = vld [vmem:[%s0 + $0x290] sm:$0xff]
    %v3546 = vld [vmem:[%s0 + $0x298] sm:$0xff]
    %v3547 = vld [vmem:[%s0 + $0x2a0] sm:$0xff]
    %v3548 = vld [vmem:[%s0 + $0x2a8] sm:$0xff]
    %v3549 = vld [vmem:[%s0 + $0x2b0] sm:$0xff]
    %v3550 = vld [vmem:[%s0 + $0x2b8] sm:$0xff]
    %v3551 = vld [vmem:[%s0 + $0x2c0] sm:$0xff]
    %v3552 = vld [vmem:[%s0 + $0x2c8] sm:$0xff]
    %v3553 = vld [vmem:[%s0 + $0x2d0] sm:$0xff]
    %v3554 = vld [vmem:[%s0 + $0x2d8] sm:$0xff]
    %v3555 = vld [vmem:[%s0 + $0x2e0] sm:$0xff]
    %v3556 = vld [vmem:[%s0 + $0x2e8] sm:$0xff]
    %v3557 = vld [vmem:[%s0 + $0x2f0] sm:$0xff]
    %v3558 = vld [vmem:[%s0 + $0x2f8] sm:$0xff]
    %v3559 = vld [vmem:[%s0 + $0x300] sm:$0xff]
    %v3560 = vld [vmem:[%s0 + $0x308] sm:$0xff]
    %v3561 = vld [vmem:[%s0 + $0x310] sm:$0xff]
    %v3562 = vld [vmem:[%s0 + $0x318] sm:$0xff]
    %v3563 = vld [vmem:[%s0 + $0x320] sm:$0xff]
    %v3564 = vld [vmem:[%s0 + $0x328] sm:$0xff]
    %v3565 = vld [vmem:[%s0 + $0x330] sm:$0xff]
    %v3566 = vld [vmem:[%s0 + $0x338] sm:$0xff]
    %v3567 = vld [vmem:[%s0 + $0x340] sm:$0xff]
    %v3568 = vld [vmem:[%s0 + $0x348] sm:$0xff]
    %v3569 = vld [vmem:[%s0 + $0x350] sm:$0xff]
    %v3570 = vld [vmem:[%s0 + $0x358] sm:$0xff]
    %v3571 = vld [vmem:[%s0 + $0x360] sm:$0xff]
    %v3572 = vld [vmem:[%s0 + $0x368] sm:$0xff]
    %v3573 = vld [vmem:[%s0 + $0x370] sm:$0xff]
    %v3574 = vld [vmem:[%s0 + $0x378] sm:$0xff]
    %v3575 = vld [vmem:[%s0 + $0x380] sm:$0xff]
    %v3576 = vld [vmem:[%s0 + $0x388] sm:$0xff]
    %v3577 = vld [vmem:[%s0 + $0x390] sm:$0xff]
    %v3578 = vld [vmem:[%s0 + $0x398] sm:$0xff]
    %v3579 = vld [vmem:[%s0 + $0x3a0] sm:$0xff]
    %v3580 = vld [vmem:[%s0 + $0x3a8] sm:$0xff]
    %v3581 = vld [vmem:[%s0 + $0x3b0] sm:$0xff]
    %v3582 = vld [vmem:[%s0 + $0x3b8] sm:$0xff]
    %v3583 = vld [vmem:[%s0 + $0x3c0] sm:$0xff]
    %v3584 = vld [vmem:[%s0 + $0x3c8] sm:$0xff]
    %v3585 = vld [vmem:[%s0 + $0x3d0] sm:$0xff]
    %v3586 = vld [vmem:[%s0 + $0x3d8] sm:$0xff]
    %v3587 = vld [vmem:[%s0 + $0x3e0] sm:$0xff]
    %v3588 = vld [vmem:[%s0 + $0x3e8] sm:$0xff]
    %v3589 = vld [vmem:[%s0 + $0x3f0] sm:$0xff]
    %v3590 = vld [vmem:[%s0 + $0x3f8] sm:$0xff]
    %3592 = vset.pattern.permute.xlu0 0
    %3593 = vperm.xlu0 %3592, %v3335
    %v3594 = vpop.permute.xlu0 %3593
    %3597 = vset.pattern.permute.xlu0 0
    %3598 = vperm.xlu0 %3597, %v3336
    %v3599 = vpop.permute.xlu0 %3598
    %3602 = vset.pattern.permute.xlu0 0
    %3603 = vperm.xlu0 %3602, %v3337
    %v3604 = vpop.permute.xlu0 %3603
    %3607 = vset.pattern.permute.xlu0 0
    %3608 = vperm.xlu0 %3607, %v3338
    %v3609 = vpop.permute.xlu0 %3608
    %3612 = vset.pattern.permute.xlu0 0
    %3613 = vperm.xlu0 %3612, %v3339
    %v3614 = vpop.permute.xlu0 %3613
    %3617 = vset.pattern.permute.xlu0 0
    %3618 = vperm.xlu0 %3617, %v3340
    %v3619 = vpop.permute.xlu0 %3618
    %3622 = vset.pattern.permute.xlu0 0
    %3623 = vperm.xlu0 %3622, %v3341
    %v3624 = vpop.permute.xlu0 %3623
    %3627 = vset.pattern.permute.xlu0 0
    %3628 = vperm.xlu0 %3627, %v3342
    %v3629 = vpop.permute.xlu0 %3628
    %3632 = vset.pattern.permute.xlu0 0
    %3633 = vperm.xlu0 %3632, %v3343
    %v3634 = vpop.permute.xlu0 %3633
    %3637 = vset.pattern.permute.xlu0 0
    %3638 = vperm.xlu0 %3637, %v3344
    %v3639 = vpop.permute.xlu0 %3638
    %3642 = vset.pattern.permute.xlu0 0
    %3643 = vperm.xlu0 %3642, %v3345
    %v3644 = vpop.permute.xlu0 %3643
    %3647 = vset.pattern.permute.xlu0 0
    %3648 = vperm.xlu0 %3647, %v3346
    %v3649 = vpop.permute.xlu0 %3648
    %3652 = vset.pattern.permute.xlu0 0
    %3653 = vperm.xlu0 %3652, %v3347
    %v3654 = vpop.permute.xlu0 %3653
    %3657 = vset.pattern.permute.xlu0 0
    %3658 = vperm.xlu0 %3657, %v3348
    %v3659 = vpop.permute.xlu0 %3658
    %3662 = vset.pattern.permute.xlu0 0
    %3663 = vperm.xlu0 %3662, %v3349
    %v3664 = vpop.permute.xlu0 %3663
    %3667 = vset.pattern.permute.xlu0 0
    %3668 = vperm.xlu0 %3667, %v3350
    %v3669 = vpop.permute.xlu0 %3668
    %3672 = vset.pattern.permute.xlu0 0
    %3673 = vperm.xlu0 %3672, %v3351
    %v3674 = vpop.permute.xlu0 %3673
    %3677 = vset.pattern.permute.xlu0 0
    %3678 = vperm.xlu0 %3677, %v3352
    %v3679 = vpop.permute.xlu0 %3678
    %3682 = vset.pattern.permute.xlu0 0
    %3683 = vperm.xlu0 %3682, %v3353
    %v3684 = vpop.permute.xlu0 %3683
    %3687 = vset.pattern.permute.xlu0 0
    %3688 = vperm.xlu0 %3687, %v3354
    %v3689 = vpop.permute.xlu0 %3688
    %3692 = vset.pattern.permute.xlu0 0
    %3693 = vperm.xlu0 %3692, %v3355
    %v3694 = vpop.permute.xlu0 %3693
    %3697 = vset.pattern.permute.xlu0 0
    %3698 = vperm.xlu0 %3697, %v3356
    %v3699 = vpop.permute.xlu0 %3698
    %3702 = vset.pattern.permute.xlu0 0
    %3703 = vperm.xlu0 %3702, %v3357
    %v3704 = vpop.permute.xlu0 %3703
    %3707 = vset.pattern.permute.xlu0 0
    %3708 = vperm.xlu0 %3707, %v3358
    %v3709 = vpop.permute.xlu0 %3708
    %3712 = vset.pattern.permute.xlu0 0
    %3713 = vperm.xlu0 %3712, %v3359
    %v3714 = vpop.permute.xlu0 %3713
    %3717 = vset.pattern.permute.xlu0 0
    %3718 = vperm.xlu0 %3717, %v3360
    %v3719 = vpop.permute.xlu0 %3718
    %3722 = vset.pattern.permute.xlu0 0
    %3723 = vperm.xlu0 %3722, %v3361
    %v3724 = vpop.permute.xlu0 %3723
    %3727 = vset.pattern.permute.xlu0 0
    %3728 = vperm.xlu0 %3727, %v3362
    %v3729 = vpop.permute.xlu0 %3728
    %3732 = vset.pattern.permute.xlu0 0
    %3733 = vperm.xlu0 %3732, %v3363
    %v3734 = vpop.permute.xlu0 %3733
    %3737 = vset.pattern.permute.xlu0 0
    %3738 = vperm.xlu0 %3737, %v3364
    %v3739 = vpop.permute.xlu0 %3738
    %3742 = vset.pattern.permute.xlu0 0
    %3743 = vperm.xlu0 %3742, %v3365
    %v3744 = vpop.permute.xlu0 %3743
    %3747 = vset.pattern.permute.xlu0 0
    %3748 = vperm.xlu0 %3747, %v3366
    %v3749 = vpop.permute.xlu0 %3748
    %3752 = vset.pattern.permute.xlu0 0
    %3753 = vperm.xlu0 %3752, %v3367
    %v3754 = vpop.permute.xlu0 %3753
    %3757 = vset.pattern.permute.xlu0 0
    %3758 = vperm.xlu0 %3757, %v3368
    %v3759 = vpop.permute.xlu0 %3758
    %3762 = vset.pattern.permute.xlu0 0
    %3763 = vperm.xlu0 %3762, %v3369
    %v3764 = vpop.permute.xlu0 %3763
    %3767 = vset.pattern.permute.xlu0 0
    %3768 = vperm.xlu0 %3767, %v3370
    %v3769 = vpop.permute.xlu0 %3768
    %3772 = vset.pattern.permute.xlu0 0
    %3773 = vperm.xlu0 %3772, %v3371
    %v3774 = vpop.permute.xlu0 %3773
    %3777 = vset.pattern.permute.xlu0 0
    %3778 = vperm.xlu0 %3777, %v3372
    %v3779 = vpop.permute.xlu0 %3778
    %3782 = vset.pattern.permute.xlu0 0
    %3783 = vperm.xlu0 %3782, %v3373
    %v3784 = vpop.permute.xlu0 %3783
    %3787 = vset.pattern.permute.xlu0 0
    %3788 = vperm.xlu0 %3787, %v3374
    %v3789 = vpop.permute.xlu0 %3788
    %3792 = vset.pattern.permute.xlu0 0
    %3793 = vperm.xlu0 %3792, %v3375
    %v3794 = vpop.permute.xlu0 %3793
    %3797 = vset.pattern.permute.xlu0 0
    %3798 = vperm.xlu0 %3797, %v3376
    %v3799 = vpop.permute.xlu0 %3798
    %3802 = vset.pattern.permute.xlu0 0
    %3803 = vperm.xlu0 %3802, %v3377
    %v3804 = vpop.permute.xlu0 %3803
    %3807 = vset.pattern.permute.xlu0 0
    %3808 = vperm.xlu0 %3807, %v3378
    %v3809 = vpop.permute.xlu0 %3808
    %3812 = vset.pattern.permute.xlu0 0
    %3813 = vperm.xlu0 %3812, %v3379
    %v3814 = vpop.permute.xlu0 %3813
    %3817 = vset.pattern.permute.xlu0 0
    %3818 = vperm.xlu0 %3817, %v3380
    %v3819 = vpop.permute.xlu0 %3818
    %3822 = vset.pattern.permute.xlu0 0
    %3823 = vperm.xlu0 %3822, %v3381
    %v3824 = vpop.permute.xlu0 %3823
    %3827 = vset.pattern.permute.xlu0 0
    %3828 = vperm.xlu0 %3827, %v3382
    %v3829 = vpop.permute.xlu0 %3828
    %3832 = vset.pattern.permute.xlu0 0
    %3833 = vperm.xlu0 %3832, %v3383
    %v3834 = vpop.permute.xlu0 %3833
    %3837 = vset.pattern.permute.xlu0 0
    %3838 = vperm.xlu0 %3837, %v3384
    %v3839 = vpop.permute.xlu0 %3838
    %3842 = vset.pattern.permute.xlu0 0
    %3843 = vperm.xlu0 %3842, %v3385
    %v3844 = vpop.permute.xlu0 %3843
    %3847 = vset.pattern.permute.xlu0 0
    %3848 = vperm.xlu0 %3847, %v3386
    %v3849 = vpop.permute.xlu0 %3848
    %3852 = vset.pattern.permute.xlu0 0
    %3853 = vperm.xlu0 %3852, %v3387
    %v3854 = vpop.permute.xlu0 %3853
    %3857 = vset.pattern.permute.xlu0 0
    %3858 = vperm.xlu0 %3857, %v3388
    %v3859 = vpop.permute.xlu0 %3858
    %3862 = vset.pattern.permute.xlu0 0
    %3863 = vperm.xlu0 %3862, %v3389
    %v3864 = vpop.permute.xlu0 %3863
    %3867 = vset.pattern.permute.xlu0 0
    %3868 = vperm.xlu0 %3867, %v3390
    %v3869 = vpop.permute.xlu0 %3868
    %3872 = vset.pattern.permute.xlu0 0
    %3873 = vperm.xlu0 %3872, %v3391
    %v3874 = vpop.permute.xlu0 %3873
    %3877 = vset.pattern.permute.xlu0 0
    %3878 = vperm.xlu0 %3877, %v3392
    %v3879 = vpop.permute.xlu0 %3878
    %3882 = vset.pattern.permute.xlu0 0
    %3883 = vperm.xlu0 %3882, %v3393
    %v3884 = vpop.permute.xlu0 %3883
    %3887 = vset.pattern.permute.xlu0 0
    %3888 = vperm.xlu0 %3887, %v3394
    %v3889 = vpop.permute.xlu0 %3888
    %3892 = vset.pattern.permute.xlu0 0
    %3893 = vperm.xlu0 %3892, %v3395
    %v3894 = vpop.permute.xlu0 %3893
    %3897 = vset.pattern.permute.xlu0 0
    %3898 = vperm.xlu0 %3897, %v3396
    %v3899 = vpop.permute.xlu0 %3898
    %3902 = vset.pattern.permute.xlu0 0
    %3903 = vperm.xlu0 %3902, %v3397
    %v3904 = vpop.permute.xlu0 %3903
    %3907 = vset.pattern.permute.xlu0 0
    %3908 = vperm.xlu0 %3907, %v3398
    %v3909 = vpop.permute.xlu0 %3908
    %3912 = vset.pattern.permute.xlu0 0
    %3913 = vperm.xlu0 %3912, %v3399
    %v3914 = vpop.permute.xlu0 %3913
    %3917 = vset.pattern.permute.xlu0 0
    %3918 = vperm.xlu0 %3917, %v3400
    %v3919 = vpop.permute.xlu0 %3918
    %3922 = vset.pattern.permute.xlu0 0
    %3923 = vperm.xlu0 %3922, %v3401
    %v3924 = vpop.permute.xlu0 %3923
    %3927 = vset.pattern.permute.xlu0 0
    %3928 = vperm.xlu0 %3927, %v3402
    %v3929 = vpop.permute.xlu0 %3928
    %3932 = vset.pattern.permute.xlu0 0
    %3933 = vperm.xlu0 %3932, %v3403
    %v3934 = vpop.permute.xlu0 %3933
    %3937 = vset.pattern.permute.xlu0 0
    %3938 = vperm.xlu0 %3937, %v3404
    %v3939 = vpop.permute.xlu0 %3938
    %3942 = vset.pattern.permute.xlu0 0
    %3943 = vperm.xlu0 %3942, %v3405
    %v3944 = vpop.permute.xlu0 %3943
    %3947 = vset.pattern.permute.xlu0 0
    %3948 = vperm.xlu0 %3947, %v3406
    %v3949 = vpop.permute.xlu0 %3948
    %3952 = vset.pattern.permute.xlu0 0
    %3953 = vperm.xlu0 %3952, %v3407
    %v3954 = vpop.permute.xlu0 %3953
    %3957 = vset.pattern.permute.xlu0 0
    %3958 = vperm.xlu0 %3957, %v3408
    %v3959 = vpop.permute.xlu0 %3958
    %3962 = vset.pattern.permute.xlu0 0
    %3963 = vperm.xlu0 %3962, %v3409
    %v3964 = vpop.permute.xlu0 %3963
    %3967 = vset.pattern.permute.xlu0 0
    %3968 = vperm.xlu0 %3967, %v3410
    %v3969 = vpop.permute.xlu0 %3968
    %3972 = vset.pattern.permute.xlu0 0
    %3973 = vperm.xlu0 %3972, %v3411
    %v3974 = vpop.permute.xlu0 %3973
    %3977 = vset.pattern.permute.xlu0 0
    %3978 = vperm.xlu0 %3977, %v3412
    %v3979 = vpop.permute.xlu0 %3978
    %3982 = vset.pattern.permute.xlu0 0
    %3983 = vperm.xlu0 %3982, %v3413
    %v3984 = vpop.permute.xlu0 %3983
    %3987 = vset.pattern.permute.xlu0 0
    %3988 = vperm.xlu0 %3987, %v3414
    %v3989 = vpop.permute.xlu0 %3988
    %3992 = vset.pattern.permute.xlu0 0
    %3993 = vperm.xlu0 %3992, %v3415
    %v3994 = vpop.permute.xlu0 %3993
    %3997 = vset.pattern.permute.xlu0 0
    %3998 = vperm.xlu0 %3997, %v3416
    %v3999 = vpop.permute.xlu0 %3998
    %4002 = vset.pattern.permute.xlu0 0
    %4003 = vperm.xlu0 %4002, %v3417
    %v4004 = vpop.permute.xlu0 %4003
    %4007 = vset.pattern.permute.xlu0 0
    %4008 = vperm.xlu0 %4007, %v3418
    %v4009 = vpop.permute.xlu0 %4008
    %4012 = vset.pattern.permute.xlu0 0
    %4013 = vperm.xlu0 %4012, %v3419
    %v4014 = vpop.permute.xlu0 %4013
    %4017 = vset.pattern.permute.xlu0 0
    %4018 = vperm.xlu0 %4017, %v3420
    %v4019 = vpop.permute.xlu0 %4018
    %4022 = vset.pattern.permute.xlu0 0
    %4023 = vperm.xlu0 %4022, %v3421
    %v4024 = vpop.permute.xlu0 %4023
    %4027 = vset.pattern.permute.xlu0 0
    %4028 = vperm.xlu0 %4027, %v3422
    %v4029 = vpop.permute.xlu0 %4028
    %4032 = vset.pattern.permute.xlu0 0
    %4033 = vperm.xlu0 %4032, %v3423
    %v4034 = vpop.permute.xlu0 %4033
    %4037 = vset.pattern.permute.xlu0 0
    %4038 = vperm.xlu0 %4037, %v3424
    %v4039 = vpop.permute.xlu0 %4038
    %4042 = vset.pattern.permute.xlu0 0
    %4043 = vperm.xlu0 %4042, %v3425
    %v4044 = vpop.permute.xlu0 %4043
    %4047 = vset.pattern.permute.xlu0 0
    %4048 = vperm.xlu0 %4047, %v3426
    %v4049 = vpop.permute.xlu0 %4048
    %4052 = vset.pattern.permute.xlu0 0
    %4053 = vperm.xlu0 %4052, %v3427
    %v4054 = vpop.permute.xlu0 %4053
    %4057 = vset.pattern.permute.xlu0 0
    %4058 = vperm.xlu0 %4057, %v3428
    %v4059 = vpop.permute.xlu0 %4058
    %4062 = vset.pattern.permute.xlu0 0
    %4063 = vperm.xlu0 %4062, %v3429
    %v4064 = vpop.permute.xlu0 %4063
    %4067 = vset.pattern.permute.xlu0 0
    %4068 = vperm.xlu0 %4067, %v3430
    %v4069 = vpop.permute.xlu0 %4068
    %4072 = vset.pattern.permute.xlu0 0
    %4073 = vperm.xlu0 %4072, %v3431
    %v4074 = vpop.permute.xlu0 %4073
    %4077 = vset.pattern.permute.xlu0 0
    %4078 = vperm.xlu0 %4077, %v3432
    %v4079 = vpop.permute.xlu0 %4078
    %4082 = vset.pattern.permute.xlu0 0
    %4083 = vperm.xlu0 %4082, %v3433
    %v4084 = vpop.permute.xlu0 %4083
    %4087 = vset.pattern.permute.xlu0 0
    %4088 = vperm.xlu0 %4087, %v3434
    %v4089 = vpop.permute.xlu0 %4088
    %4092 = vset.pattern.permute.xlu0 0
    %4093 = vperm.xlu0 %4092, %v3435
    %v4094 = vpop.permute.xlu0 %4093
    %4097 = vset.pattern.permute.xlu0 0
    %4098 = vperm.xlu0 %4097, %v3436
    %v4099 = vpop.permute.xlu0 %4098
    %4102 = vset.pattern.permute.xlu0 0
    %4103 = vperm.xlu0 %4102, %v3437
    %v4104 = vpop.permute.xlu0 %4103
    %4107 = vset.pattern.permute.xlu0 0
    %4108 = vperm.xlu0 %4107, %v3438
    %v4109 = vpop.permute.xlu0 %4108
    %4112 = vset.pattern.permute.xlu0 0
    %4113 = vperm.xlu0 %4112, %v3439
    %v4114 = vpop.permute.xlu0 %4113
    %4117 = vset.pattern.permute.xlu0 0
    %4118 = vperm.xlu0 %4117, %v3440
    %v4119 = vpop.permute.xlu0 %4118
    %4122 = vset.pattern.permute.xlu0 0
    %4123 = vperm.xlu0 %4122, %v3441
    %v4124 = vpop.permute.xlu0 %4123
    %4127 = vset.pattern.permute.xlu0 0
    %4128 = vperm.xlu0 %4127, %v3442
    %v4129 = vpop.permute.xlu0 %4128
    %4132 = vset.pattern.permute.xlu0 0
    %4133 = vperm.xlu0 %4132, %v3443
    %v4134 = vpop.permute.xlu0 %4133
    %4137 = vset.pattern.permute.xlu0 0
    %4138 = vperm.xlu0 %4137, %v3444
    %v4139 = vpop.permute.xlu0 %4138
    %4142 = vset.pattern.permute.xlu0 0
    %4143 = vperm.xlu0 %4142, %v3445
    %v4144 = vpop.permute.xlu0 %4143
    %4147 = vset.pattern.permute.xlu0 0
    %4148 = vperm.xlu0 %4147, %v3446
    %v4149 = vpop.permute.xlu0 %4148
    %4152 = vset.pattern.permute.xlu0 0
    %4153 = vperm.xlu0 %4152, %v3447
    %v4154 = vpop.permute.xlu0 %4153
    %4157 = vset.pattern.permute.xlu0 0
    %4158 = vperm.xlu0 %4157, %v3448
    %v4159 = vpop.permute.xlu0 %4158
    %4162 = vset.pattern.permute.xlu0 0
    %4163 = vperm.xlu0 %4162, %v3449
    %v4164 = vpop.permute.xlu0 %4163
    %4167 = vset.pattern.permute.xlu0 0
    %4168 = vperm.xlu0 %4167, %v3450
    %v4169 = vpop.permute.xlu0 %4168
    %4172 = vset.pattern.permute.xlu0 0
    %4173 = vperm.xlu0 %4172, %v3451
    %v4174 = vpop.permute.xlu0 %4173
    %4177 = vset.pattern.permute.xlu0 0
    %4178 = vperm.xlu0 %4177, %v3452
    %v4179 = vpop.permute.xlu0 %4178
    %4182 = vset.pattern.permute.xlu0 0
    %4183 = vperm.xlu0 %4182, %v3453
    %v4184 = vpop.permute.xlu0 %4183
    %4187 = vset.pattern.permute.xlu0 0
    %4188 = vperm.xlu0 %4187, %v3454
    %v4189 = vpop.permute.xlu0 %4188
    %4192 = vset.pattern.permute.xlu0 0
    %4193 = vperm.xlu0 %4192, %v3455
    %v4194 = vpop.permute.xlu0 %4193
    %4197 = vset.pattern.permute.xlu0 0
    %4198 = vperm.xlu0 %4197, %v3456
    %v4199 = vpop.permute.xlu0 %4198
    %4202 = vset.pattern.permute.xlu0 0
    %4203 = vperm.xlu0 %4202, %v3457
    %v4204 = vpop.permute.xlu0 %4203
    %4207 = vset.pattern.permute.xlu0 0
    %4208 = vperm.xlu0 %4207, %v3458
    %v4209 = vpop.permute.xlu0 %4208
    %4212 = vset.pattern.permute.xlu0 0
    %4213 = vperm.xlu0 %4212, %v3459
    %v4214 = vpop.permute.xlu0 %4213
    %4217 = vset.pattern.permute.xlu0 0
    %4218 = vperm.xlu0 %4217, %v3460
    %v4219 = vpop.permute.xlu0 %4218
    %4222 = vset.pattern.permute.xlu0 0
    %4223 = vperm.xlu0 %4222, %v3461
    %v4224 = vpop.permute.xlu0 %4223
    %4227 = vset.pattern.permute.xlu0 0
    %4228 = vperm.xlu0 %4227, %v3462
    %v4229 = vpop.permute.xlu0 %4228
    %v4231 = vmul.f32 %v3463, %v3594
    %v4232 = vmul.f32 %v3464, %v3599
    %v4233 = vmul.f32 %v3465, %v3604
    %v4234 = vmul.f32 %v3466, %v3609
    %v4235 = vmul.f32 %v3467, %v3614
    %v4236 = vmul.f32 %v3468, %v3619
    %v4237 = vmul.f32 %v3469, %v3624
    %v4238 = vmul.f32 %v3470, %v3629
    %v4239 = vmul.f32 %v3471, %v3634
    %v4240 = vmul.f32 %v3472, %v3639
    %v4241 = vmul.f32 %v3473, %v3644
    %v4242 = vmul.f32 %v3474, %v3649
    %v4243 = vmul.f32 %v3475, %v3654
    %v4244 = vmul.f32 %v3476, %v3659
    %v4245 = vmul.f32 %v3477, %v3664
    %v4246 = vmul.f32 %v3478, %v3669
    %v4247 = vmul.f32 %v3479, %v3674
    %v4248 = vmul.f32 %v3480, %v3679
    %v4249 = vmul.f32 %v3481, %v3684
    %v4250 = vmul.f32 %v3482, %v3689
    %v4251 = vmul.f32 %v3483, %v3694
    %v4252 = vmul.f32 %v3484, %v3699
    %v4253 = vmul.f32 %v3485, %v3704
    %v4254 = vmul.f32 %v3486, %v3709
    %v4255 = vmul.f32 %v3487, %v3714
    %v4256 = vmul.f32 %v3488, %v3719
    %v4257 = vmul.f32 %v3489, %v3724
    %v4258 = vmul.f32 %v3490, %v3729
    %v4259 = vmul.f32 %v3491, %v3734
    %v4260 = vmul.f32 %v3492, %v3739
    %v4261 = vmul.f32 %v3493, %v3744
    %v4262 = vmul.f32 %v3494, %v3749
    %v4263 = vmul.f32 %v3495, %v3754
    %v4264 = vmul.f32 %v3496, %v3759
    %v4265 = vmul.f32 %v3497, %v3764
    %v4266 = vmul.f32 %v3498, %v3769
    %v4267 = vmul.f32 %v3499, %v3774
    %v4268 = vmul.f32 %v3500, %v3779
    %v4269 = vmul.f32 %v3501, %v3784
    %v4270 = vmul.f32 %v3502, %v3789
    %v4271 = vmul.f32 %v3503, %v3794
    %v4272 = vmul.f32 %v3504, %v3799
    %v4273 = vmul.f32 %v3505, %v3804
    %v4274 = vmul.f32 %v3506, %v3809
    %v4275 = vmul.f32 %v3507, %v3814
    %v4276 = vmul.f32 %v3508, %v3819
    %v4277 = vmul.f32 %v3509, %v3824
    %v4278 = vmul.f32 %v3510, %v3829
    %v4279 = vmul.f32 %v3511, %v3834
    %v4280 = vmul.f32 %v3512, %v3839
    %v4281 = vmul.f32 %v3513, %v3844
    %v4282 = vmul.f32 %v3514, %v3849
    %v4283 = vmul.f32 %v3515, %v3854
    %v4284 = vmul.f32 %v3516, %v3859
    %v4285 = vmul.f32 %v3517, %v3864
    %v4286 = vmul.f32 %v3518, %v3869
    %v4287 = vmul.f32 %v3519, %v3874
    %v4288 = vmul.f32 %v3520, %v3879
    %v4289 = vmul.f32 %v3521, %v3884
    %v4290 = vmul.f32 %v3522, %v3889
    %v4291 = vmul.f32 %v3523, %v3894
    %v4292 = vmul.f32 %v3524, %v3899
    %v4293 = vmul.f32 %v3525, %v3904
    %v4294 = vmul.f32 %v3526, %v3909
    %v4295 = vmul.f32 %v3527, %v3914
    %v4296 = vmul.f32 %v3528, %v3919
    %v4297 = vmul.f32 %v3529, %v3924
    %v4298 = vmul.f32 %v3530, %v3929
    %v4299 = vmul.f32 %v3531, %v3934
    %v4300 = vmul.f32 %v3532, %v3939
    %v4301 = vmul.f32 %v3533, %v3944
    %v4302 = vmul.f32 %v3534, %v3949
    %v4303 = vmul.f32 %v3535, %v3954
    %v4304 = vmul.f32 %v3536, %v3959
    %v4305 = vmul.f32 %v3537, %v3964
    %v4306 = vmul.f32 %v3538, %v3969
    %v4307 = vmul.f32 %v3539, %v3974
    %v4308 = vmul.f32 %v3540, %v3979
    %v4309 = vmul.f32 %v3541, %v3984
    %v4310 = vmul.f32 %v3542, %v3989
    %v4311 = vmul.f32 %v3543, %v3994
    %v4312 = vmul.f32 %v3544, %v3999
    %v4313 = vmul.f32 %v3545, %v4004
    %v4314 = vmul.f32 %v3546, %v4009
    %v4315 = vmul.f32 %v3547, %v4014
    %v4316 = vmul.f32 %v3548, %v4019
    %v4317 = vmul.f32 %v3549, %v4024
    %v4318 = vmul.f32 %v3550, %v4029
    %v4319 = vmul.f32 %v3551, %v4034
    %v4320 = vmul.f32 %v3552, %v4039
    %v4321 = vmul.f32 %v3553, %v4044
    %v4322 = vmul.f32 %v3554, %v4049
    %v4323 = vmul.f32 %v3555, %v4054
    %v4324 = vmul.f32 %v3556, %v4059
    %v4325 = vmul.f32 %v3557, %v4064
    %v4326 = vmul.f32 %v3558, %v4069
    %v4327 = vmul.f32 %v3559, %v4074
    %v4328 = vmul.f32 %v3560, %v4079
    %v4329 = vmul.f32 %v3561, %v4084
    %v4330 = vmul.f32 %v3562, %v4089
    %v4331 = vmul.f32 %v3563, %v4094
    %v4332 = vmul.f32 %v3564, %v4099
    %v4333 = vmul.f32 %v3565, %v4104
    %v4334 = vmul.f32 %v3566, %v4109
    %v4335 = vmul.f32 %v3567, %v4114
    %v4336 = vmul.f32 %v3568, %v4119
    %v4337 = vmul.f32 %v3569, %v4124
    %v4338 = vmul.f32 %v3570, %v4129
    %v4339 = vmul.f32 %v3571, %v4134
    %v4340 = vmul.f32 %v3572, %v4139
    %v4341 = vmul.f32 %v3573, %v4144
    %v4342 = vmul.f32 %v3574, %v4149
    %v4343 = vmul.f32 %v3575, %v4154
    %v4344 = vmul.f32 %v3576, %v4159
    %v4345 = vmul.f32 %v3577, %v4164
    %v4346 = vmul.f32 %v3578, %v4169
    %v4347 = vmul.f32 %v3579, %v4174
    %v4348 = vmul.f32 %v3580, %v4179
    %v4349 = vmul.f32 %v3581, %v4184
    %v4350 = vmul.f32 %v3582, %v4189
    %v4351 = vmul.f32 %v3583, %v4194
    %v4352 = vmul.f32 %v3584, %v4199
    %v4353 = vmul.f32 %v3585, %v4204
    %v4354 = vmul.f32 %v3586, %v4209
    %v4355 = vmul.f32 %v3587, %v4214
    %v4356 = vmul.f32 %v3588, %v4219
    %v4357 = vmul.f32 %v3589, %v4224
    %v4358 = vmul.f32 %v3590, %v4229
    %v4359 = vadd.f32 %v4231, %v4232
    %v4360 = vadd.f32 %v4359, %v4233
    %v4361 = vadd.f32 %v4360, %v4234
    %v4362 = vadd.f32 %v4361, %v4235
    %v4363 = vadd.f32 %v4362, %v4236
    %v4364 = vadd.f32 %v4363, %v4237
    %v4365 = vadd.f32 %v4364, %v4238
    %v4366 = vadd.f32 %v4365, %v4239
    %v4367 = vadd.f32 %v4366, %v4240
    %v4368 = vadd.f32 %v4367, %v4241
    %v4369 = vadd.f32 %v4368, %v4242
    %v4370 = vadd.f32 %v4369, %v4243
    %v4371 = vadd.f32 %v4370, %v4244
    %v4372 = vadd.f32 %v4371, %v4245
    %v4373 = vadd.f32 %v4372, %v4246
    %v4374 = vrot.slane %v4373, 4
    %v4375 = vadd.f32 %v4373, %v4374
    %v4376 = vrot.slane %v4375, 2
    %v4377 = vadd.f32 %v4375, %v4376
    %v4378 = vrot.slane %v4377, 1
    %v4379 = vadd.f32 %v4377, %v4378
    %v4380 = vadd.f32 %v4247, %v4248
    %v4381 = vadd.f32 %v4380, %v4249
    %v4382 = vadd.f32 %v4381, %v4250
    %v4383 = vadd.f32 %v4382, %v4251
    %v4384 = vadd.f32 %v4383, %v4252
    %v4385 = vadd.f32 %v4384, %v4253
    %v4386 = vadd.f32 %v4385, %v4254
    %v4387 = vadd.f32 %v4386, %v4255
    %v4388 = vadd.f32 %v4387, %v4256
    %v4389 = vadd.f32 %v4388, %v4257
    %v4390 = vadd.f32 %v4389, %v4258
    %v4391 = vadd.f32 %v4390, %v4259
    %v4392 = vadd.f32 %v4391, %v4260
    %v4393 = vadd.f32 %v4392, %v4261
    %v4394 = vadd.f32 %v4393, %v4262
    %v4395 = vrot.slane %v4394, 4
    %v4396 = vadd.f32 %v4394, %v4395
    %v4397 = vrot.slane %v4396, 2
    %v4398 = vadd.f32 %v4396, %v4397
    %v4399 = vrot.slane %v4398, 1
    %v4400 = vadd.f32 %v4398, %v4399
    %v4401 = vadd.f32 %v4263, %v4264
    %v4402 = vadd.f32 %v4401, %v4265
    %v4403 = vadd.f32 %v4402, %v4266
    %v4404 = vadd.f32 %v4403, %v4267
    %v4405 = vadd.f32 %v4404, %v4268
    %v4406 = vadd.f32 %v4405, %v4269
    %v4407 = vadd.f32 %v4406, %v4270
    %v4408 = vadd.f32 %v4407, %v4271
    %v4409 = vadd.f32 %v4408, %v4272
    %v4410 = vadd.f32 %v4409, %v4273
    %v4411 = vadd.f32 %v4410, %v4274
    %v4412 = vadd.f32 %v4411, %v4275
    %v4413 = vadd.f32 %v4412, %v4276
    %v4414 = vadd.f32 %v4413, %v4277
    %v4415 = vadd.f32 %v4414, %v4278
    %v4416 = vrot.slane %v4415, 4
    %v4417 = vadd.f32 %v4415, %v4416
    %v4418 = vrot.slane %v4417, 2
    %v4419 = vadd.f32 %v4417, %v4418
    %v4420 = vrot.slane %v4419, 1
    %v4421 = vadd.f32 %v4419, %v4420
    %v4422 = vadd.f32 %v4279, %v4280
    %v4423 = vadd.f32 %v4422, %v4281
    %v4424 = vadd.f32 %v4423, %v4282
    %v4425 = vadd.f32 %v4424, %v4283
    %v4426 = vadd.f32 %v4425, %v4284
    %v4427 = vadd.f32 %v4426, %v4285
    %v4428 = vadd.f32 %v4427, %v4286
    %v4429 = vadd.f32 %v4428, %v4287
    %v4430 = vadd.f32 %v4429, %v4288
    %v4431 = vadd.f32 %v4430, %v4289
    %v4432 = vadd.f32 %v4431, %v4290
    %v4433 = vadd.f32 %v4432, %v4291
    %v4434 = vadd.f32 %v4433, %v4292
    %v4435 = vadd.f32 %v4434, %v4293
    %v4436 = vadd.f32 %v4435, %v4294
    %v4437 = vrot.slane %v4436, 4
    %v4438 = vadd.f32 %v4436, %v4437
    %v4439 = vrot.slane %v4438, 2
    %v4440 = vadd.f32 %v4438, %v4439
    %v4441 = vrot.slane %v4440, 1
    %v4442 = vadd.f32 %v4440, %v4441
    %v4443 = vadd.f32 %v4295, %v4296
    %v4444 = vadd.f32 %v4443, %v4297
    %v4445 = vadd.f32 %v4444, %v4298
    %v4446 = vadd.f32 %v4445, %v4299
    %v4447 = vadd.f32 %v4446, %v4300
    %v4448 = vadd.f32 %v4447, %v4301
    %v4449 = vadd.f32 %v4448, %v4302
    %v4450 = vadd.f32 %v4449, %v4303
    %v4451 = vadd.f32 %v4450, %v4304
    %v4452 = vadd.f32 %v4451, %v4305
    %v4453 = vadd.f32 %v4452, %v4306
    %v4454 = vadd.f32 %v4453, %v4307
    %v4455 = vadd.f32 %v4454, %v4308
    %v4456 = vadd.f32 %v4455, %v4309
    %v4457 = vadd.f32 %v4456, %v4310
    %v4458 = vrot.slane %v4457, 4
    %v4459 = vadd.f32 %v4457, %v4458
    %v4460 = vrot.slane %v4459, 2
    %v4461 = vadd.f32 %v4459, %v4460
    %v4462 = vrot.slane %v4461, 1
    %v4463 = vadd.f32 %v4461, %v4462
    %v4464 = vadd.f32 %v4311, %v4312
    %v4465 = vadd.f32 %v4464, %v4313
    %v4466 = vadd.f32 %v4465, %v4314
    %v4467 = vadd.f32 %v4466, %v4315
    %v4468 = vadd.f32 %v4467, %v4316
    %v4469 = vadd.f32 %v4468, %v4317
    %v4470 = vadd.f32 %v4469, %v4318
    %v4471 = vadd.f32 %v4470, %v4319
    %v4472 = vadd.f32 %v4471, %v4320
    %v4473 = vadd.f32 %v4472, %v4321
    %v4474 = vadd.f32 %v4473, %v4322
    %v4475 = vadd.f32 %v4474, %v4323
    %v4476 = vadd.f32 %v4475, %v4324
    %v4477 = vadd.f32 %v4476, %v4325
    %v4478 = vadd.f32 %v4477, %v4326
    %v4479 = vrot.slane %v4478, 4
    %v4480 = vadd.f32 %v4478, %v4479
    %v4481 = vrot.slane %v4480, 2
    %v4482 = vadd.f32 %v4480, %v4481
    %v4483 = vrot.slane %v4482, 1
    %v4484 = vadd.f32 %v4482, %v4483
    %v4485 = vadd.f32 %v4327, %v4328
    %v4486 = vadd.f32 %v4485, %v4329
    %v4487 = vadd.f32 %v4486, %v4330
    %v4488 = vadd.f32 %v4487, %v4331
    %v4489 = vadd.f32 %v4488, %v4332
    %v4490 = vadd.f32 %v4489, %v4333
    %v4491 = vadd.f32 %v4490, %v4334
    %v4492 = vadd.f32 %v4491, %v4335
    %v4493 = vadd.f32 %v4492, %v4336
    %v4494 = vadd.f32 %v4493, %v4337
    %v4495 = vadd.f32 %v4494, %v4338
    %v4496 = vadd.f32 %v4495, %v4339
    %v4497 = vadd.f32 %v4496, %v4340
    %v4498 = vadd.f32 %v4497, %v4341
    %v4499 = vadd.f32 %v4498, %v4342
    %v4500 = vrot.slane %v4499, 4
    %v4501 = vadd.f32 %v4499, %v4500
    %v4502 = vrot.slane %v4501, 2
    %v4503 = vadd.f32 %v4501, %v4502
    %v4504 = vrot.slane %v4503, 1
    %v4505 = vadd.f32 %v4503, %v4504
    %v4506 = vadd.f32 %v4343, %v4344
    %v4507 = vadd.f32 %v4506, %v4345
    %v4508 = vadd.f32 %v4507, %v4346
    %v4509 = vadd.f32 %v4508, %v4347
    %v4510 = vadd.f32 %v4509, %v4348
    %v4511 = vadd.f32 %v4510, %v4349
    %v4512 = vadd.f32 %v4511, %v4350
    %v4513 = vadd.f32 %v4512, %v4351
    %v4514 = vadd.f32 %v4513, %v4352
    %v4515 = vadd.f32 %v4514, %v4353
    %v4516 = vadd.f32 %v4515, %v4354
    %v4517 = vadd.f32 %v4516, %v4355
    %v4518 = vadd.f32 %v4517, %v4356
    %v4519 = vadd.f32 %v4518, %v4357
    %v4520 = vadd.f32 %v4519, %v4358
    %v4521 = vrot.slane %v4520, 4
    %v4522 = vadd.f32 %v4520, %v4521
    %v4523 = vrot.slane %v4522, 2
    %v4524 = vadd.f32 %v4522, %v4523
    %v4525 = vrot.slane %v4524, 1
    %v4526 = vadd.f32 %v4524, %v4525
    %v4535 = vsel %vm2129, %v4400, %v4379
    %v4536 = vsel %vm2131, %v4421, %v4535
    %v4537 = vsel %vm2133, %v4442, %v4536
    %v4538 = vsel %vm2135, %v4463, %v4537
    %v4539 = vsel %vm2137, %v4484, %v4538
    %v4540 = vsel %vm2139, %v4505, %v4539
    %v4541 = vsel %vm2141, %v4526, %v4540
    %v4543 = vmul.f32 %v297, %v4541
    %s4544 = smul.u32 %s42, 4
    %s4545 = smul.addr %s4544, 8
    %s4546 = scalar_lea.vmem %s9, %s4545
    %v4547 = vld [vmem:[%s4546] sm:$0xff]
    %v4548 = vld [vmem:[%s4546 + $0x8] sm:$0xff]
    %v4549 = vld [vmem:[%s4546 + $0x10] sm:$0xff]
    %v4550 = vld [vmem:[%s4546 + $0x18] sm:$0xff]
    %v4551 = vld [vmem:[%s7] sm:$0xff]
    %v4552 = vld [vmem:[%s7 + $0x8] sm:$0xff]
    %v4553 = vld [vmem:[%s7 + $0x10] sm:$0xff]
    %v4554 = vld [vmem:[%s7 + $0x18] sm:$0xff]
    %v4555 = vld [vmem:[%s7 + $0x20] sm:$0xff]
    %v4556 = vld [vmem:[%s7 + $0x28] sm:$0xff]
    %v4557 = vld [vmem:[%s7 + $0x30] sm:$0xff]
    %v4558 = vld [vmem:[%s7 + $0x38] sm:$0xff]
    %v4559 = vld [vmem:[%s7 + $0x40] sm:$0xff]
    %v4560 = vld [vmem:[%s7 + $0x48] sm:$0xff]
    %v4561 = vld [vmem:[%s7 + $0x50] sm:$0xff]
    %v4562 = vld [vmem:[%s7 + $0x58] sm:$0xff]
    %v4563 = vld [vmem:[%s7 + $0x60] sm:$0xff]
    %v4564 = vld [vmem:[%s7 + $0x68] sm:$0xff]
    %v4565 = vld [vmem:[%s7 + $0x70] sm:$0xff]
    %v4566 = vld [vmem:[%s7 + $0x78] sm:$0xff]
    %v4567 = vld [vmem:[%s7 + $0x80] sm:$0xff]
    %v4568 = vld [vmem:[%s7 + $0x88] sm:$0xff]
    %v4569 = vld [vmem:[%s7 + $0x90] sm:$0xff]
    %v4570 = vld [vmem:[%s7 + $0x98] sm:$0xff]
    %v4571 = vld [vmem:[%s7 + $0xa0] sm:$0xff]
    %v4572 = vld [vmem:[%s7 + $0xa8] sm:$0xff]
    %v4573 = vld [vmem:[%s7 + $0xb0] sm:$0xff]
    %v4574 = vld [vmem:[%s7 + $0xb8] sm:$0xff]
    %v4575 = vld [vmem:[%s7 + $0xc0] sm:$0xff]
    %v4576 = vld [vmem:[%s7 + $0xc8] sm:$0xff]
    %v4577 = vld [vmem:[%s7 + $0xd0] sm:$0xff]
    %v4578 = vld [vmem:[%s7 + $0xd8] sm:$0xff]
    %v4579 = vld [vmem:[%s7 + $0xe0] sm:$0xff]
    %v4580 = vld [vmem:[%s7 + $0xe8] sm:$0xff]
    %v4581 = vld [vmem:[%s7 + $0xf0] sm:$0xff]
    %v4582 = vld [vmem:[%s7 + $0xf8] sm:$0xff]
    %v4583 = vld [vmem:[%s7 + $0x100] sm:$0xff]
    %v4584 = vld [vmem:[%s7 + $0x108] sm:$0xff]
    %v4585 = vld [vmem:[%s7 + $0x110] sm:$0xff]
    %v4586 = vld [vmem:[%s7 + $0x118] sm:$0xff]
    %v4587 = vld [vmem:[%s7 + $0x120] sm:$0xff]
    %v4588 = vld [vmem:[%s7 + $0x128] sm:$0xff]
    %v4589 = vld [vmem:[%s7 + $0x130] sm:$0xff]
    %v4590 = vld [vmem:[%s7 + $0x138] sm:$0xff]
    %v4591 = vld [vmem:[%s7 + $0x140] sm:$0xff]
    %v4592 = vld [vmem:[%s7 + $0x148] sm:$0xff]
    %v4593 = vld [vmem:[%s7 + $0x150] sm:$0xff]
    %v4594 = vld [vmem:[%s7 + $0x158] sm:$0xff]
    %v4595 = vld [vmem:[%s7 + $0x160] sm:$0xff]
    %v4596 = vld [vmem:[%s7 + $0x168] sm:$0xff]
    %v4597 = vld [vmem:[%s7 + $0x170] sm:$0xff]
    %v4598 = vld [vmem:[%s7 + $0x178] sm:$0xff]
    %v4599 = vld [vmem:[%s7 + $0x180] sm:$0xff]
    %v4600 = vld [vmem:[%s7 + $0x188] sm:$0xff]
    %v4601 = vld [vmem:[%s7 + $0x190] sm:$0xff]
    %v4602 = vld [vmem:[%s7 + $0x198] sm:$0xff]
    %v4603 = vld [vmem:[%s7 + $0x1a0] sm:$0xff]
    %v4604 = vld [vmem:[%s7 + $0x1a8] sm:$0xff]
    %v4605 = vld [vmem:[%s7 + $0x1b0] sm:$0xff]
    %v4606 = vld [vmem:[%s7 + $0x1b8] sm:$0xff]
    %v4607 = vld [vmem:[%s7 + $0x1c0] sm:$0xff]
    %v4608 = vld [vmem:[%s7 + $0x1c8] sm:$0xff]
    %v4609 = vld [vmem:[%s7 + $0x1d0] sm:$0xff]
    %v4610 = vld [vmem:[%s7 + $0x1d8] sm:$0xff]
    %v4611 = vld [vmem:[%s7 + $0x1e0] sm:$0xff]
    %v4612 = vld [vmem:[%s7 + $0x1e8] sm:$0xff]
    %v4613 = vld [vmem:[%s7 + $0x1f0] sm:$0xff]
    %v4614 = vld [vmem:[%s7 + $0x1f8] sm:$0xff]
    %4615 = vmatpush.msra.mxu0 %v4611
    %4616 = vmatpush.msra.mxu0 %v4607
    %4617 = vmatpush.msra.mxu0 %v4603
    %4618 = vmatpush.msra.mxu0 %v4599
    %4619 = vmatpush.msra.mxu0 %v4595
    %4620 = vmatpush.msra.mxu0 %v4591
    %4621 = vmatpush.msra.mxu0 %v4587
    %4622 = vmatpush.msra.mxu0 %v4583
    %4623 = vmatpush.msra.mxu0 %v4579
    %4624 = vmatpush.msra.mxu0 %v4575
    %4625 = vmatpush.msra.mxu0 %v4571
    %4626 = vmatpush.msra.mxu0 %v4567
    %4627 = vmatpush.msra.mxu0 %v4563
    %4628 = vmatpush.msra.mxu0 %v4559
    %4629 = vmatpush.msra.mxu0 %v4555
    %4630 = vmatpush.msra.mxu0 %v4551
    %4631 = vmatmul.f32.gmra.mxu0 %v4543
    %v4632 = vpop.f32.mrf.mxu0
    %v4633 = vadd.f32 0.0, %v4632
    %4634 = vdwg.mxu0
    %4635 = vmatpush.msra.mxu0 %v4612
    %4636 = vmatpush.msra.mxu0 %v4608
    %4637 = vmatpush.msra.mxu0 %v4604
    %4638 = vmatpush.msra.mxu0 %v4600
    %4639 = vmatpush.msra.mxu0 %v4596
    %4640 = vmatpush.msra.mxu0 %v4592
    %4641 = vmatpush.msra.mxu0 %v4588
    %4642 = vmatpush.msra.mxu0 %v4584
    %4643 = vmatpush.msra.mxu0 %v4580
    %4644 = vmatpush.msra.mxu0 %v4576
    %4645 = vmatpush.msra.mxu0 %v4572
    %4646 = vmatpush.msra.mxu0 %v4568
    %4647 = vmatpush.msra.mxu0 %v4564
    %4648 = vmatpush.msra.mxu0 %v4560
    %4649 = vmatpush.msra.mxu0 %v4556
    %4650 = vmatpush.msra.mxu0 %v4552
    %4651 = vmatmul.f32.gmra.mxu0 %v4543
    %v4652 = vpop.f32.mrf.mxu0
    %v4653 = vadd.f32 0.0, %v4652
    %4654 = vdwg.mxu0
    %4655 = vmatpush.msra.mxu0 %v4613
    %4656 = vmatpush.msra.mxu0 %v4609
    %4657 = vmatpush.msra.mxu0 %v4605
    %4658 = vmatpush.msra.mxu0 %v4601
    %4659 = vmatpush.msra.mxu0 %v4597
    %4660 = vmatpush.msra.mxu0 %v4593
    %4661 = vmatpush.msra.mxu0 %v4589
    %4662 = vmatpush.msra.mxu0 %v4585
    %4663 = vmatpush.msra.mxu0 %v4581
    %4664 = vmatpush.msra.mxu0 %v4577
    %4665 = vmatpush.msra.mxu0 %v4573
    %4666 = vmatpush.msra.mxu0 %v4569
    %4667 = vmatpush.msra.mxu0 %v4565
    %4668 = vmatpush.msra.mxu0 %v4561
    %4669 = vmatpush.msra.mxu0 %v4557
    %4670 = vmatpush.msra.mxu0 %v4553
    %4671 = vmatmul.f32.gmra.mxu0 %v4543
    %v4672 = vpop.f32.mrf.mxu0
    %v4673 = vadd.f32 0.0, %v4672
    %4674 = vdwg.mxu0
    %4675 = vmatpush.msra.mxu0 %v4614
    %4676 = vmatpush.msra.mxu0 %v4610
    %4677 = vmatpush.msra.mxu0 %v4606
    %4678 = vmatpush.msra.mxu0 %v4602
    %4679 = vmatpush.msra.mxu0 %v4598
    %4680 = vmatpush.msra.mxu0 %v4594
    %4681 = vmatpush.msra.mxu0 %v4590
    %4682 = vmatpush.msra.mxu0 %v4586
    %4683 = vmatpush.msra.mxu0 %v4582
    %4684 = vmatpush.msra.mxu0 %v4578
    %4685 = vmatpush.msra.mxu0 %v4574
    %4686 = vmatpush.msra.mxu0 %v4570
    %4687 = vmatpush.msra.mxu0 %v4566
    %4688 = vmatpush.msra.mxu0 %v4562
    %4689 = vmatpush.msra.mxu0 %v4558
    %4690 = vmatpush.msra.mxu0 %v4554
    %4691 = vmatmul.f32.gmra.mxu0 %v4543
    %v4692 = vpop.f32.mrf.mxu0
    %v4693 = vadd.f32 0.0, %v4692
    %4694 = vdwg.mxu0
    %v4695 = vadd.f32 %v4547, %v4633
    %v4696 = vadd.f32 %v4548, %v4653
    %v4697 = vadd.f32 %v4549, %v4673
    %v4698 = vadd.f32 %v4550, %v4693
    %v4699 = vadd.f32 %v4695, %v217
    %v4700 = vadd.f32 %v4696, %v237
    %v4701 = vadd.f32 %v4697, %v257
    %v4702 = vadd.f32 %v4698, %v277
    %v4703 = vxor.u32 %v4699, 2147483648
    %v4704 = vmul.f32 %v4703, 1.442695
    %v4705 = vpow.pop %v4704
    %v4706 = vadd.f32 %v4705, 1.0
    %v4707 = vrcp.pop %v4706
    %v4708 = vmul.f32 %v4706, %v4707
    %v4709 = vsub.f32 1.0, %v4708
    %v4710 = vmul.f32 %v4707, %v4709
    %v4711 = vadd.f32 %v4707, %v4710
    %vm4712 = vweird.f32 %v4706
    %vm4713 = vweird.f32 %v4707
    %vm4714 = vmor %vm4712, %vm4713
    %v4715 = vsel %vm4714, %v4707, %v4711
    %v4716 = vand.u32 2147483647, %v4706
    %vm4717 = vcmp.eq.f32.partialorder %v4716, 8.507059e+37
    %v4718 = vand.u32 %v4706, 2147483648
    %v4719 = vor.u32 1.1754944e-38, %v4718
    %v4720 = vsel %vm4717, %v4719, %v4715
    %v4721 = vmul.f32 1.0, %v4720
    %v4722 = vxor.u32 %v4700, 2147483648
    %v4723 = vmul.f32 %v4722, 1.442695
    %v4724 = vpow.pop %v4723
    %v4725 = vadd.f32 %v4724, 1.0
    %v4726 = vrcp.pop %v4725
    %v4727 = vmul.f32 %v4725, %v4726
    %v4728 = vsub.f32 1.0, %v4727
    %v4729 = vmul.f32 %v4726, %v4728
    %v4730 = vadd.f32 %v4726, %v4729
    %vm4731 = vweird.f32 %v4725
    %vm4732 = vweird.f32 %v4726
    %vm4733 = vmor %vm4731, %vm4732
    %v4734 = vsel %vm4733, %v4726, %v4730
    %v4735 = vand.u32 2147483647, %v4725
    %vm4736 = vcmp.eq.f32.partialorder %v4735, 8.507059e+37
    %v4737 = vand.u32 %v4725, 2147483648
    %v4738 = vor.u32 1.1754944e-38, %v4737
    %v4739 = vsel %vm4736, %v4738, %v4734
    %v4740 = vmul.f32 1.0, %v4739
    %v4741 = vtanh.pop %v4701
    %v4742 = vxor.u32 %v4702, 2147483648
    %v4743 = vmul.f32 %v4742, 1.442695
    %v4744 = vpow.pop %v4743
    %v4745 = vadd.f32 %v4744, 1.0
    %v4746 = vrcp.pop %v4745
    %v4747 = vmul.f32 %v4745, %v4746
    %v4748 = vsub.f32 1.0, %v4747
    %v4749 = vmul.f32 %v4746, %v4748
    %v4750 = vadd.f32 %v4746, %v4749
    %vm4751 = vweird.f32 %v4745
    %vm4752 = vweird.f32 %v4746
    %vm4753 = vmor %vm4751, %vm4752
    %v4754 = vsel %vm4753, %v4746, %v4750
    %v4755 = vand.u32 2147483647, %v4745
    %vm4756 = vcmp.eq.f32.partialorder %v4755, 8.507059e+37
    %v4757 = vand.u32 %v4745, 2147483648
    %v4758 = vor.u32 1.1754944e-38, %v4757
    %v4759 = vsel %vm4756, %v4758, %v4754
    %v4760 = vmul.f32 1.0, %v4759
    %v4761 = vmul.f32 %v4740, %v48
    %v4762 = vmul.f32 %v4721, %v4741
    %v4763 = vadd.f32 %v4761, %v4762
    %v4764 = vtanh.pop %v4763
    %v4765 = vmul.f32 %v4760, %v4764
    %s4766 = smul.u32 %s42, 8
    %s4767 = scalar_lea.vmem %s10, %s4766
    %4768 = vst [vmem:[%s4767] sm:$0xff] %v4765
    %v4769 = vperm.slane %v3594, %v1850
    %v4770 = vperm.slane %v3599, %v1852
    %v4771 = vsel %vm1854, %v4770, %v4769
    %v4772 = vperm.slane %v3604, %v1856
    %v4773 = vsel %vm1858, %v4772, %v4771
    %v4774 = vperm.slane %v3609, %v1860
    %v4775 = vsel %vm1862, %v4774, %v4773
    %v4776 = vperm.slane %v3614, %v1864
    %v4777 = vsel %vm1866, %v4776, %v4775
    %v4778 = vperm.slane %v3619, %v1868
    %v4779 = vsel %vm1870, %v4778, %v4777
    %v4780 = vperm.slane %v3624, %v1872
    %v4781 = vsel %vm1874, %v4780, %v4779
    %v4782 = vperm.slane %v3629, %v1876
    %v4783 = vsel %vm1878, %v4782, %v4781
    %v4784 = vperm.slane %v3634, %v1880
    %v4785 = vsel %vm1882, %v4784, %v4783
    %v4786 = vperm.slane %v3639, %v1884
    %v4787 = vsel %vm1886, %v4786, %v4785
    %v4788 = vperm.slane %v3644, %v1888
    %v4789 = vsel %vm1890, %v4788, %v4787
    %v4790 = vperm.slane %v3649, %v1892
    %v4791 = vsel %vm1894, %v4790, %v4789
    %v4792 = vperm.slane %v3654, %v1896
    %v4793 = vsel %vm1898, %v4792, %v4791
    %v4794 = vperm.slane %v3659, %v1900
    %v4795 = vsel %vm1902, %v4794, %v4793
    %v4796 = vperm.slane %v3664, %v1904
    %v4797 = vsel %vm1906, %v4796, %v4795
    %v4798 = vperm.slane %v3669, %v1908
    %v4799 = vsel %vm1910, %v4798, %v4797
    %v4800 = vperm.slane %v3674, %v1850
    %v4801 = vperm.slane %v3679, %v1852
    %v4802 = vsel %vm1854, %v4801, %v4800
    %v4803 = vperm.slane %v3684, %v1856
    %v4804 = vsel %vm1858, %v4803, %v4802
    %v4805 = vperm.slane %v3689, %v1860
    %v4806 = vsel %vm1862, %v4805, %v4804
    %v4807 = vperm.slane %v3694, %v1864
    %v4808 = vsel %vm1866, %v4807, %v4806
    %v4809 = vperm.slane %v3699, %v1868
    %v4810 = vsel %vm1870, %v4809, %v4808
    %v4811 = vperm.slane %v3704, %v1872
    %v4812 = vsel %vm1874, %v4811, %v4810
    %v4813 = vperm.slane %v3709, %v1876
    %v4814 = vsel %vm1878, %v4813, %v4812
    %v4815 = vperm.slane %v3714, %v1880
    %v4816 = vsel %vm1882, %v4815, %v4814
    %v4817 = vperm.slane %v3719, %v1884
    %v4818 = vsel %vm1886, %v4817, %v4816
    %v4819 = vperm.slane %v3724, %v1888
    %v4820 = vsel %vm1890, %v4819, %v4818
    %v4821 = vperm.slane %v3729, %v1892
    %v4822 = vsel %vm1894, %v4821, %v4820
    %v4823 = vperm.slane %v3734, %v1896
    %v4824 = vsel %vm1898, %v4823, %v4822
    %v4825 = vperm.slane %v3739, %v1900
    %v4826 = vsel %vm1902, %v4825, %v4824
    %v4827 = vperm.slane %v3744, %v1904
    %v4828 = vsel %vm1906, %v4827, %v4826
    %v4829 = vperm.slane %v3749, %v1908
    %v4830 = vsel %vm1910, %v4829, %v4828
    %v4831 = vperm.slane %v3754, %v1850
    %v4832 = vperm.slane %v3759, %v1852
    %v4833 = vsel %vm1854, %v4832, %v4831
    %v4834 = vperm.slane %v3764, %v1856
    %v4835 = vsel %vm1858, %v4834, %v4833
    %v4836 = vperm.slane %v3769, %v1860
    %v4837 = vsel %vm1862, %v4836, %v4835
    %v4838 = vperm.slane %v3774, %v1864
    %v4839 = vsel %vm1866, %v4838, %v4837
    %v4840 = vperm.slane %v3779, %v1868
    %v4841 = vsel %vm1870, %v4840, %v4839
    %v4842 = vperm.slane %v3784, %v1872
    %v4843 = vsel %vm1874, %v4842, %v4841
    %v4844 = vperm.slane %v3789, %v1876
    %v4845 = vsel %vm1878, %v4844, %v4843
    %v4846 = vperm.slane %v3794, %v1880
    %v4847 = vsel %vm1882, %v4846, %v4845
    %v4848 = vperm.slane %v3799, %v1884
    %v4849 = vsel %vm1886, %v4848, %v4847
    %v4850 = vperm.slane %v3804, %v1888
    %v4851 = vsel %vm1890, %v4850, %v4849
    %v4852 = vperm.slane %v3809, %v1892
    %v4853 = vsel %vm1894, %v4852, %v4851
    %v4854 = vperm.slane %v3814, %v1896
    %v4855 = vsel %vm1898, %v4854, %v4853
    %v4856 = vperm.slane %v3819, %v1900
    %v4857 = vsel %vm1902, %v4856, %v4855
    %v4858 = vperm.slane %v3824, %v1904
    %v4859 = vsel %vm1906, %v4858, %v4857
    %v4860 = vperm.slane %v3829, %v1908
    %v4861 = vsel %vm1910, %v4860, %v4859
    %v4862 = vperm.slane %v3834, %v1850
    %v4863 = vperm.slane %v3839, %v1852
    %v4864 = vsel %vm1854, %v4863, %v4862
    %v4865 = vperm.slane %v3844, %v1856
    %v4866 = vsel %vm1858, %v4865, %v4864
    %v4867 = vperm.slane %v3849, %v1860
    %v4868 = vsel %vm1862, %v4867, %v4866
    %v4869 = vperm.slane %v3854, %v1864
    %v4870 = vsel %vm1866, %v4869, %v4868
    %v4871 = vperm.slane %v3859, %v1868
    %v4872 = vsel %vm1870, %v4871, %v4870
    %v4873 = vperm.slane %v3864, %v1872
    %v4874 = vsel %vm1874, %v4873, %v4872
    %v4875 = vperm.slane %v3869, %v1876
    %v4876 = vsel %vm1878, %v4875, %v4874
    %v4877 = vperm.slane %v3874, %v1880
    %v4878 = vsel %vm1882, %v4877, %v4876
    %v4879 = vperm.slane %v3879, %v1884
    %v4880 = vsel %vm1886, %v4879, %v4878
    %v4881 = vperm.slane %v3884, %v1888
    %v4882 = vsel %vm1890, %v4881, %v4880
    %v4883 = vperm.slane %v3889, %v1892
    %v4884 = vsel %vm1894, %v4883, %v4882
    %v4885 = vperm.slane %v3894, %v1896
    %v4886 = vsel %vm1898, %v4885, %v4884
    %v4887 = vperm.slane %v3899, %v1900
    %v4888 = vsel %vm1902, %v4887, %v4886
    %v4889 = vperm.slane %v3904, %v1904
    %v4890 = vsel %vm1906, %v4889, %v4888
    %v4891 = vperm.slane %v3909, %v1908
    %v4892 = vsel %vm1910, %v4891, %v4890
    %v4893 = vperm.slane %v3914, %v1850
    %v4894 = vperm.slane %v3919, %v1852
    %v4895 = vsel %vm1854, %v4894, %v4893
    %v4896 = vperm.slane %v3924, %v1856
    %v4897 = vsel %vm1858, %v4896, %v4895
    %v4898 = vperm.slane %v3929, %v1860
    %v4899 = vsel %vm1862, %v4898, %v4897
    %v4900 = vperm.slane %v3934, %v1864
    %v4901 = vsel %vm1866, %v4900, %v4899
    %v4902 = vperm.slane %v3939, %v1868
    %v4903 = vsel %vm1870, %v4902, %v4901
    %v4904 = vperm.slane %v3944, %v1872
    %v4905 = vsel %vm1874, %v4904, %v4903
    %v4906 = vperm.slane %v3949, %v1876
    %v4907 = vsel %vm1878, %v4906, %v4905
    %v4908 = vperm.slane %v3954, %v1880
    %v4909 = vsel %vm1882, %v4908, %v4907
    %v4910 = vperm.slane %v3959, %v1884
    %v4911 = vsel %vm1886, %v4910, %v4909
    %v4912 = vperm.slane %v3964, %v1888
    %v4913 = vsel %vm1890, %v4912, %v4911
    %v4914 = vperm.slane %v3969, %v1892
    %v4915 = vsel %vm1894, %v4914, %v4913
    %v4916 = vperm.slane %v3974, %v1896
    %v4917 = vsel %vm1898, %v4916, %v4915
    %v4918 = vperm.slane %v3979, %v1900
    %v4919 = vsel %vm1902, %v4918, %v4917
    %v4920 = vperm.slane %v3984, %v1904
    %v4921 = vsel %vm1906, %v4920, %v4919
    %v4922 = vperm.slane %v3989, %v1908
    %v4923 = vsel %vm1910, %v4922, %v4921
    %v4924 = vperm.slane %v3994, %v1850
    %v4925 = vperm.slane %v3999, %v1852
    %v4926 = vsel %vm1854, %v4925, %v4924
    %v4927 = vperm.slane %v4004, %v1856
    %v4928 = vsel %vm1858, %v4927, %v4926
    %v4929 = vperm.slane %v4009, %v1860
    %v4930 = vsel %vm1862, %v4929, %v4928
    %v4931 = vperm.slane %v4014, %v1864
    %v4932 = vsel %vm1866, %v4931, %v4930
    %v4933 = vperm.slane %v4019, %v1868
    %v4934 = vsel %vm1870, %v4933, %v4932
    %v4935 = vperm.slane %v4024, %v1872
    %v4936 = vsel %vm1874, %v4935, %v4934
    %v4937 = vperm.slane %v4029, %v1876
    %v4938 = vsel %vm1878, %v4937, %v4936
    %v4939 = vperm.slane %v4034, %v1880
    %v4940 = vsel %vm1882, %v4939, %v4938
    %v4941 = vperm.slane %v4039, %v1884
    %v4942 = vsel %vm1886, %v4941, %v4940
    %v4943 = vperm.slane %v4044, %v1888
    %v4944 = vsel %vm1890, %v4943, %v4942
    %v4945 = vperm.slane %v4049, %v1892
    %v4946 = vsel %vm1894, %v4945, %v4944
    %v4947 = vperm.slane %v4054, %v1896
    %v4948 = vsel %vm1898, %v4947, %v4946
    %v4949 = vperm.slane %v4059, %v1900
    %v4950 = vsel %vm1902, %v4949, %v4948
    %v4951 = vperm.slane %v4064, %v1904
    %v4952 = vsel %vm1906, %v4951, %v4950
    %v4953 = vperm.slane %v4069, %v1908
    %v4954 = vsel %vm1910, %v4953, %v4952
    %v4955 = vperm.slane %v4074, %v1850
    %v4956 = vperm.slane %v4079, %v1852
    %v4957 = vsel %vm1854, %v4956, %v4955
    %v4958 = vperm.slane %v4084, %v1856
    %v4959 = vsel %vm1858, %v4958, %v4957
    %v4960 = vperm.slane %v4089, %v1860
    %v4961 = vsel %vm1862, %v4960, %v4959
    %v4962 = vperm.slane %v4094, %v1864
    %v4963 = vsel %vm1866, %v4962, %v4961
    %v4964 = vperm.slane %v4099, %v1868
    %v4965 = vsel %vm1870, %v4964, %v4963
    %v4966 = vperm.slane %v4104, %v1872
    %v4967 = vsel %vm1874, %v4966, %v4965
    %v4968 = vperm.slane %v4109, %v1876
    %v4969 = vsel %vm1878, %v4968, %v4967
    %v4970 = vperm.slane %v4114, %v1880
    %v4971 = vsel %vm1882, %v4970, %v4969
    %v4972 = vperm.slane %v4119, %v1884
    %v4973 = vsel %vm1886, %v4972, %v4971
    %v4974 = vperm.slane %v4124, %v1888
    %v4975 = vsel %vm1890, %v4974, %v4973
    %v4976 = vperm.slane %v4129, %v1892
    %v4977 = vsel %vm1894, %v4976, %v4975
    %v4978 = vperm.slane %v4134, %v1896
    %v4979 = vsel %vm1898, %v4978, %v4977
    %v4980 = vperm.slane %v4139, %v1900
    %v4981 = vsel %vm1902, %v4980, %v4979
    %v4982 = vperm.slane %v4144, %v1904
    %v4983 = vsel %vm1906, %v4982, %v4981
    %v4984 = vperm.slane %v4149, %v1908
    %v4985 = vsel %vm1910, %v4984, %v4983
    %v4986 = vperm.slane %v4154, %v1850
    %v4987 = vperm.slane %v4159, %v1852
    %v4988 = vsel %vm1854, %v4987, %v4986
    %v4989 = vperm.slane %v4164, %v1856
    %v4990 = vsel %vm1858, %v4989, %v4988
    %v4991 = vperm.slane %v4169, %v1860
    %v4992 = vsel %vm1862, %v4991, %v4990
    %v4993 = vperm.slane %v4174, %v1864
    %v4994 = vsel %vm1866, %v4993, %v4992
    %v4995 = vperm.slane %v4179, %v1868
    %v4996 = vsel %vm1870, %v4995, %v4994
    %v4997 = vperm.slane %v4184, %v1872
    %v4998 = vsel %vm1874, %v4997, %v4996
    %v4999 = vperm.slane %v4189, %v1876
    %v5000 = vsel %vm1878, %v4999, %v4998
    %v5001 = vperm.slane %v4194, %v1880
    %v5002 = vsel %vm1882, %v5001, %v5000
    %v5003 = vperm.slane %v4199, %v1884
    %v5004 = vsel %vm1886, %v5003, %v5002
    %v5005 = vperm.slane %v4204, %v1888
    %v5006 = vsel %vm1890, %v5005, %v5004
    %v5007 = vperm.slane %v4209, %v1892
    %v5008 = vsel %vm1894, %v5007, %v5006
    %v5009 = vperm.slane %v4214, %v1896
    %v5010 = vsel %vm1898, %v5009, %v5008
    %v5011 = vperm.slane %v4219, %v1900
    %v5012 = vsel %vm1902, %v5011, %v5010
    %v5013 = vperm.slane %v4224, %v1904
    %v5014 = vsel %vm1906, %v5013, %v5012
    %v5015 = vperm.slane %v4229, %v1908
    %v5016 = vsel %vm1910, %v5015, %v5014
    %v5017 = vsel %vm2129, %v4830, %v4799
    %v5018 = vsel %vm2131, %v4861, %v5017
    %v5019 = vsel %vm2133, %v4892, %v5018
    %v5020 = vsel %vm2135, %v4923, %v5019
    %v5021 = vsel %vm2137, %v4954, %v5020
    %v5022 = vsel %vm2139, %v4985, %v5021
    %v5023 = vsel %vm2141, %v5016, %v5022
    %s5025 = scalar_lea.vmem %s11, %s4766
    %5026 = vst [vmem:[%s5025] sm:$0xff] %v5023
    %5027 = vst [vmem:[#allocation2] sm:$0xff] %v4765
    %5028 = vst [vmem:[#allocation3] sm:$0xff] %v4763
  $region46: #{decoder_forward.1} parent=0 // loop_footer
    %s46 = sadd.s32 1, %s42
  $region47: #{decoder_forward.1} parent=0 // loop_footer_branch
    %41 = sbr.rel target = $region43
  $region48: #{decoder_forward.1} parent=0 // loop_exit
    _
  // Predicated region
  $region49: #{decoder_forward.1} parent=0 // pred_check
    _
  $region50: #{decoder_forward.1} parent=0 // pred_check_branch
    %5030 = sbr.rel (0) target = $region52
  $region51: #{decoder_forward.1} parent=0 // pred_region
    _
  $region52: #{decoder_forward.1} parent=0 // pred_fallthru
    _
  // Predicated region
  $region53: #{decoder_forward.1} parent=0 // pred_check
    _
  $region54: #{decoder_forward.1} parent=0 // pred_check_branch
    %5032 = sbr.rel (0) target = $region56
  $region55: #{decoder_forward.1} parent=0 // pred_region
    _
  $region56: #{decoder_forward.1} parent=0 // pred_fallthru
    _
  // Predicated region
  $region57: #{decoder_forward.1} parent=0 // pred_check
    _
  $region58: #{decoder_forward.1} parent=0 // pred_check_branch
    %5034 = sbr.rel (0) target = $region60
  $region59: #{decoder_forward.1} parent=0 // pred_region
    _
  $region60: #{decoder_forward.1} parent=0 // pred_fallthru
    _
  // Predicated region
  $region61: #{decoder_forward.1} parent=0 // pred_check
    _
  $region62: #{decoder_forward.1} parent=0 // pred_check_branch
    %5036 = sbr.rel (0) target = $region64
  $region63: #{decoder_forward.1} parent=0 // pred_region
    _
  $region64: #{decoder_forward.1} parent=0 // pred_fallthru
    _

</llo_original>
